<compile_context>
chip_gen: v7x
topology: tpu7x:2x2x1
jax: 0.10.0
libtpu: 0.0.40
codegen_flags: <defaults>
</compile_context>

<pallas_src>
import functools

import jax
import jax.numpy as jnp
from jax import lax
from jax.experimental import pallas as pl
from jax.experimental.pallas import tpu as pltpu

_VMEM = pl.BlockSpec(memory_space=pltpu.MemorySpace.VMEM)
_SMEM = pl.BlockSpec(memory_space=pltpu.MemorySpace.SMEM)


# ------------------------------ kernel helpers ------------------------------

def _bf16_dot(a, w):
    """MXU matmul: bf16 inputs, f32 accumulate."""
    return jnp.dot(a.astype(jnp.bfloat16), w.astype(jnp.bfloat16),
                   preferred_element_type=jnp.float32)


def _layernorm(x, g, b, eps):
    mu = jnp.mean(x, axis=-1, keepdims=True)
    var = jnp.mean((x - mu) ** 2, axis=-1, keepdims=True)
    return (x - mu) * lax.rsqrt(var + eps) * g + b


# ------------------------- encoder stack (1 kernel) --------------------------

def _encoder_stack_kernel(x_ref, embw_ref, embb_ref,
                          wqkv_ref, bqkv_ref, wo_ref, bo_ref,
                          w1_ref, b1_ref, w2_ref, b2_ref,
                          g1_ref, be1_ref, g2_ref, be2_ref,
                          last_ref, h_scr, *, nhead, eps):
    """Embedding + one post-norm TransformerEncoderLayer per layer-grid-step.

    grid = (B, num_layers); h_scr (S, E) carries the hidden state across the
    layer axis for the current batch row.
    """
    layer = pl.program_id(1)

    @pl.when(layer == 0)
    def _():
        # Input embedding, computed once per batch row.
        h_scr[...] = _bf16_dot(x_ref[0], embw_ref[...]) + embb_ref[...]

    x = h_scr[...]                                   # (S, E) f32
    S, E = x.shape
    dh = E // nhead
    scale = 1.0 / (dh ** 0.5)

    # ---- fused QKV projection ----
    qkv = _bf16_dot(x, wqkv_ref[0]) + bqkv_ref[0]    # (S, 3E) f32

    # ---- multi-head attention; heads unrolled inside one kernel ----
    attn = None
    for h in range(nhead):
        lo, hi = h * dh, (h + 1) * dh
        qh = qkv[:, lo:hi].astype(jnp.bfloat16)                # (S, dh)
        kh = qkv[:, E + lo:E + hi].astype(jnp.bfloat16)
        vh = qkv[:, 2 * E + lo:2 * E + hi].astype(jnp.bfloat16)
        s = lax.dot_general(qh, kh, (((1,), (1,)), ((), ())),
                            preferred_element_type=jnp.float32) * scale
        s = s - jnp.max(s, axis=-1, keepdims=True)
        p = jnp.exp(s)
        p = p * pl.reciprocal(jnp.sum(p, axis=-1, keepdims=True), approx=True)
        oh = jnp.dot(p.astype(jnp.bfloat16), vh,
                     preferred_element_type=jnp.float32)       # (S, dh)
        # head-wise out-projection: concat(heads) @ Wo == sum_h oh @ Wo[lo:hi]
        contrib = _bf16_dot(oh, wo_ref[0, lo:hi, :])           # (S, E)
        attn = contrib if attn is None else attn + contrib
    attn = attn + bo_ref[0]

    # ---- residual + LN1 (dropout1 = identity, eval mode) ----
    h1 = _layernorm(x + attn, g1_ref[0], be1_ref[0], eps)

    # ---- FFN: relu(h1 W1 + b1) W2 + b2 (dropout = identity) ----
    ff = jnp.maximum(_bf16_dot(h1, w1_ref[0]) + b1_ref[0], 0.0)
    ff = _bf16_dot(ff, w2_ref[0]) + b2_ref[0]

    # ---- residual + LN2 (dropout2 = identity) ----
    out = _layernorm(h1 + ff, g2_ref[0], be2_ref[0], eps)
    h_scr[...] = out

    @pl.when(layer == pl.num_programs(1) - 1)
    def _():
        # Only the last token's hidden state leaves VMEM.
        last_ref[0] = out[S - 1:S, :]


def encoder_stack(X, p, nhead):
    """X: (B, S, input_dim) f32 -> last_hidden (B, d_model) f32."""
    B, S, Fin = X.shape
    E = p["emb_w"].shape[1]
    L = p["in_proj_w"].shape[0]
    assert E % nhead == 0

    layer_spec = pl.BlockSpec(None, None)  # placeholder (replaced below)

    def stacked_spec(a):   # per-layer stacked weight: block (1, *a.shape[1:])
        return pl.BlockSpec((1,) + a.shape[1:], lambda b, l: (l, 0, 0))

    def const_spec(a):     # shared across grid
        zeros = (0,) * a.ndim
        return pl.BlockSpec(a.shape, lambda b, l, _z=zeros: _z)

    weights = (p["in_proj_w"], p["in_proj_b"],
               p["out_proj_w"], p["out_proj_b"],
               p["ff1_w"], p["ff1_b"], p["ff2_w"], p["ff2_b"],
               p["ln1_g"], p["ln1_b"], p["ln2_g"], p["ln2_b"])

    out = pl.pallas_call(
        functools.partial(_encoder_stack_kernel, nhead=nhead, eps=1e-5),
        grid=(B, L),
        in_specs=[pl.BlockSpec((1, S, Fin), lambda b, l: (b, 0, 0)),
                  const_spec(p["emb_w"]), const_spec(p["emb_b"])]
                 + [stacked_spec(w) for w in weights],
        out_specs=pl.BlockSpec((1, 1, E), lambda b, l: (b, 0, 0)),
        out_shape=jax.ShapeDtypeStruct((B, 1, E), jnp.float32),
        scratch_shapes=[pltpu.VMEM((S, E), jnp.float32)],
        compiler_params=pltpu.CompilerParams(
            dimension_semantics=("parallel", "arbitrary")),
    )(X, p["emb_w"], p["emb_b"], *weights)
    return out.reshape(B, E)


# ------------------ latent heads + reparam + decoder (1 kernel) --------------

def _latent_decoder_kernel(h_ref, w4_ref, b4_ref, eps_ref, u_ref, choice_ref,
                           pi0_ref,
                           fc1w_ref, fc1b_ref, fc2w_ref, fc2b_ref,
                           outw_ref, outb_ref, finw_ref, finb_ref,
                           recon_ref, stats_ref, *, latent_dim):
    """Fused [mean|logvar|scale|shape] heads + mixture reparam + MLP decoder."""
    L = latent_dim
    y = _bf16_dot(h_ref[...], w4_ref[...]) + b4_ref[...]       # (B, 4L) f32
    mean = y[:, :L]
    logvar = y[:, L:2 * L]
    scl = jnp.exp(y[:, 2 * L:3 * L])
    shp = y[:, 3 * L:]

    z_gauss = mean + eps_ref[...] * jnp.exp(0.5 * logvar)
    # GPD: scale/shape * ((1 - u)^(-shape) - 1), via exp/log.
    # TODO(synk): original module leaves `shape` unconstrained (0/0 at
    # shape==0); kept as-is for semantic fidelity.
    z_gpd = scl / shp * (jnp.exp(-shp * jnp.log(1.0 - u_ref[...])) - 1.0)

    use_gauss = choice_ref[...] < pi0_ref[0]                   # (B,1) broadcast
    z = jnp.where(use_gauss, z_gauss, z_gpd)

    # ---- decoder: fc1 -> relu -> fc2 -> relu -> out -> final (dropout = id) --
    d = jnp.maximum(_bf16_dot(z, fc1w_ref[...]) + fc1b_ref[...], 0.0)
    d = jnp.maximum(_bf16_dot(d, fc2w_ref[...]) + fc2b_ref[...], 0.0)
    o = _bf16_dot(d, outw_ref[...]) + outb_ref[...]
    recon_ref[...] = _bf16_dot(o, finw_ref[...]) + finb_ref[...]

    # Lane-dense stats slab: [mean | logvar | exp(scale) | shape].  Built with
    # a column-mask select (no unaligned lane concatenation needed).
    col = lax.broadcasted_iota(jnp.int32, y.shape, 1)
    is_scale = (col >= 2 * L) & (col < 3 * L)
    stats_ref[...] = jnp.where(is_scale, jnp.exp(y), y)


def latent_and_decode(last_hidden, p, eps, u, choice, pi0, latent_dim):
    B = last_hidden.shape[0]
    F_ = p["final_b"].shape[1]
    return pl.pallas_call(
        functools.partial(_latent_decoder_kernel, latent_dim=latent_dim),
        out_shape=(jax.ShapeDtypeStruct((B, F_), jnp.float32),
                   jax.ShapeDtypeStruct((B, 4 * latent_dim), jnp.float32)),
        in_specs=[_VMEM] * 6 + [_SMEM] + [_VMEM] * 8,
        out_specs=(_VMEM, _VMEM),
    )(last_hidden, p["latent_w"], p["latent_b"], eps, u,
      choice.reshape(B, 1), pi0.reshape(1),
      p["fc1_w"], p["fc1_b"], p["fc2_w"], p["fc2_b"],
      p["out_w"], p["out_b"], p["final_w"], p["final_b"])


# ------------------------------ model wrapper -------------------------------

def init_params(key, input_dim, d_model, num_layers, nhead, latent_dim,
                future_steps, dim_ff=2048):
    ks = iter(jax.random.split(key, 16 + 8 * num_layers))

    def lin(fan_in, fan_out, bias_val=0.0):
        w = (jax.random.normal(next(ks), (fan_in, fan_out), jnp.float32)
             * 0.05).astype(jnp.bfloat16)                  # matmul weights bf16
        b = jnp.full((1, fan_out), bias_val, jnp.float32)  # bias / LN in f32
        return w, b

    def stacked(make):
        ws, bs = zip(*(make() for _ in range(num_layers)))
        return jnp.stack(ws), jnp.stack(bs)

    p = {}
    p["emb_w"], p["emb_b"] = lin(input_dim, d_model)

    # Per-layer weights stacked on a leading layer axis (one pallas_call
    # pipelines them across the layer grid dimension).
    p["in_proj_w"], p["in_proj_b"] = stacked(lambda: lin(d_model, 3 * d_model))
    p["out_proj_w"], p["out_proj_b"] = stacked(lambda: lin(d_model, d_model))
    p["ff1_w"], p["ff1_b"] = stacked(lambda: lin(d_model, dim_ff))
    p["ff2_w"], p["ff2_b"] = stacked(lambda: lin(dim_ff, d_model))
    p["ln1_g"] = jnp.ones((num_layers, 1, d_model), jnp.float32)
    p["ln1_b"] = jnp.zeros((num_layers, 1, d_model), jnp.float32)
    p["ln2_g"] = jnp.ones((num_layers, 1, d_model), jnp.float32)
    p["ln2_b"] = jnp.zeros((num_layers, 1, d_model), jnp.float32)

    # Latent heads fused along N: [mean | logvar | scale | shape]  (lane-dense)
    mw, mb = lin(d_model, latent_dim)
    lw, lb = lin(d_model, latent_dim)
    sw, sb = lin(d_model, latent_dim)
    # bias 0.5 on the GPD shape head keeps scale/shape well-conditioned
    hw, hb = lin(d_model, latent_dim, bias_val=0.5)
    p["latent_w"] = jnp.concatenate([mw, lw, sw, hw], axis=1)
    p["latent_b"] = jnp.concatenate([mb, lb, sb, hb], axis=1)

    # decoder (dense1 of the PyTorch module is unused in forward -> omitted)
    p["fc1_w"], p["fc1_b"] = lin(latent_dim, 128)
    p["fc2_w"], p["fc2_b"] = lin(128, 500)
    p["out_w"], p["out_b"] = lin(500, future_steps)
    p["final_w"], p["final_b"] = lin(future_steps, future_steps)
    p["pi_params"] = jnp.array([3.0, 0.01], jnp.float32)
    return p


def _vae_forward(params, X, rng_key, nhead):
    """Returns (reconstructed, z_mean, z_logvar, z_scale, z_shape)."""
    B = X.shape[0]
    latent_dim = params["latent_w"].shape[1] // 4

    # ---- embedding + full transformer stack (single fused pallas_call) ----
    last_hidden = encoder_stack(X, params, nhead)       # == transformer_out[-1]

    # ---- mixture reparameterization + decoder (single fused pallas_call) ----
    k_eps, k_u, k_choice = jax.random.split(rng_key, 3)
    eps = jax.random.normal(k_eps, (B, latent_dim), jnp.float32)
    u = jax.random.uniform(k_u, (B, latent_dim), jnp.float32)
    choice = jax.random.uniform(k_choice, (B,), jnp.float32)
    pi0 = jax.nn.softmax(params["pi_params"])[0]

    reconstructed, stats = latent_and_decode(
        last_hidden, params, eps, u, choice, pi0, latent_dim)

    z_mean = stats[:, :latent_dim]
    z_logvar = stats[:, latent_dim:2 * latent_dim]
    z_scale = stats[:, 2 * latent_dim:3 * latent_dim]
    z_shape = stats[:, 3 * latent_dim:]
    return reconstructed, z_mean, z_logvar, z_scale, z_shape


vae_forward = jax.jit(_vae_forward, static_argnums=(3,))


# ---------------------------------- main -------------------------------------

if __name__ == "__main__":
    # Small shapes; d_model chosen lane-dense (128) so the encoder output and
    # the latent-stats slab use unmasked full-lane stores.
    B, S = 2, 8
    input_dim, d_model, num_layers, nhead = 8, 128, 2, 4
    latent_dim, future_steps = 32, 8

    key = jax.random.PRNGKey(0)
    k_params, k_x, k_rng = jax.random.split(key, 3)

    params = init_params(k_params, input_dim, d_model, num_layers, nhead,
                         latent_dim, future_steps)
    X = jax.random.normal(k_x, (B, S, input_dim), jnp.float32)

    outputs = vae_forward(params, X, k_rng, nhead)
    outputs = jax.block_until_ready(outputs)

    recon, zm, zlv, zsc, zsh = outputs
    assert recon.shape == (B, future_steps)
    assert zm.shape == (B, latent_dim) and zlv.shape == (B, latent_dim)
    assert zsc.shape == (B, latent_dim) and zsh.shape == (B, latent_dim)
    assert all(bool(jnp.all(jnp.isfinite(o))) for o in outputs)

    print("KERNEL_OK")
</pallas_src>

<mosaic_0001>
module attributes {stable_mosaic.version = 11 : i64} {
  func.func @_encoder_stack_kernel(%arg0: i32, %arg1: i32, %arg2: memref<1x8x8xf32, #tpu.memory_space<vmem>>, %arg3: memref<8x128xbf16, #tpu.memory_space<vmem>>, %arg4: memref<1x128xf32, #tpu.memory_space<vmem>>, %arg5: memref<1x128x384xbf16, #tpu.memory_space<vmem>>, %arg6: memref<1x1x384xf32, #tpu.memory_space<vmem>>, %arg7: memref<1x128x128xbf16, #tpu.memory_space<vmem>>, %arg8: memref<1x1x128xf32, #tpu.memory_space<vmem>>, %arg9: memref<1x128x2048xbf16, #tpu.memory_space<vmem>>, %arg10: memref<1x1x2048xf32, #tpu.memory_space<vmem>>, %arg11: memref<1x2048x128xbf16, #tpu.memory_space<vmem>>, %arg12: memref<1x1x128xf32, #tpu.memory_space<vmem>>, %arg13: memref<1x1x128xf32, #tpu.memory_space<vmem>>, %arg14: memref<1x1x128xf32, #tpu.memory_space<vmem>>, %arg15: memref<1x1x128xf32, #tpu.memory_space<vmem>>, %arg16: memref<1x1x128xf32, #tpu.memory_space<vmem>>, %arg17: memref<1x1x128xf32, #tpu.memory_space<vmem>>, %arg18: memref<8x128xf32, #tpu.memory_space<vmem>>) attributes {dimension_semantics = [#tpu.dimension_semantics<parallel>, #tpu.dimension_semantics<arbitrary>], iteration_bounds = array<i64: 2, 2>, scalar_prefetch = 0 : i64, scratch_operands = 1 : i64, tpu.core_type = #tpu.core_type<tc>, window_params = [{transform_indices = @transform_0, window_bounds = array<i64: 1, 8, 8>}, {pipeline_mode = #tpu.pipeline_mode<synchronous>, transform_indices = @transform_1, window_bounds = array<i64: 8, 128>}, {pipeline_mode = #tpu.pipeline_mode<synchronous>, transform_indices = @transform_2, window_bounds = array<i64: 1, 128>}, {transform_indices = @transform_3, window_bounds = array<i64: 1, 128, 384>}, {transform_indices = @transform_4, window_bounds = array<i64: 1, 1, 384>}, {transform_indices = @transform_5, window_bounds = array<i64: 1, 128, 128>}, {transform_indices = @transform_6, window_bounds = array<i64: 1, 1, 128>}, {transform_indices = @transform_7, window_bounds = array<i64: 1, 128, 2048>}, {transform_indices = @transform_8, window_bounds = array<i64: 1, 1, 2048>}, {transform_indices = @transform_9, window_bounds = array<i64: 1, 2048, 128>}, {transform_indices = @transform_10, window_bounds = array<i64: 1, 1, 128>}, {transform_indices = @transform_11, window_bounds = array<i64: 1, 1, 128>}, {transform_indices = @transform_12, window_bounds = array<i64: 1, 1, 128>}, {transform_indices = @transform_13, window_bounds = array<i64: 1, 1, 128>}, {transform_indices = @transform_14, window_bounds = array<i64: 1, 1, 128>}, {transform_indices = @transform_15, window_bounds = array<i64: 1, 1, 128>}]} {
    %c0_i32 = arith.constant 0 : i32
    %0 = arith.cmpi eq, %arg1, %c0_i32 : i32
    %1 = arith.extui %0 : i1 to i32
    %c0_i32_0 = arith.constant 0 : i32
    %2 = arith.cmpi ne, %1, %c0_i32_0 : i32
    scf.if %2 {
      %c0_84 = arith.constant 0 : index
      %c0_85 = arith.constant 0 : index
      %c0_86 = arith.constant 0 : index
      %195 = vector.load %arg2[%c0_84, %c0_85, %c0_86] : memref<1x8x8xf32, #tpu.memory_space<vmem>>, vector<1x8x8xf32>
      %196 = vector.shape_cast %195 : vector<1x8x8xf32> to vector<8x8xf32>
      %c0_87 = arith.constant 0 : index
      %c0_88 = arith.constant 0 : index
      %197 = vector.load %arg3[%c0_87, %c0_88] : memref<8x128xbf16, #tpu.memory_space<vmem>>, vector<8x128xbf16>
      %198 = arith.truncf %196 : vector<8x8xf32> to vector<8x8xbf16>
      %cst_89 = arith.constant dense<0.000000e+00> : vector<8x128xf32>
      %199 = tpu.matmul %198, %197, %cst_89 {dimension_numbers = #tpu.dot_dimension_numbers<[1], [0], [0], [1], [0, 0, 1, 1], [], []>} : vector<8x8xbf16>, vector<8x128xbf16>, vector<8x128xf32> -> vector<8x128xf32>
      %c0_90 = arith.constant 0 : index
      %c0_91 = arith.constant 0 : index
      %200 = vector.load %arg4[%c0_90, %c0_91] : memref<1x128xf32, #tpu.memory_space<vmem>>, vector<1x128xf32>
      %201 = vector.broadcast %200 : vector<1x128xf32> to vector<8x128xf32>
      %202 = arith.addf %199, %201 : vector<8x128xf32>
      %c0_92 = arith.constant 0 : index
      %c0_93 = arith.constant 0 : index
      %203 = vector.load %arg18[%c0_92, %c0_93] : memref<8x128xf32, #tpu.memory_space<vmem>>, vector<8x128xf32>
      tpu.vector_store %arg18[%c0_92, %c0_93], %202 {strides = array<i32>} : memref<8x128xf32, #tpu.memory_space<vmem>>, vector<8x128xf32>,
    } else {
    }
    %c0 = arith.constant 0 : index
    %c0_1 = arith.constant 0 : index
    %3 = vector.load %arg18[%c0, %c0_1] : memref<8x128xf32, #tpu.memory_space<vmem>>, vector<8x128xf32>
    %c0_2 = arith.constant 0 : index
    %c0_3 = arith.constant 0 : index
    %c0_4 = arith.constant 0 : index
    %4 = vector.load %arg5[%c0_2, %c0_3, %c0_4] : memref<1x128x384xbf16, #tpu.memory_space<vmem>>, vector<1x128x384xbf16>
    %5 = vector.shape_cast %4 : vector<1x128x384xbf16> to vector<128x384xbf16>
    %6 = arith.truncf %3 : vector<8x128xf32> to vector<8x128xbf16>
    %cst = arith.constant dense<0.000000e+00> : vector<8x384xf32>
    %7 = tpu.matmul %6, %5, %cst {dimension_numbers = #tpu.dot_dimension_numbers<[1], [0], [0], [1], [0, 0, 1, 1], [], []>} : vector<8x128xbf16>, vector<128x384xbf16>, vector<8x384xf32> -> vector<8x384xf32>
    %c0_5 = arith.constant 0 : index
    %c0_6 = arith.constant 0 : index
    %c0_7 = arith.constant 0 : index
    %8 = vector.load %arg6[%c0_5, %c0_6, %c0_7] : memref<1x1x384xf32, #tpu.memory_space<vmem>>, vector<1x1x384xf32>
    %9 = vector.shape_cast %8 : vector<1x1x384xf32> to vector<1x384xf32>
    %10 = vector.broadcast %9 : vector<1x384xf32> to vector<8x384xf32>
    %11 = arith.addf %7, %10 : vector<8x384xf32>
    %12 = vector.extract_strided_slice %11 {offsets = [0, 0], sizes = [8, 32], strides = [1, 1]} : vector<8x384xf32> to vector<8x32xf32>
    %13 = arith.truncf %12 : vector<8x32xf32> to vector<8x32xbf16>
    %14 = vector.extract_strided_slice %11 {offsets = [0, 128], sizes = [8, 32], strides = [1, 1]} : vector<8x384xf32> to vector<8x32xf32>
    %15 = arith.truncf %14 : vector<8x32xf32> to vector<8x32xbf16>
    %16 = vector.extract_strided_slice %11 {offsets = [0, 256], sizes = [8, 32], strides = [1, 1]} : vector<8x384xf32> to vector<8x32xf32>
    %17 = arith.truncf %16 : vector<8x32xf32> to vector<8x32xbf16>
    %cst_8 = arith.constant dense<0.000000e+00> : vector<8x8xf32>
    %18 = tpu.matmul %13, %15, %cst_8 {dimension_numbers = #tpu.dot_dimension_numbers<[1], [1], [0], [0], [0, 0, 1, 0], [], []>} : vector<8x32xbf16>, vector<8x32xbf16>, vector<8x8xf32> -> vector<8x8xf32>
    %cst_9 = arith.constant 0.176776692 : f32
    %19 = vector.broadcast %cst_9 : f32 to vector<8x8xf32>
    %20 = arith.mulf %18, %19 : vector<8x8xf32>
    %cst_10 = arith.constant dense<0xFF800000> : vector<8xf32>
    %21 = vector.multi_reduction <maximumf>, %20, %cst_10 [1] : vector<8x8xf32> to vector<8xf32>
    %22 = vector.shape_cast %21 : vector<8xf32> to vector<8x1xf32>
    %23 = vector.broadcast %22 : vector<8x1xf32> to vector<8x8xf32>
    %24 = arith.subf %20, %23 : vector<8x8xf32>
    %25 = math.exp %24 : vector<8x8xf32>
    %cst_11 = arith.constant dense<0.000000e+00> : vector<8xf32>
    %26 = vector.multi_reduction <add>, %25, %cst_11 [1] : vector<8x8xf32> to vector<8xf32>
    %27 = vector.shape_cast %26 : vector<8xf32> to vector<8x1xf32>
    %28 = tpu.reciprocal %27 {approx = true} : vector<8x1xf32> -> vector<8x1xf32>
    %29 = vector.broadcast %28 : vector<8x1xf32> to vector<8x8xf32>
    %30 = arith.mulf %25, %29 : vector<8x8xf32>
    %31 = arith.truncf %30 : vector<8x8xf32> to vector<8x8xbf16>
    %cst_12 = arith.constant dense<0.000000e+00> : vector<8x32xf32>
    %32 = tpu.matmul %31, %17, %cst_12 {dimension_numbers = #tpu.dot_dimension_numbers<[1], [0], [0], [1], [0, 0, 1, 1], [], []>} : vector<8x8xbf16>, vector<8x32xbf16>, vector<8x32xf32> -> vector<8x32xf32>
    %c0_13 = arith.constant 0 : index
    %c0_14 = arith.constant 0 : index
    %c0_15 = arith.constant 0 : index
    %33 = vector.load %arg7[%c0_13, %c0_14, %c0_15] : memref<1x128x128xbf16, #tpu.memory_space<vmem>>, vector<1x32x128xbf16>
    %34 = vector.shape_cast %33 : vector<1x32x128xbf16> to vector<32x128xbf16>
    %35 = arith.truncf %32 : vector<8x32xf32> to vector<8x32xbf16>
    %cst_16 = arith.constant dense<0.000000e+00> : vector<8x128xf32>
    %36 = tpu.matmul %35, %34, %cst_16 {dimension_numbers = #tpu.dot_dimension_numbers<[1], [0], [0], [1], [0, 0, 1, 1], [], []>} : vector<8x32xbf16>, vector<32x128xbf16>, vector<8x128xf32> -> vector<8x128xf32>
    %37 = vector.extract_strided_slice %11 {offsets = [0, 32], sizes = [8, 32], strides = [1, 1]} : vector<8x384xf32> to vector<8x32xf32>
    %38 = arith.truncf %37 : vector<8x32xf32> to vector<8x32xbf16>
    %39 = vector.extract_strided_slice %11 {offsets = [0, 160], sizes = [8, 32], strides = [1, 1]} : vector<8x384xf32> to vector<8x32xf32>
    %40 = arith.truncf %39 : vector<8x32xf32> to vector<8x32xbf16>
    %41 = vector.extract_strided_slice %11 {offsets = [0, 288], sizes = [8, 32], strides = [1, 1]} : vector<8x384xf32> to vector<8x32xf32>
    %42 = arith.truncf %41 : vector<8x32xf32> to vector<8x32xbf16>
    %cst_17 = arith.constant dense<0.000000e+00> : vector<8x8xf32>
    %43 = tpu.matmul %38, %40, %cst_17 {dimension_numbers = #tpu.dot_dimension_numbers<[1], [1], [0], [0], [0, 0, 1, 0], [], []>} : vector<8x32xbf16>, vector<8x32xbf16>, vector<8x8xf32> -> vector<8x8xf32>
    %cst_18 = arith.constant 0.176776692 : f32
    %44 = vector.broadcast %cst_18 : f32 to vector<8x8xf32>
    %45 = arith.mulf %43, %44 : vector<8x8xf32>
    %cst_19 = arith.constant dense<0xFF800000> : vector<8xf32>
    %46 = vector.multi_reduction <maximumf>, %45, %cst_19 [1] : vector<8x8xf32> to vector<8xf32>
    %47 = vector.shape_cast %46 : vector<8xf32> to vector<8x1xf32>
    %48 = vector.broadcast %47 : vector<8x1xf32> to vector<8x8xf32>
    %49 = arith.subf %45, %48 : vector<8x8xf32>
    %50 = math.exp %49 : vector<8x8xf32>
    %cst_20 = arith.constant dense<0.000000e+00> : vector<8xf32>
    %51 = vector.multi_reduction <add>, %50, %cst_20 [1] : vector<8x8xf32> to vector<8xf32>
    %52 = vector.shape_cast %51 : vector<8xf32> to vector<8x1xf32>
    %53 = tpu.reciprocal %52 {approx = true} : vector<8x1xf32> -> vector<8x1xf32>
    %54 = vector.broadcast %53 : vector<8x1xf32> to vector<8x8xf32>
    %55 = arith.mulf %50, %54 : vector<8x8xf32>
    %56 = arith.truncf %55 : vector<8x8xf32> to vector<8x8xbf16>
    %cst_21 = arith.constant dense<0.000000e+00> : vector<8x32xf32>
    %57 = tpu.matmul %56, %42, %cst_21 {dimension_numbers = #tpu.dot_dimension_numbers<[1], [0], [0], [1], [0, 0, 1, 1], [], []>} : vector<8x8xbf16>, vector<8x32xbf16>, vector<8x32xf32> -> vector<8x32xf32>
    %c0_22 = arith.constant 0 : index
    %c32 = arith.constant 32 : index
    %c0_23 = arith.constant 0 : index
    %58 = vector.load %arg7[%c0_22, %c32, %c0_23] : memref<1x128x128xbf16, #tpu.memory_space<vmem>>, vector<1x32x128xbf16>
    %59 = vector.shape_cast %58 : vector<1x32x128xbf16> to vector<32x128xbf16>
    %60 = arith.truncf %57 : vector<8x32xf32> to vector<8x32xbf16>
    %cst_24 = arith.constant dense<0.000000e+00> : vector<8x128xf32>
    %61 = tpu.matmul %60, %59, %cst_24 {dimension_numbers = #tpu.dot_dimension_numbers<[1], [0], [0], [1], [0, 0, 1, 1], [], []>} : vector<8x32xbf16>, vector<32x128xbf16>, vector<8x128xf32> -> vector<8x128xf32>
    %62 = arith.addf %36, %61 : vector<8x128xf32>
    %63 = vector.extract_strided_slice %11 {offsets = [0, 64], sizes = [8, 32], strides = [1, 1]} : vector<8x384xf32> to vector<8x32xf32>
    %64 = arith.truncf %63 : vector<8x32xf32> to vector<8x32xbf16>
    %65 = vector.extract_strided_slice %11 {offsets = [0, 192], sizes = [8, 32], strides = [1, 1]} : vector<8x384xf32> to vector<8x32xf32>
    %66 = arith.truncf %65 : vector<8x32xf32> to vector<8x32xbf16>
    %67 = vector.extract_strided_slice %11 {offsets = [0, 320], sizes = [8, 32], strides = [1, 1]} : vector<8x384xf32> to vector<8x32xf32>
    %68 = arith.truncf %67 : vector<8x32xf32> to vector<8x32xbf16>
    %cst_25 = arith.constant dense<0.000000e+00> : vector<8x8xf32>
    %69 = tpu.matmul %64, %66, %cst_25 {dimension_numbers = #tpu.dot_dimension_numbers<[1], [1], [0], [0], [0, 0, 1, 0], [], []>} : vector<8x32xbf16>, vector<8x32xbf16>, vector<8x8xf32> -> vector<8x8xf32>
    %cst_26 = arith.constant 0.176776692 : f32
    %70 = vector.broadcast %cst_26 : f32 to vector<8x8xf32>
    %71 = arith.mulf %69, %70 : vector<8x8xf32>
    %cst_27 = arith.constant dense<0xFF800000> : vector<8xf32>
    %72 = vector.multi_reduction <maximumf>, %71, %cst_27 [1] : vector<8x8xf32> to vector<8xf32>
    %73 = vector.shape_cast %72 : vector<8xf32> to vector<8x1xf32>
    %74 = vector.broadcast %73 : vector<8x1xf32> to vector<8x8xf32>
    %75 = arith.subf %71, %74 : vector<8x8xf32>
    %76 = math.exp %75 : vector<8x8xf32>
    %cst_28 = arith.constant dense<0.000000e+00> : vector<8xf32>
    %77 = vector.multi_reduction <add>, %76, %cst_28 [1] : vector<8x8xf32> to vector<8xf32>
    %78 = vector.shape_cast %77 : vector<8xf32> to vector<8x1xf32>
    %79 = tpu.reciprocal %78 {approx = true} : vector<8x1xf32> -> vector<8x1xf32>
    %80 = vector.broadcast %79 : vector<8x1xf32> to vector<8x8xf32>
    %81 = arith.mulf %76, %80 : vector<8x8xf32>
    %82 = arith.truncf %81 : vector<8x8xf32> to vector<8x8xbf16>
    %cst_29 = arith.constant dense<0.000000e+00> : vector<8x32xf32>
    %83 = tpu.matmul %82, %68, %cst_29 {dimension_numbers = #tpu.dot_dimension_numbers<[1], [0], [0], [1], [0, 0, 1, 1], [], []>} : vector<8x8xbf16>, vector<8x32xbf16>, vector<8x32xf32> -> vector<8x32xf32>
    %c0_30 = arith.constant 0 : index
    %c64 = arith.constant 64 : index
    %c0_31 = arith.constant 0 : index
    %84 = vector.load %arg7[%c0_30, %c64, %c0_31] : memref<1x128x128xbf16, #tpu.memory_space<vmem>>, vector<1x32x128xbf16>
    %85 = vector.shape_cast %84 : vector<1x32x128xbf16> to vector<32x128xbf16>
    %86 = arith.truncf %83 : vector<8x32xf32> to vector<8x32xbf16>
    %cst_32 = arith.constant dense<0.000000e+00> : vector<8x128xf32>
    %87 = tpu.matmul %86, %85, %cst_32 {dimension_numbers = #tpu.dot_dimension_numbers<[1], [0], [0], [1], [0, 0, 1, 1], [], []>} : vector<8x32xbf16>, vector<32x128xbf16>, vector<8x128xf32> -> vector<8x128xf32>
    %88 = arith.addf %62, %87 : vector<8x128xf32>
    %89 = vector.extract_strided_slice %11 {offsets = [0, 96], sizes = [8, 32], strides = [1, 1]} : vector<8x384xf32> to vector<8x32xf32>
    %90 = arith.truncf %89 : vector<8x32xf32> to vector<8x32xbf16>
    %91 = vector.extract_strided_slice %11 {offsets = [0, 224], sizes = [8, 32], strides = [1, 1]} : vector<8x384xf32> to vector<8x32xf32>
    %92 = arith.truncf %91 : vector<8x32xf32> to vector<8x32xbf16>
    %93 = vector.extract_strided_slice %11 {offsets = [0, 352], sizes = [8, 32], strides = [1, 1]} : vector<8x384xf32> to vector<8x32xf32>
    %94 = arith.truncf %93 : vector<8x32xf32> to vector<8x32xbf16>
    %cst_33 = arith.constant dense<0.000000e+00> : vector<8x8xf32>
    %95 = tpu.matmul %90, %92, %cst_33 {dimension_numbers = #tpu.dot_dimension_numbers<[1], [1], [0], [0], [0, 0, 1, 0], [], []>} : vector<8x32xbf16>, vector<8x32xbf16>, vector<8x8xf32> -> vector<8x8xf32>
    %cst_34 = arith.constant 0.176776692 : f32
    %96 = vector.broadcast %cst_34 : f32 to vector<8x8xf32>
    %97 = arith.mulf %95, %96 : vector<8x8xf32>
    %cst_35 = arith.constant dense<0xFF800000> : vector<8xf32>
    %98 = vector.multi_reduction <maximumf>, %97, %cst_35 [1] : vector<8x8xf32> to vector<8xf32>
    %99 = vector.shape_cast %98 : vector<8xf32> to vector<8x1xf32>
    %100 = vector.broadcast %99 : vector<8x1xf32> to vector<8x8xf32>
    %101 = arith.subf %97, %100 : vector<8x8xf32>
    %102 = math.exp %101 : vector<8x8xf32>
    %cst_36 = arith.constant dense<0.000000e+00> : vector<8xf32>
    %103 = vector.multi_reduction <add>, %102, %cst_36 [1] : vector<8x8xf32> to vector<8xf32>
    %104 = vector.shape_cast %103 : vector<8xf32> to vector<8x1xf32>
    %105 = tpu.reciprocal %104 {approx = true} : vector<8x1xf32> -> vector<8x1xf32>
    %106 = vector.broadcast %105 : vector<8x1xf32> to vector<8x8xf32>
    %107 = arith.mulf %102, %106 : vector<8x8xf32>
    %108 = arith.truncf %107 : vector<8x8xf32> to vector<8x8xbf16>
    %cst_37 = arith.constant dense<0.000000e+00> : vector<8x32xf32>
    %109 = tpu.matmul %108, %94, %cst_37 {dimension_numbers = #tpu.dot_dimension_numbers<[1], [0], [0], [1], [0, 0, 1, 1], [], []>} : vector<8x8xbf16>, vector<8x32xbf16>, vector<8x32xf32> -> vector<8x32xf32>
    %c0_38 = arith.constant 0 : index
    %c96 = arith.constant 96 : index
    %c0_39 = arith.constant 0 : index
    %110 = vector.load %arg7[%c0_38, %c96, %c0_39] : memref<1x128x128xbf16, #tpu.memory_space<vmem>>, vector<1x32x128xbf16>
    %111 = vector.shape_cast %110 : vector<1x32x128xbf16> to vector<32x128xbf16>
    %112 = arith.truncf %109 : vector<8x32xf32> to vector<8x32xbf16>
    %cst_40 = arith.constant dense<0.000000e+00> : vector<8x128xf32>
    %113 = tpu.matmul %112, %111, %cst_40 {dimension_numbers = #tpu.dot_dimension_numbers<[1], [0], [0], [1], [0, 0, 1, 1], [], []>} : vector<8x32xbf16>, vector<32x128xbf16>, vector<8x128xf32> -> vector<8x128xf32>
    %114 = arith.addf %88, %113 : vector<8x128xf32>
    %c0_41 = arith.constant 0 : index
    %c0_42 = arith.constant 0 : index
    %c0_43 = arith.constant 0 : index
    %115 = vector.load %arg8[%c0_41, %c0_42, %c0_43] : memref<1x1x128xf32, #tpu.memory_space<vmem>>, vector<1x1x128xf32>
    %116 = vector.shape_cast %115 : vector<1x1x128xf32> to vector<1x128xf32>
    %117 = vector.broadcast %116 : vector<1x128xf32> to vector<8x128xf32>
    %118 = arith.addf %114, %117 : vector<8x128xf32>
    %119 = arith.addf %3, %118 : vector<8x128xf32>
    %c0_44 = arith.constant 0 : index
    %c0_45 = arith.constant 0 : index
    %c0_46 = arith.constant 0 : index
    %120 = vector.load %arg13[%c0_44, %c0_45, %c0_46] : memref<1x1x128xf32, #tpu.memory_space<vmem>>, vector<1x1x128xf32>
    %121 = vector.shape_cast %120 : vector<1x1x128xf32> to vector<1x128xf32>
    %c0_47 = arith.constant 0 : index
    %c0_48 = arith.constant 0 : index
    %c0_49 = arith.constant 0 : index
    %122 = vector.load %arg14[%c0_47, %c0_48, %c0_49] : memref<1x1x128xf32, #tpu.memory_space<vmem>>, vector<1x1x128xf32>
    %123 = vector.shape_cast %122 : vector<1x1x128xf32> to vector<1x128xf32>
    %cst_50 = arith.constant dense<0.000000e+00> : vector<8xf32>
    %124 = vector.multi_reduction <add>, %119, %cst_50 [1] : vector<8x128xf32> to vector<8xf32>
    %125 = vector.shape_cast %124 : vector<8xf32> to vector<8x1xf32>
    %cst_51 = arith.constant 1.280000e+02 : f32
    %126 = vector.broadcast %cst_51 : f32 to vector<8x1xf32>
    %127 = arith.divf %125, %126 : vector<8x1xf32>
    %128 = vector.broadcast %127 : vector<8x1xf32> to vector<8x128xf32>
    %129 = arith.subf %119, %128 : vector<8x128xf32>
    %130 = arith.mulf %129, %129 : vector<8x128xf32>
    %cst_52 = arith.constant dense<0.000000e+00> : vector<8xf32>
    %131 = vector.multi_reduction <add>, %130, %cst_52 [1] : vector<8x128xf32> to vector<8xf32>
    %132 = vector.shape_cast %131 : vector<8xf32> to vector<8x1xf32>
    %cst_53 = arith.constant 1.280000e+02 : f32
    %133 = vector.broadcast %cst_53 : f32 to vector<8x1xf32>
    %134 = arith.divf %132, %133 : vector<8x1xf32>
    %135 = vector.broadcast %127 : vector<8x1xf32> to vector<8x128xf32>
    %136 = arith.subf %119, %135 : vector<8x128xf32>
    %cst_54 = arith.constant 9.99999974E-6 : f32
    %137 = vector.broadcast %cst_54 : f32 to vector<8x1xf32>
    %138 = arith.addf %134, %137 : vector<8x1xf32>
    %139 = math.rsqrt %138 : vector<8x1xf32>
    %140 = vector.broadcast %139 : vector<8x1xf32> to vector<8x128xf32>
    %141 = arith.mulf %136, %140 : vector<8x128xf32>
    %142 = vector.broadcast %121 : vector<1x128xf32> to vector<8x128xf32>
    %143 = arith.mulf %141, %142 : vector<8x128xf32>
    %144 = vector.broadcast %123 : vector<1x128xf32> to vector<8x128xf32>
    %145 = arith.addf %143, %144 : vector<8x128xf32>
    %c0_55 = arith.constant 0 : index
    %c0_56 = arith.constant 0 : index
    %c0_57 = arith.constant 0 : index
    %146 = vector.load %arg9[%c0_55, %c0_56, %c0_57] : memref<1x128x2048xbf16, #tpu.memory_space<vmem>>, vector<1x128x2048xbf16>
    %147 = vector.shape_cast %146 : vector<1x128x2048xbf16> to vector<128x2048xbf16>
    %148 = arith.truncf %145 : vector<8x128xf32> to vector<8x128xbf16>
    %cst_58 = arith.constant dense<0.000000e+00> : vector<8x2048xf32>
    %149 = tpu.matmul %148, %147, %cst_58 {dimension_numbers = #tpu.dot_dimension_numbers<[1], [0], [0], [1], [0, 0, 1, 1], [], []>} : vector<8x128xbf16>, vector<128x2048xbf16>, vector<8x2048xf32> -> vector<8x2048xf32>
    %c0_59 = arith.constant 0 : index
    %c0_60 = arith.constant 0 : index
    %c0_61 = arith.constant 0 : index
    %150 = vector.load %arg10[%c0_59, %c0_60, %c0_61] : memref<1x1x2048xf32, #tpu.memory_space<vmem>>, vector<1x1x2048xf32>
    %151 = vector.shape_cast %150 : vector<1x1x2048xf32> to vector<1x2048xf32>
    %152 = vector.broadcast %151 : vector<1x2048xf32> to vector<8x2048xf32>
    %153 = arith.addf %149, %152 : vector<8x2048xf32>
    %cst_62 = arith.constant 0.000000e+00 : f32
    %154 = vector.broadcast %cst_62 : f32 to vector<8x2048xf32>
    %155 = arith.maximumf %153, %154 : vector<8x2048xf32>
    %c0_63 = arith.constant 0 : index
    %c0_64 = arith.constant 0 : index
    %c0_65 = arith.constant 0 : index
    %156 = vector.load %arg11[%c0_63, %c0_64, %c0_65] : memref<1x2048x128xbf16, #tpu.memory_space<vmem>>, vector<1x2048x128xbf16>
    %157 = vector.shape_cast %156 : vector<1x2048x128xbf16> to vector<2048x128xbf16>
    %158 = arith.truncf %155 : vector<8x2048xf32> to vector<8x2048xbf16>
    %cst_66 = arith.constant dense<0.000000e+00> : vector<8x128xf32>
    %159 = tpu.matmul %158, %157, %cst_66 {dimension_numbers = #tpu.dot_dimension_numbers<[1], [0], [0], [1], [0, 0, 1, 1], [], []>} : vector<8x2048xbf16>, vector<2048x128xbf16>, vector<8x128xf32> -> vector<8x128xf32>
    %c0_67 = arith.constant 0 : index
    %c0_68 = arith.constant 0 : index
    %c0_69 = arith.constant 0 : index
    %160 = vector.load %arg12[%c0_67, %c0_68, %c0_69] : memref<1x1x128xf32, #tpu.memory_space<vmem>>, vector<1x1x128xf32>
    %161 = vector.shape_cast %160 : vector<1x1x128xf32> to vector<1x128xf32>
    %162 = vector.broadcast %161 : vector<1x128xf32> to vector<8x128xf32>
    %163 = arith.addf %159, %162 : vector<8x128xf32>
    %164 = arith.addf %145, %163 : vector<8x128xf32>
    %c0_70 = arith.constant 0 : index
    %c0_71 = arith.constant 0 : index
    %c0_72 = arith.constant 0 : index
    %165 = vector.load %arg15[%c0_70, %c0_71, %c0_72] : memref<1x1x128xf32, #tpu.memory_space<vmem>>, vector<1x1x128xf32>
    %166 = vector.shape_cast %165 : vector<1x1x128xf32> to vector<1x128xf32>
    %c0_73 = arith.constant 0 : index
    %c0_74 = arith.constant 0 : index
    %c0_75 = arith.constant 0 : index
    %167 = vector.load %arg16[%c0_73, %c0_74, %c0_75] : memref<1x1x128xf32, #tpu.memory_space<vmem>>, vector<1x1x128xf32>
    %168 = vector.shape_cast %167 : vector<1x1x128xf32> to vector<1x128xf32>
    %cst_76 = arith.constant dense<0.000000e+00> : vector<8xf32>
    %169 = vector.multi_reduction <add>, %164, %cst_76 [1] : vector<8x128xf32> to vector<8xf32>
    %170 = vector.shape_cast %169 : vector<8xf32> to vector<8x1xf32>
    %cst_77 = arith.constant 1.280000e+02 : f32
    %171 = vector.broadcast %cst_77 : f32 to vector<8x1xf32>
    %172 = arith.divf %170, %171 : vector<8x1xf32>
    %173 = vector.broadcast %172 : vector<8x1xf32> to vector<8x128xf32>
    %174 = arith.subf %164, %173 : vector<8x128xf32>
    %175 = arith.mulf %174, %174 : vector<8x128xf32>
    %cst_78 = arith.constant dense<0.000000e+00> : vector<8xf32>
    %176 = vector.multi_reduction <add>, %175, %cst_78 [1] : vector<8x128xf32> to vector<8xf32>
    %177 = vector.shape_cast %176 : vector<8xf32> to vector<8x1xf32>
    %cst_79 = arith.constant 1.280000e+02 : f32
    %178 = vector.broadcast %cst_79 : f32 to vector<8x1xf32>
    %179 = arith.divf %177, %178 : vector<8x1xf32>
    %180 = vector.broadcast %172 : vector<8x1xf32> to vector<8x128xf32>
    %181 = arith.subf %164, %180 : vector<8x128xf32>
    %cst_80 = arith.constant 9.99999974E-6 : f32
    %182 = vector.broadcast %cst_80 : f32 to vector<8x1xf32>
    %183 = arith.addf %179, %182 : vector<8x1xf32>
    %184 = math.rsqrt %183 : vector<8x1xf32>
    %185 = vector.broadcast %184 : vector<8x1xf32> to vector<8x128xf32>
    %186 = arith.mulf %181, %185 : vector<8x128xf32>
    %187 = vector.broadcast %166 : vector<1x128xf32> to vector<8x128xf32>
    %188 = arith.mulf %186, %187 : vector<8x128xf32>
    %189 = vector.broadcast %168 : vector<1x128xf32> to vector<8x128xf32>
    %190 = arith.addf %188, %189 : vector<8x128xf32>
    %c0_81 = arith.constant 0 : index
    %c0_82 = arith.constant 0 : index
    %191 = vector.load %arg18[%c0_81, %c0_82] : memref<8x128xf32, #tpu.memory_space<vmem>>, vector<8x128xf32>
    tpu.vector_store %arg18[%c0_81, %c0_82], %190 {strides = array<i32>} : memref<8x128xf32, #tpu.memory_space<vmem>>, vector<8x128xf32>,
    %c1_i32 = arith.constant 1 : i32
    %192 = arith.cmpi eq, %arg1, %c1_i32 : i32
    %193 = arith.extui %192 : i1 to i32
    %c0_i32_83 = arith.constant 0 : i32
    %194 = arith.cmpi ne, %193, %c0_i32_83 : i32
    scf.if %194 {
      %195 = vector.extract_strided_slice %190 {offsets = [7, 0], sizes = [1, 128], strides = [1, 1]} : vector<8x128xf32> to vector<1x128xf32>
      %c0_84 = arith.constant 0 : index
      %c0_85 = arith.constant 0 : index
      %c0_86 = arith.constant 0 : index
      %196 = vector.load %arg17[%c0_84, %c0_85, %c0_86] : memref<1x1x128xf32, #tpu.memory_space<vmem>>, vector<1x1x128xf32>
      %197 = vector.shape_cast %196 : vector<1x1x128xf32> to vector<1x128xf32>
      %198 = vector.shape_cast %195 : vector<1x128xf32> to vector<1x1x128xf32>
      tpu.vector_store %arg17[%c0_84, %c0_85, %c0_86], %198 {strides = array<i32>} : memref<1x1x128xf32, #tpu.memory_space<vmem>>, vector<1x1x128xf32>,
    } else {
    }
    return
  }
  func.func @transform_0(%arg0: i32, %arg1: i32) -> (i32, i32, i32) {
    %c0_i32 = arith.constant 0 : i32
    %c0_i32_0 = arith.constant 0 : i32
    %c0_i32_1 = arith.constant 0 : i32
    return %arg0, %c0_i32, %c0_i32_0 : i32, i32, i32
  }
  func.func @transform_1(%arg0: i32, %arg1: i32) -> (i32, i32) {
    %c0_i32 = arith.constant 0 : i32
    %c0_i32_0 = arith.constant 0 : i32
    %c0_i32_1 = arith.constant 0 : i32
    return %c0_i32, %c0_i32_0 : i32, i32
  }
  func.func @transform_2(%arg0: i32, %arg1: i32) -> (i32, i32) {
    %c0_i32 = arith.constant 0 : i32
    %c0_i32_0 = arith.constant 0 : i32
    %c0_i32_1 = arith.constant 0 : i32
    return %c0_i32, %c0_i32_0 : i32, i32
  }
  func.func @transform_3(%arg0: i32, %arg1: i32) -> (i32, i32, i32) {
    %c0_i32 = arith.constant 0 : i32
    %c0_i32_0 = arith.constant 0 : i32
    %c0_i32_1 = arith.constant 0 : i32
    return %arg1, %c0_i32, %c0_i32_0 : i32, i32, i32
  }
  func.func @transform_4(%arg0: i32, %arg1: i32) -> (i32, i32, i32) {
    %c0_i32 = arith.constant 0 : i32
    %c0_i32_0 = arith.constant 0 : i32
    %c0_i32_1 = arith.constant 0 : i32
    return %arg1, %c0_i32, %c0_i32_0 : i32, i32, i32
  }
  func.func @transform_5(%arg0: i32, %arg1: i32) -> (i32, i32, i32) {
    %c0_i32 = arith.constant 0 : i32
    %c0_i32_0 = arith.constant 0 : i32
    %c0_i32_1 = arith.constant 0 : i32
    return %arg1, %c0_i32, %c0_i32_0 : i32, i32, i32
  }
  func.func @transform_6(%arg0: i32, %arg1: i32) -> (i32, i32, i32) {
    %c0_i32 = arith.constant 0 : i32
    %c0_i32_0 = arith.constant 0 : i32
    %c0_i32_1 = arith.constant 0 : i32
    return %arg1, %c0_i32, %c0_i32_0 : i32, i32, i32
  }
  func.func @transform_7(%arg0: i32, %arg1: i32) -> (i32, i32, i32) {
    %c0_i32 = arith.constant 0 : i32
    %c0_i32_0 = arith.constant 0 : i32
    %c0_i32_1 = arith.constant 0 : i32
    return %arg1, %c0_i32, %c0_i32_0 : i32, i32, i32
  }
  func.func @transform_8(%arg0: i32, %arg1: i32) -> (i32, i32, i32) {
    %c0_i32 = arith.constant 0 : i32
    %c0_i32_0 = arith.constant 0 : i32
    %c0_i32_1 = arith.constant 0 : i32
    return %arg1, %c0_i32, %c0_i32_0 : i32, i32, i32
  }
  func.func @transform_9(%arg0: i32, %arg1: i32) -> (i32, i32, i32) {
    %c0_i32 = arith.constant 0 : i32
    %c0_i32_0 = arith.constant 0 : i32
    %c0_i32_1 = arith.constant 0 : i32
    return %arg1, %c0_i32, %c0_i32_0 : i32, i32, i32
  }
  func.func @transform_10(%arg0: i32, %arg1: i32) -> (i32, i32, i32) {
    %c0_i32 = arith.constant 0 : i32
    %c0_i32_0 = arith.constant 0 : i32
    %c0_i32_1 = arith.constant 0 : i32
    return %arg1, %c0_i32, %c0_i32_0 : i32, i32, i32
  }
  func.func @transform_11(%arg0: i32, %arg1: i32) -> (i32, i32, i32) {
    %c0_i32 = arith.constant 0 : i32
    %c0_i32_0 = arith.constant 0 : i32
    %c0_i32_1 = arith.constant 0 : i32
    return %arg1, %c0_i32, %c0_i32_0 : i32, i32, i32
  }
  func.func @transform_12(%arg0: i32, %arg1: i32) -> (i32, i32, i32) {
    %c0_i32 = arith.constant 0 : i32
    %c0_i32_0 = arith.constant 0 : i32
    %c0_i32_1 = arith.constant 0 : i32
    return %arg1, %c0_i32, %c0_i32_0 : i32, i32, i32
  }
  func.func @transform_13(%arg0: i32, %arg1: i32) -> (i32, i32, i32) {
    %c0_i32 = arith.constant 0 : i32
    %c0_i32_0 = arith.constant 0 : i32
    %c0_i32_1 = arith.constant 0 : i32
    return %arg1, %c0_i32, %c0_i32_0 : i32, i32, i32
  }
  func.func @transform_14(%arg0: i32, %arg1: i32) -> (i32, i32, i32) {
    %c0_i32 = arith.constant 0 : i32
    %c0_i32_0 = arith.constant 0 : i32
    %c0_i32_1 = arith.constant 0 : i32
    return %arg1, %c0_i32, %c0_i32_0 : i32, i32, i32
  }
  func.func @transform_15(%arg0: i32, %arg1: i32) -> (i32, i32, i32) {
    %c0_i32 = arith.constant 0 : i32
    %c0_i32_0 = arith.constant 0 : i32
    %c0_i32_1 = arith.constant 0 : i32
    return %arg0, %c0_i32, %c0_i32_0 : i32, i32, i32
  }
}

module attributes {stable_mosaic.version = 11 : i64} {
  func.func @_latent_decoder_kernel(%arg0: memref<2x128xf32, #tpu.memory_space<vmem>>, %arg1: memref<128x128xbf16, #tpu.memory_space<vmem>>, %arg2: memref<1x128xf32, #tpu.memory_space<vmem>>, %arg3: memref<2x32xf32, #tpu.memory_space<vmem>>, %arg4: memref<2x32xf32, #tpu.memory_space<vmem>>, %arg5: memref<2x1xf32, #tpu.memory_space<vmem>>, %arg6: memref<1xf32, #tpu.memory_space<smem>>, %arg7: memref<32x128xbf16, #tpu.memory_space<vmem>>, %arg8: memref<1x128xf32, #tpu.memory_space<vmem>>, %arg9: memref<128x500xbf16, #tpu.memory_space<vmem>>, %arg10: memref<1x500xf32, #tpu.memory_space<vmem>>, %arg11: memref<500x8xbf16, #tpu.memory_space<vmem>>, %arg12: memref<1x8xf32, #tpu.memory_space<vmem>>, %arg13: memref<8x8xbf16, #tpu.memory_space<vmem>>, %arg14: memref<1x8xf32, #tpu.memory_space<vmem>>, %arg15: memref<2x8xf32, #tpu.memory_space<vmem>>, %arg16: memref<2x128xf32, #tpu.memory_space<vmem>>) attributes {dimension_semantics = [], scalar_prefetch = 0 : i64, scratch_operands = 0 : i64, tpu.core_type = #tpu.core_type<tc>} {
    %c0 = arith.constant 0 : index
    %c0_0 = arith.constant 0 : index
    %0 = vector.load %arg0[%c0, %c0_0] : memref<2x128xf32, #tpu.memory_space<vmem>>, vector<2x128xf32>
    %c0_1 = arith.constant 0 : index
    %c0_2 = arith.constant 0 : index
    %1 = vector.load %arg1[%c0_1, %c0_2] : memref<128x128xbf16, #tpu.memory_space<vmem>>, vector<128x128xbf16>
    %2 = arith.truncf %0 : vector<2x128xf32> to vector<2x128xbf16>
    %cst = arith.constant dense<0.000000e+00> : vector<2x128xf32>
    %3 = tpu.matmul %2, %1, %cst {dimension_numbers = #tpu.dot_dimension_numbers<[1], [0], [0], [1], [0, 0, 1, 1], [], []>} : vector<2x128xbf16>, vector<128x128xbf16>, vector<2x128xf32> -> vector<2x128xf32>
    %c0_3 = arith.constant 0 : index
    %c0_4 = arith.constant 0 : index
    %4 = vector.load %arg2[%c0_3, %c0_4] : memref<1x128xf32, #tpu.memory_space<vmem>>, vector<1x128xf32>
    %5 = vector.broadcast %4 : vector<1x128xf32> to vector<2x128xf32>
    %6 = arith.addf %3, %5 : vector<2x128xf32>
    %7 = vector.extract_strided_slice %6 {offsets = [0, 0], sizes = [2, 32], strides = [1, 1]} : vector<2x128xf32> to vector<2x32xf32>
    %8 = vector.extract_strided_slice %6 {offsets = [0, 32], sizes = [2, 32], strides = [1, 1]} : vector<2x128xf32> to vector<2x32xf32>
    %9 = vector.extract_strided_slice %6 {offsets = [0, 64], sizes = [2, 32], strides = [1, 1]} : vector<2x128xf32> to vector<2x32xf32>
    %10 = math.exp %9 : vector<2x32xf32>
    %11 = vector.extract_strided_slice %6 {offsets = [0, 96], sizes = [2, 32], strides = [1, 1]} : vector<2x128xf32> to vector<2x32xf32>
    %c0_5 = arith.constant 0 : index
    %c0_6 = arith.constant 0 : index
    %12 = vector.load %arg3[%c0_5, %c0_6] : memref<2x32xf32, #tpu.memory_space<vmem>>, vector<2x32xf32>
    %cst_7 = arith.constant 5.000000e-01 : f32
    %13 = vector.broadcast %cst_7 : f32 to vector<2x32xf32>
    %14 = arith.mulf %13, %8 : vector<2x32xf32>
    %15 = math.exp %14 : vector<2x32xf32>
    %16 = arith.mulf %12, %15 : vector<2x32xf32>
    %17 = arith.addf %7, %16 : vector<2x32xf32>
    %18 = arith.divf %10, %11 : vector<2x32xf32>
    %cst_8 = arith.constant 0.000000e+00 : f32
    %19 = vector.broadcast %cst_8 : f32 to vector<2x32xf32>
    %20 = arith.subf %19, %11 : vector<2x32xf32>
    %c0_9 = arith.constant 0 : index
    %c0_10 = arith.constant 0 : index
    %21 = vector.load %arg4[%c0_9, %c0_10] : memref<2x32xf32, #tpu.memory_space<vmem>>, vector<2x32xf32>
    %cst_11 = arith.constant 1.000000e+00 : f32
    %22 = vector.broadcast %cst_11 : f32 to vector<2x32xf32>
    %23 = arith.subf %22, %21 : vector<2x32xf32>
    %24 = math.log %23 : vector<2x32xf32>
    %25 = arith.mulf %20, %24 : vector<2x32xf32>
    %26 = math.exp %25 : vector<2x32xf32>
    %cst_12 = arith.constant 1.000000e+00 : f32
    %27 = vector.broadcast %cst_12 : f32 to vector<2x32xf32>
    %28 = arith.subf %26, %27 : vector<2x32xf32>
    %29 = arith.mulf %18, %28 : vector<2x32xf32>
    %c0_13 = arith.constant 0 : index
    %c0_14 = arith.constant 0 : index
    %30 = vector.load %arg5[%c0_13, %c0_14] : memref<2x1xf32, #tpu.memory_space<vmem>>, vector<2x1xf32>
    %c0_15 = arith.constant 0 : index
    %31 = memref.load %arg6[%c0_15] : memref<1xf32, #tpu.memory_space<smem>>
    %32 = vector.broadcast %31 : f32 to vector<2x1xf32>
    %33 = arith.cmpf olt, %30, %32 : vector<2x1xf32>
    %34 = vector.shape_cast %33 : vector<2x1xi1> to vector<2x1xi1>
    %35 = vector.broadcast %34 : vector<2x1xi1> to vector<2x32xi1>
    %36 = arith.select %35, %17, %29 : vector<2x32xi1>, vector<2x32xf32>
    %c0_16 = arith.constant 0 : index
    %c0_17 = arith.constant 0 : index
    %37 = vector.load %arg7[%c0_16, %c0_17] : memref<32x128xbf16, #tpu.memory_space<vmem>>, vector<32x128xbf16>
    %38 = arith.truncf %36 : vector<2x32xf32> to vector<2x32xbf16>
    %cst_18 = arith.constant dense<0.000000e+00> : vector<2x128xf32>
    %39 = tpu.matmul %38, %37, %cst_18 {dimension_numbers = #tpu.dot_dimension_numbers<[1], [0], [0], [1], [0, 0, 1, 1], [], []>} : vector<2x32xbf16>, vector<32x128xbf16>, vector<2x128xf32> -> vector<2x128xf32>
    %c0_19 = arith.constant 0 : index
    %c0_20 = arith.constant 0 : index
    %40 = vector.load %arg8[%c0_19, %c0_20] : memref<1x128xf32, #tpu.memory_space<vmem>>, vector<1x128xf32>
    %41 = vector.broadcast %40 : vector<1x128xf32> to vector<2x128xf32>
    %42 = arith.addf %39, %41 : vector<2x128xf32>
    %cst_21 = arith.constant 0.000000e+00 : f32
    %43 = vector.broadcast %cst_21 : f32 to vector<2x128xf32>
    %44 = arith.maximumf %42, %43 : vector<2x128xf32>
    %c0_22 = arith.constant 0 : index
    %c0_23 = arith.constant 0 : index
    %45 = vector.load %arg9[%c0_22, %c0_23] : memref<128x500xbf16, #tpu.memory_space<vmem>>, vector<128x500xbf16>
    %46 = arith.truncf %44 : vector<2x128xf32> to vector<2x128xbf16>
    %cst_24 = arith.constant dense<0.000000e+00> : vector<2x500xf32>
    %47 = tpu.matmul %46, %45, %cst_24 {dimension_numbers = #tpu.dot_dimension_numbers<[1], [0], [0], [1], [0, 0, 1, 1], [], []>} : vector<2x128xbf16>, vector<128x500xbf16>, vector<2x500xf32> -> vector<2x500xf32>
    %c0_25 = arith.constant 0 : index
    %c0_26 = arith.constant 0 : index
    %48 = vector.load %arg10[%c0_25, %c0_26] : memref<1x500xf32, #tpu.memory_space<vmem>>, vector<1x500xf32>
    %49 = vector.broadcast %48 : vector<1x500xf32> to vector<2x500xf32>
    %50 = arith.addf %47, %49 : vector<2x500xf32>
    %cst_27 = arith.constant 0.000000e+00 : f32
    %51 = vector.broadcast %cst_27 : f32 to vector<2x500xf32>
    %52 = arith.maximumf %50, %51 : vector<2x500xf32>
    %c0_28 = arith.constant 0 : index
    %c0_29 = arith.constant 0 : index
    %53 = vector.load %arg11[%c0_28, %c0_29] : memref<500x8xbf16, #tpu.memory_space<vmem>>, vector<500x8xbf16>
    %54 = arith.truncf %52 : vector<2x500xf32> to vector<2x500xbf16>
    %cst_30 = arith.constant dense<0.000000e+00> : vector<2x8xf32>
    %55 = tpu.matmul %54, %53, %cst_30 {dimension_numbers = #tpu.dot_dimension_numbers<[1], [0], [0], [1], [0, 0, 1, 1], [], []>} : vector<2x500xbf16>, vector<500x8xbf16>, vector<2x8xf32> -> vector<2x8xf32>
    %c0_31 = arith.constant 0 : index
    %c0_32 = arith.constant 0 : index
    %56 = vector.load %arg12[%c0_31, %c0_32] : memref<1x8xf32, #tpu.memory_space<vmem>>, vector<1x8xf32>
    %57 = vector.broadcast %56 : vector<1x8xf32> to vector<2x8xf32>
    %58 = arith.addf %55, %57 : vector<2x8xf32>
    %c0_33 = arith.constant 0 : index
    %c0_34 = arith.constant 0 : index
    %59 = vector.load %arg13[%c0_33, %c0_34] : memref<8x8xbf16, #tpu.memory_space<vmem>>, vector<8x8xbf16>
    %60 = arith.truncf %58 : vector<2x8xf32> to vector<2x8xbf16>
    %cst_35 = arith.constant dense<0.000000e+00> : vector<2x8xf32>
    %61 = tpu.matmul %60, %59, %cst_35 {dimension_numbers = #tpu.dot_dimension_numbers<[1], [0], [0], [1], [0, 0, 1, 1], [], []>} : vector<2x8xbf16>, vector<8x8xbf16>, vector<2x8xf32> -> vector<2x8xf32>
    %c0_36 = arith.constant 0 : index
    %c0_37 = arith.constant 0 : index
    %62 = vector.load %arg14[%c0_36, %c0_37] : memref<1x8xf32, #tpu.memory_space<vmem>>, vector<1x8xf32>
    %63 = vector.broadcast %62 : vector<1x8xf32> to vector<2x8xf32>
    %64 = arith.addf %61, %63 : vector<2x8xf32>
    %c0_38 = arith.constant 0 : index
    %c0_39 = arith.constant 0 : index
    %65 = vector.load %arg15[%c0_38, %c0_39] : memref<2x8xf32, #tpu.memory_space<vmem>>, vector<2x8xf32>
    tpu.vector_store %arg15[%c0_38, %c0_39], %64 {strides = array<i32>} : memref<2x8xf32, #tpu.memory_space<vmem>>, vector<2x8xf32>,
    %66 = tpu.iota {dimensions = array<i32: 1>} : vector<2x128xi32>
    %c64_i32 = arith.constant 64 : i32
    %67 = vector.broadcast %c64_i32 : i32 to vector<2x128xi32>
    %68 = arith.cmpi sge, %66, %67 : vector<2x128xi32>
    %c96_i32 = arith.constant 96 : i32
    %69 = vector.broadcast %c96_i32 : i32 to vector<2x128xi32>
    %70 = arith.cmpi slt, %66, %69 : vector<2x128xi32>
    %71 = arith.andi %68, %70 : vector<2x128xi1>
    %72 = math.exp %6 : vector<2x128xf32>
    %73 = arith.select %71, %72, %6 : vector<2x128xi1>, vector<2x128xf32>
    %c0_40 = arith.constant 0 : index
    %c0_41 = arith.constant 0 : index
    %74 = vector.load %arg16[%c0_40, %c0_41] : memref<2x128xf32, #tpu.memory_space<vmem>>, vector<2x128xf32>
    tpu.vector_store %arg16[%c0_40, %c0_41], %73 {strides = array<i32>} : memref<2x128xf32, #tpu.memory_space<vmem>>, vector<2x128xf32>,
    return
  }
}

</mosaic_0001>

<llo_original>
// kernel: _vae_forward.5
$region0: #{_vae_forward.5}
  #allocation0 [shape = 'u32[]', space=smem, size = 0x4, offset = 0x4, fixed_abs, tag = 'smem constant byte address 0x4 - core index']
  #allocation1 [shape = 'u32[144,128]{1,0:T(1,128)}', space=vmem, size = 0x12000, scoped, tag = 'internal scratch']
  #allocation2 [shape = 'f32[1]{0:T(128)S(6)}', space=smem, size = 0x200, scoped, tag = 'scoped memory for _vae_forward.5']
  %s0 = inlined_call_operand.vmem [shape: f32[2,128], index: 0, kind: input, shape index: {}]
  %s1 = inlined_call_operand.vmem [shape: bf16[128,128], index: 1, kind: input, shape index: {}]
  %s2 = inlined_call_operand.vmem [shape: f32[1,128], index: 2, kind: input, shape index: {}]
  %s3 = inlined_call_operand.vmem [shape: f32[2,32], index: 3, kind: input, shape index: {}]
  %s4 = inlined_call_operand.vmem [shape: f32[2,32], index: 4, kind: input, shape index: {}]
  %s5 = inlined_call_operand.vmem [shape: f32[2,1], index: 5, kind: input, shape index: {}]
  %s6 = inlined_call_operand.<no memory space> [shape: f32[1], index: 6, kind: input, shape index: {}]
  %s7 = inlined_call_operand.vmem [shape: bf16[32,128], index: 7, kind: input, shape index: {}]
  %s8 = inlined_call_operand.vmem [shape: f32[1,128], index: 8, kind: input, shape index: {}]
  %s9 = inlined_call_operand.vmem [shape: bf16[128,500], index: 9, kind: input, shape index: {}]
  %s10 = inlined_call_operand.vmem [shape: f32[1,500], index: 10, kind: input, shape index: {}]
  %s11 = inlined_call_operand.vmem [shape: bf16[500,8], index: 11, kind: input, shape index: {}]
  %s12 = inlined_call_operand.vmem [shape: f32[1,8], index: 12, kind: input, shape index: {}]
  %s13 = inlined_call_operand.vmem [shape: bf16[8,8], index: 13, kind: input, shape index: {}]
  %s14 = inlined_call_operand.vmem [shape: f32[1,8], index: 14, kind: input, shape index: {}]
  %s15 = inlined_call_operand.hbm [shape: f32[2,8], index: 15, kind: output, shape index: {0}]
  %s16 = inlined_call_operand.vmem [shape: f32[2,128], index: 16, kind: output, shape index: {1}]
  %17 = xla_tuple %s15, %s16
  %s18 = sld [smem:[#allocation0]]
  $region78: #{_vae_forward.5} parent=0
    _
  %s20 = ssub.s32 1, %s18
  %s21 = scalar_select 0, %s20, %s18
  %22 = sst [smem:[#allocation2]] %s6
  $region1: #{_vae_forward.5} parent=0
    #allocation3 [shape = 'u8[1024]{0}', space=vmem, size = 0x400, scoped, tag = 'output window, operand 0, single buffered']
    #allocation4 [shape = 's32[1]{0}', space=sflag, size = 0x4, scoped, tag = 'scoped memory for _vae_forward.5']
    %23 = vsyncpa [#allocation4], 0
    // Predicated region
    $region2: #{_vae_forward.5} parent=1 // pred_check
      _
    $region3: #{_vae_forward.5} parent=1 // pred_check_branch
      %25 = sbr.rel (0) target = $region5
    $region4: #{_vae_forward.5} parent=1 // pred_region
      _
    $region5: #{_vae_forward.5} parent=1 // pred_fallthru
      _
    // Predicated region
    $region6: #{_vae_forward.5} parent=1 // pred_check
      _
    $region7: #{_vae_forward.5} parent=1 // pred_check_branch
      %27 = sbr.rel (0) target = $region9
    $region8: #{_vae_forward.5} parent=1 // pred_region
      _
    $region9: #{_vae_forward.5} parent=1 // pred_fallthru
      _
    // Predicated region
    $region10: #{_vae_forward.5} parent=1 // pred_check
      _
    $region11: #{_vae_forward.5} parent=1 // pred_check_branch
      %29 = sbr.rel (0) target = $region13
    $region12: #{_vae_forward.5} parent=1 // pred_region
      _
    $region13: #{_vae_forward.5} parent=1 // pred_fallthru
      _
    // Predicated region
    $region14: #{_vae_forward.5} parent=1 // pred_check
      _
    $region15: #{_vae_forward.5} parent=1 // pred_check_branch
      %31 = sbr.rel (0) target = $region17
    $region16: #{_vae_forward.5} parent=1 // pred_region
      _
    $region17: #{_vae_forward.5} parent=1 // pred_fallthru
      _
    // Predicated region
    $region18: #{_vae_forward.5} parent=1 // pred_check
      _
    $region19: #{_vae_forward.5} parent=1 // pred_check_branch
      %33 = sbr.rel (0) target = $region21
    $region20: #{_vae_forward.5} parent=1 // pred_region
      _
    $region21: #{_vae_forward.5} parent=1 // pred_fallthru
      _
    // Predicated region
    $region22: #{_vae_forward.5} parent=1 // pred_check
      _
    $region23: #{_vae_forward.5} parent=1 // pred_check_branch
      %35 = sbr.rel (0) target = $region25
    $region24: #{_vae_forward.5} parent=1 // pred_region
      _
    $region25: #{_vae_forward.5} parent=1 // pred_fallthru
      _
    // Predicated region
    $region26: #{_vae_forward.5} parent=1 // pred_check
      _
    $region27: #{_vae_forward.5} parent=1 // pred_check_branch
      %37 = sbr.rel (0) target = $region29
    $region28: #{_vae_forward.5} parent=1 // pred_region
      _
    $region29: #{_vae_forward.5} parent=1 // pred_fallthru
      _
    // Predicated region
    $region30: #{_vae_forward.5} parent=1 // pred_check
      _
    $region31: #{_vae_forward.5} parent=1 // pred_check_branch
      %39 = sbr.rel (0) target = $region33
    $region32: #{_vae_forward.5} parent=1 // pred_region
      _
    $region33: #{_vae_forward.5} parent=1 // pred_fallthru
      _
    // Predicated region
    $region34: #{_vae_forward.5} parent=1 // pred_check
      _
    $region35: #{_vae_forward.5} parent=1 // pred_check_branch
      %41 = sbr.rel (0) target = $region37
    $region36: #{_vae_forward.5} parent=1 // pred_region
      _
    $region37: #{_vae_forward.5} parent=1 // pred_fallthru
      _
    // Predicated region
    $region38: #{_vae_forward.5} parent=1 // pred_check
      _
    $region39: #{_vae_forward.5} parent=1 // pred_check_branch
      %43 = sbr.rel (0) target = $region41
    $region40: #{_vae_forward.5} parent=1 // pred_region
      _
    $region41: #{_vae_forward.5} parent=1 // pred_fallthru
      _
    // Predicated region
    $region42: #{_vae_forward.5} parent=1 // pred_check
      _
    $region43: #{_vae_forward.5} parent=1 // pred_check_branch
      %45 = sbr.rel (0) target = $region45
    $region44: #{_vae_forward.5} parent=1 // pred_region
      _
    $region45: #{_vae_forward.5} parent=1 // pred_fallthru
      _
    // Predicated region
    $region46: #{_vae_forward.5} parent=1 // pred_check
      _
    $region47: #{_vae_forward.5} parent=1 // pred_check_branch
      %47 = sbr.rel (0) target = $region49
    $region48: #{_vae_forward.5} parent=1 // pred_region
      _
    $region49: #{_vae_forward.5} parent=1 // pred_fallthru
      _
    // Predicated region
    $region50: #{_vae_forward.5} parent=1 // pred_check
      _
    $region51: #{_vae_forward.5} parent=1 // pred_check_branch
      %49 = sbr.rel (0) target = $region53
    $region52: #{_vae_forward.5} parent=1 // pred_region
      _
    $region53: #{_vae_forward.5} parent=1 // pred_fallthru
      _
    // Predicated region
    $region54: #{_vae_forward.5} parent=1 // pred_check
      _
    $region55: #{_vae_forward.5} parent=1 // pred_check_branch
      %51 = sbr.rel (0) target = $region57
    $region56: #{_vae_forward.5} parent=1 // pred_region
      _
    $region57: #{_vae_forward.5} parent=1 // pred_fallthru
      _
    // Predicated region
    $region58: #{_vae_forward.5} parent=1 // pred_check
      _
    $region59: #{_vae_forward.5} parent=1 // pred_check_branch
      %53 = sbr.rel (0) target = $region61
    $region60: #{_vae_forward.5} parent=1 // pred_region
      _
    $region61: #{_vae_forward.5} parent=1 // pred_fallthru
      _
    %v55 = vld [vmem:[%s0] sm:$0x3]
    %v56 = vld [vmem:[%s1] sm:$0xf]
    %v57 = vld [vmem:[%s1 + $0x4] sm:$0xf]
    %v58 = vld [vmem:[%s1 + $0x8] sm:$0xf]
    %v59 = vld [vmem:[%s1 + $0xc] sm:$0xf]
    %v60 = vld [vmem:[%s1 + $0x10] sm:$0xf]
    %v61 = vld [vmem:[%s1 + $0x14] sm:$0xf]
    %v62 = vld [vmem:[%s1 + $0x18] sm:$0xf]
    %v63 = vld [vmem:[%s1 + $0x1c] sm:$0xf]
    %v64 = vld [vmem:[%s1 + $0x20] sm:$0xf]
    %v65 = vld [vmem:[%s1 + $0x24] sm:$0xf]
    %v66 = vld [vmem:[%s1 + $0x28] sm:$0xf]
    %v67 = vld [vmem:[%s1 + $0x2c] sm:$0xf]
    %v68 = vld [vmem:[%s1 + $0x30] sm:$0xf]
    %v69 = vld [vmem:[%s1 + $0x34] sm:$0xf]
    %v70 = vld [vmem:[%s1 + $0x38] sm:$0xf]
    %v71 = vld [vmem:[%s1 + $0x3c] sm:$0xf]
    %v72 = vpack.c.bf16 %v55, %v55
    %v73 = vld [vmem:[%s2] sm:$0x1]
    %v75 = vlaneseq
    %v76 = vshrl.u32 %v75, 7
    %v77 = vsub.s32 0, %v76
    %v78 = vrot.slane %v73, %v77
    %v96 = vunpack.c.l.b16 %v56
    %v97 = vunpack.c.l.b16 %v57
    %v98 = vunpack.c.l.b16 %v58
    %v99 = vunpack.c.l.b16 %v59
    %v100 = vunpack.c.l.b16 %v60
    %v101 = vunpack.c.l.b16 %v61
    %v102 = vunpack.c.l.b16 %v62
    %v103 = vunpack.c.l.b16 %v63
    %v104 = vunpack.c.l.b16 %v64
    %v105 = vunpack.c.l.b16 %v65
    %v106 = vunpack.c.l.b16 %v66
    %v107 = vunpack.c.l.b16 %v67
    %v108 = vunpack.c.l.b16 %v68
    %v109 = vunpack.c.l.b16 %v69
    %v110 = vunpack.c.l.b16 %v70
    %v111 = vunpack.c.l.b16 %v71
    %v112 = vpack.c.b16 %v97, %v96
    %v113 = vpack.c.b16 %v99, %v98
    %v114 = vpack.c.b16 %v101, %v100
    %v115 = vpack.c.b16 %v103, %v102
    %v116 = vpack.c.b16 %v105, %v104
    %v117 = vpack.c.b16 %v107, %v106
    %v118 = vpack.c.b16 %v109, %v108
    %v119 = vpack.c.b16 %v111, %v110
    %128 = vmatprep.subr.bf16.mxu0 0
    %129 = vmatpush1.bf16.msra.mxu0 %v112
    %130 = vmatprep.subr.bf16.mxu0 0
    %131 = vmatpush1.bf16.msra.mxu0 %v113
    %132 = vmatprep.subr.bf16.mxu0 0
    %133 = vmatpush1.bf16.msra.mxu0 %v114
    %134 = vmatprep.subr.bf16.mxu0 0
    %135 = vmatpush1.bf16.msra.mxu0 %v115
    %136 = vmatprep.subr.bf16.mxu0 0
    %137 = vmatpush1.bf16.msra.mxu0 %v116
    %138 = vmatprep.subr.bf16.mxu0 0
    %139 = vmatpush1.bf16.msra.mxu0 %v117
    %140 = vmatprep.subr.bf16.mxu0 0
    %141 = vmatpush1.bf16.msra.mxu0 %v118
    %142 = vmatprep.subr.bf16.mxu0 0
    %143 = vmatpush1.bf16.msra.mxu0 %v119
    %144 = vmatprep.subr.bf16.mxu0 0
    %145 = vmatpush1.bf16.msra.mxu0 0
    %146 = vmatprep.subr.bf16.mxu0 0
    %147 = vmatpush1.bf16.msra.mxu0 0
    %148 = vmatprep.subr.bf16.mxu0 0
    %149 = vmatpush1.bf16.msra.mxu0 0
    %150 = vmatprep.subr.bf16.mxu0 0
    %151 = vmatpush1.bf16.msra.mxu0 0
    %152 = vmatprep.subr.bf16.mxu0 0
    %153 = vmatpush1.bf16.msra.mxu0 0
    %154 = vmatprep.subr.bf16.mxu0 0
    %155 = vmatpush1.bf16.msra.mxu0 0
    %156 = vmatprep.subr.bf16.mxu0 0
    %157 = vmatpush1.bf16.msra.mxu0 0
    %158 = vmatprep.subr.bf16.mxu0 0
    %159 = vmatpush1.bf16.msra.mxu0 0
    %160 = vmatprep.mubr.bf16.mxu0 0
    %161 = vmatmul.mubr.bf16.gmra.mrb[0].mxu0 %v72
    %v162 = vpop.f32.mrb[0].mxu0
    %v163 = vadd.f32 %v78, %v162
    %v164 = vpop.f32.mrb[0].mxu0
    %v165 = vpop.f32.mrb[0].mxu0
    %v166 = vpop.f32.mrb[0].mxu0
    %167 = vdwg.mxu0
    %v168 = vmul.f32 %v163, 1.442695
    %v169 = vpow.pop %v168
    %v170 = vld [vmem:[%s3] sm:$0x3]
    %v171 = vmul.f32 %v163, 0.5
    %v172 = vmul.f32 %v171, 1.442695
    %v173 = vpow.pop %v172
    %175 = vrot.lane.b32.xlu0 %v173, 96
    %v176 = vpop.permute.xlu0 %175
    %v178 = vmul.f32 %v170, %v176
    %v179 = vadd.f32 %v163, %v178
    %181 = vrot.lane.b32.xlu0 %v163, 96
    %v182 = vpop.permute.xlu0 %181
    %v184 = vrcp.pop %v182
    %v185 = vmul.f32 %v169, %v184
    %v186 = vsub.f32 0.0, %v163
    %v187 = vld [vmem:[%s4] sm:$0x3]
    %v188 = vsub.f32 1.0, %v187
    %v189 = vlog2.pop %v188
    %v190 = vmul.f32 %v189, 0.6931472
    %192 = vrot.lane.b32.xlu0 %v190, 96
    %v193 = vpop.permute.xlu0 %192
    %v195 = vmul.f32 %v186, %v193
    %v196 = vmul.f32 %v195, 1.442695
    %v197 = vpow.pop %v196
    %v198 = vsub.f32 %v197, 1.0
    %200 = vrot.lane.b32.xlu0 %v198, 96
    %v201 = vpop.permute.xlu0 %200
    %v203 = vmul.f32 %v185, %v201
    %v204 = vld [vmem:[%s5] sm:$0x3]
    %s205 = sld [smem:[#allocation2]]
    %v206 = vstv %s205
    %vm207 = vcmp.lt.f32.partialorder %v204, %v206
    %v208 = vsel %vm207, 1, 0
    %209 = vset.pattern.permute.xlu0 0
    %210 = vperm.xlu0 %209, %v208
    %v211 = vpop.permute.xlu0 %210
    %vm212 = vcmp.eq.s32.totalorder %v211, 1
    %214 = vrot.lane.b32.xlu0 %v203, 64
    %v215 = vpop.permute.xlu0 %214
    %v217 = vsel %vm212, %v179, %v215
    %v218 = vld [vmem:[%s7] sm:$0xf]
    %v219 = vld [vmem:[%s7 + $0x4] sm:$0xf]
    %v220 = vld [vmem:[%s7 + $0x8] sm:$0xf]
    %v221 = vld [vmem:[%s7 + $0xc] sm:$0xf]
    %v222 = vpack.c.bf16 %v217, %v217
    %v223 = vld [vmem:[%s8] sm:$0x1]
    %v225 = vlaneseq
    %v226 = vshrl.u32 %v225, 7
    %v227 = vsub.s32 0, %v226
    %v228 = vrot.slane %v223, %v227
    %v234 = vunpack.c.l.b16 %v218
    %v235 = vunpack.c.l.b16 %v219
    %v236 = vunpack.c.l.b16 %v220
    %v237 = vunpack.c.l.b16 %v221
    %v238 = vpack.c.b16 %v235, %v234
    %v239 = vpack.c.b16 %v237, %v236
    %vm242 = vcmask 261120
    %v244 = vsel %vm242, %v222, 0
    %246 = vmatprep.subr.bf16.mxu0 0
    %247 = vmatpush1.bf16.msra.mxu0 %v238
    %248 = vmatprep.subr.bf16.mxu0 0
    %249 = vmatpush1.bf16.msra.mxu0 %v239
    %250 = vmatprep.subr.bf16.mxu0 0
    %251 = vmatpush1.bf16.msra.mxu0 0
    %252 = vmatprep.subr.bf16.mxu0 0
    %253 = vmatpush1.bf16.msra.mxu0 0
    %254 = vmatprep.subr.bf16.mxu0 0
    %255 = vmatpush1.bf16.msra.mxu0 0
    %256 = vmatprep.subr.bf16.mxu0 0
    %257 = vmatpush1.bf16.msra.mxu0 0
    %258 = vmatprep.subr.bf16.mxu0 0
    %259 = vmatpush1.bf16.msra.mxu0 0
    %260 = vmatprep.subr.bf16.mxu0 0
    %261 = vmatpush1.bf16.msra.mxu0 0
    %262 = vmatprep.subr.bf16.mxu0 0
    %263 = vmatpush1.bf16.msra.mxu0 0
    %264 = vmatprep.subr.bf16.mxu0 0
    %265 = vmatpush1.bf16.msra.mxu0 0
    %266 = vmatprep.subr.bf16.mxu0 0
    %267 = vmatpush1.bf16.msra.mxu0 0
    %268 = vmatprep.subr.bf16.mxu0 0
    %269 = vmatpush1.bf16.msra.mxu0 0
    %270 = vmatprep.subr.bf16.mxu0 0
    %271 = vmatpush1.bf16.msra.mxu0 0
    %272 = vmatprep.subr.bf16.mxu0 0
    %273 = vmatpush1.bf16.msra.mxu0 0
    %274 = vmatprep.subr.bf16.mxu0 0
    %275 = vmatpush1.bf16.msra.mxu0 0
    %276 = vmatprep.subr.bf16.mxu0 0
    %277 = vmatpush1.bf16.msra.mxu0 0
    %278 = vmatprep.mubr.bf16.mxu0 0
    %279 = vmatmul.mubr.bf16.gmra.mrb[0].mxu0 %v244
    %v280 = vpop.f32.mrb[0].mxu0
    %v281 = vadd.f32 %v228, %v280
    %v282 = vpop.f32.mrb[0].mxu0
    %v283 = vpop.f32.mrb[0].mxu0
    %v284 = vpop.f32.mrb[0].mxu0
    %285 = vdwg.mxu0
    %v286 = vmax.f32 %v281, 0.0
    %v287 = vld [vmem:[%s9] sm:$0xff]
    %v288 = vld [vmem:[%s9 + $0x8] sm:$0xff]
    %v289 = vld [vmem:[%s9 + $0x10] sm:$0xff]
    %v290 = vld [vmem:[%s9 + $0x18] sm:$0xff]
    %v291 = vld [vmem:[%s9 + $0x20] sm:$0xff]
    %v292 = vld [vmem:[%s9 + $0x28] sm:$0xff]
    %v293 = vld [vmem:[%s9 + $0x30] sm:$0xff]
    %v294 = vld [vmem:[%s9 + $0x38] sm:$0xff]
    %v295 = vld [vmem:[%s9 + $0x40] sm:$0xff]
    %v296 = vld [vmem:[%s9 + $0x48] sm:$0xff]
    %v297 = vld [vmem:[%s9 + $0x50] sm:$0xff]
    %v298 = vld [vmem:[%s9 + $0x58] sm:$0xff]
    %v299 = vld [vmem:[%s9 + $0x60] sm:$0xff]
    %v300 = vld [vmem:[%s9 + $0x68] sm:$0xff]
    %v301 = vld [vmem:[%s9 + $0x70] sm:$0xff]
    %v302 = vld [vmem:[%s9 + $0x78] sm:$0xff]
    %v303 = vld [vmem:[%s9 + $0x80] sm:$0xff]
    %v304 = vld [vmem:[%s9 + $0x88] sm:$0xff]
    %v305 = vld [vmem:[%s9 + $0x90] sm:$0xff]
    %v306 = vld [vmem:[%s9 + $0x98] sm:$0xff]
    %v307 = vld [vmem:[%s9 + $0xa0] sm:$0xff]
    %v308 = vld [vmem:[%s9 + $0xa8] sm:$0xff]
    %v309 = vld [vmem:[%s9 + $0xb0] sm:$0xff]
    %v310 = vld [vmem:[%s9 + $0xb8] sm:$0xff]
    %v311 = vld [vmem:[%s9 + $0xc0] sm:$0xff]
    %v312 = vld [vmem:[%s9 + $0xc8] sm:$0xff]
    %v313 = vld [vmem:[%s9 + $0xd0] sm:$0xff]
    %v314 = vld [vmem:[%s9 + $0xd8] sm:$0xff]
    %v315 = vld [vmem:[%s9 + $0xe0] sm:$0xff]
    %v316 = vld [vmem:[%s9 + $0xe8] sm:$0xff]
    %v317 = vld [vmem:[%s9 + $0xf0] sm:$0xff]
    %v318 = vld [vmem:[%s9 + $0xf8] sm:$0xff]
    %v319 = vpack.c.bf16 %v286, %v286
    %v320 = vld [vmem:[%s10] sm:$0xf]
    %v322 = vlaneseq
    %v323 = vshrl.u32 %v322, 7
    %v324 = vsub.s32 0, %v323
    %v325 = vrot.slane %v320, %v324
    %v326 = vlaneseq
    %v327 = vshrl.u32 %v326, 7
    %v328 = vsub.s32 1, %v327
    %v329 = vrot.slane %v320, %v328
    %v330 = vlaneseq
    %v331 = vshrl.u32 %v330, 7
    %v332 = vsub.s32 2, %v331
    %v333 = vrot.slane %v320, %v332
    %v334 = vlaneseq
    %v335 = vshrl.u32 %v334, 7
    %v336 = vsub.s32 3, %v335
    %v337 = vrot.slane %v320, %v336
    %v374 = vunpack.c.l.b16 %v287
    %v375 = vunpack.c.h.b16 %v287
    %v376 = vunpack.c.l.b16 %v288
    %v377 = vunpack.c.h.b16 %v288
    %v378 = vunpack.c.l.b16 %v289
    %v379 = vunpack.c.h.b16 %v289
    %v380 = vunpack.c.l.b16 %v290
    %v381 = vunpack.c.h.b16 %v290
    %v382 = vunpack.c.l.b16 %v291
    %v383 = vunpack.c.h.b16 %v291
    %v384 = vunpack.c.l.b16 %v292
    %v385 = vunpack.c.h.b16 %v292
    %v386 = vunpack.c.l.b16 %v293
    %v387 = vunpack.c.h.b16 %v293
    %v388 = vunpack.c.l.b16 %v294
    %v389 = vunpack.c.h.b16 %v294
    %v390 = vunpack.c.l.b16 %v295
    %v391 = vunpack.c.h.b16 %v295
    %v392 = vunpack.c.l.b16 %v296
    %v393 = vunpack.c.h.b16 %v296
    %v394 = vunpack.c.l.b16 %v297
    %v395 = vunpack.c.h.b16 %v297
    %v396 = vunpack.c.l.b16 %v298
    %v397 = vunpack.c.h.b16 %v298
    %v398 = vunpack.c.l.b16 %v299
    %v399 = vunpack.c.h.b16 %v299
    %v400 = vunpack.c.l.b16 %v300
    %v401 = vunpack.c.h.b16 %v300
    %v402 = vunpack.c.l.b16 %v301
    %v403 = vunpack.c.h.b16 %v301
    %v404 = vunpack.c.l.b16 %v302
    %v405 = vunpack.c.h.b16 %v302
    %v406 = vunpack.c.l.b16 %v303
    %v407 = vunpack.c.h.b16 %v303
    %v408 = vunpack.c.l.b16 %v304
    %v409 = vunpack.c.h.b16 %v304
    %v410 = vunpack.c.l.b16 %v305
    %v411 = vunpack.c.h.b16 %v305
    %v412 = vunpack.c.l.b16 %v306
    %v413 = vunpack.c.h.b16 %v306
    %v414 = vunpack.c.l.b16 %v307
    %v415 = vunpack.c.h.b16 %v307
    %v416 = vunpack.c.l.b16 %v308
    %v417 = vunpack.c.h.b16 %v308
    %v418 = vunpack.c.l.b16 %v309
    %v419 = vunpack.c.h.b16 %v309
    %v420 = vunpack.c.l.b16 %v310
    %v421 = vunpack.c.h.b16 %v310
    %v422 = vunpack.c.l.b16 %v311
    %v423 = vunpack.c.h.b16 %v311
    %v424 = vunpack.c.l.b16 %v312
    %v425 = vunpack.c.h.b16 %v312
    %v426 = vunpack.c.l.b16 %v313
    %v427 = vunpack.c.h.b16 %v313
    %v428 = vunpack.c.l.b16 %v314
    %v429 = vunpack.c.h.b16 %v314
    %v430 = vunpack.c.l.b16 %v315
    %v431 = vunpack.c.h.b16 %v315
    %v432 = vunpack.c.l.b16 %v316
    %v433 = vunpack.c.h.b16 %v316
    %v434 = vunpack.c.l.b16 %v317
    %v435 = vunpack.c.h.b16 %v317
    %v436 = vunpack.c.l.b16 %v318
    %v437 = vunpack.c.h.b16 %v318
    %v438 = vpack.c.b16 %v378, %v374
    %v439 = vpack.c.b16 %v379, %v375
    %v440 = vpack.c.b16 %v380, %v376
    %v441 = vpack.c.b16 %v381, %v377
    %v442 = vpack.c.b16 %v386, %v382
    %v443 = vpack.c.b16 %v387, %v383
    %v444 = vpack.c.b16 %v388, %v384
    %v445 = vpack.c.b16 %v389, %v385
    %v446 = vpack.c.b16 %v394, %v390
    %v447 = vpack.c.b16 %v395, %v391
    %v448 = vpack.c.b16 %v396, %v392
    %v449 = vpack.c.b16 %v397, %v393
    %v450 = vpack.c.b16 %v402, %v398
    %v451 = vpack.c.b16 %v403, %v399
    %v452 = vpack.c.b16 %v404, %v400
    %v453 = vpack.c.b16 %v405, %v401
    %v454 = vpack.c.b16 %v410, %v406
    %v455 = vpack.c.b16 %v411, %v407
    %v456 = vpack.c.b16 %v412, %v408
    %v457 = vpack.c.b16 %v413, %v409
    %v458 = vpack.c.b16 %v418, %v414
    %v459 = vpack.c.b16 %v419, %v415
    %v460 = vpack.c.b16 %v420, %v416
    %v461 = vpack.c.b16 %v421, %v417
    %v462 = vpack.c.b16 %v426, %v422
    %v463 = vpack.c.b16 %v427, %v423
    %v464 = vpack.c.b16 %v428, %v424
    %v465 = vpack.c.b16 %v429, %v425
    %v466 = vpack.c.b16 %v434, %v430
    %v467 = vpack.c.b16 %v435, %v431
    %v468 = vpack.c.b16 %v436, %v432
    %v469 = vpack.c.b16 %v437, %v433
    %502 = vmatprep.subr.bf16.mxu0 %v439
    %503 = vmatpush1.bf16.msra.mxu0 %v438
    %504 = vmatprep.subr.bf16.mxu0 %v443
    %505 = vmatpush1.bf16.msra.mxu0 %v442
    %506 = vmatprep.subr.bf16.mxu0 %v447
    %507 = vmatpush1.bf16.msra.mxu0 %v446
    %508 = vmatprep.subr.bf16.mxu0 %v451
    %509 = vmatpush1.bf16.msra.mxu0 %v450
    %510 = vmatprep.subr.bf16.mxu0 %v455
    %511 = vmatpush1.bf16.msra.mxu0 %v454
    %512 = vmatprep.subr.bf16.mxu0 %v459
    %513 = vmatpush1.bf16.msra.mxu0 %v458
    %514 = vmatprep.subr.bf16.mxu0 %v463
    %515 = vmatpush1.bf16.msra.mxu0 %v462
    %516 = vmatprep.subr.bf16.mxu0 %v467
    %517 = vmatpush1.bf16.msra.mxu0 %v466
    %518 = vmatprep.subr.bf16.mxu0 0
    %519 = vmatpush1.bf16.msra.mxu0 0
    %520 = vmatprep.subr.bf16.mxu0 0
    %521 = vmatpush1.bf16.msra.mxu0 0
    %522 = vmatprep.subr.bf16.mxu0 0
    %523 = vmatpush1.bf16.msra.mxu0 0
    %524 = vmatprep.subr.bf16.mxu0 0
    %525 = vmatpush1.bf16.msra.mxu0 0
    %526 = vmatprep.subr.bf16.mxu0 0
    %527 = vmatpush1.bf16.msra.mxu0 0
    %528 = vmatprep.subr.bf16.mxu0 0
    %529 = vmatpush1.bf16.msra.mxu0 0
    %530 = vmatprep.subr.bf16.mxu0 0
    %531 = vmatpush1.bf16.msra.mxu0 0
    %532 = vmatprep.subr.bf16.mxu0 0
    %533 = vmatpush1.bf16.msra.mxu0 0
    %534 = vmatprep.mubr.bf16.mxu0 0
    %535 = vmatmul.mubr.bf16.gmra.mrb[0].mxu0 %v319
    %v536 = vpop.f32.mrb[0].mxu0
    %v537 = vadd.f32 %v325, %v536
    %v538 = vpop.f32.mrb[0].mxu0
    %v539 = vadd.f32 %v329, %v538
    %v540 = vpop.f32.mrb[0].mxu0
    %v541 = vpop.f32.mrb[0].mxu0
    %542 = vdwg.mxu0
    %543 = vmatprep.subr.bf16.mxu0 %v441
    %544 = vmatpush1.bf16.msra.mxu0 %v440
    %545 = vmatprep.subr.bf16.mxu0 %v445
    %546 = vmatpush1.bf16.msra.mxu0 %v444
    %547 = vmatprep.subr.bf16.mxu0 %v449
    %548 = vmatpush1.bf16.msra.mxu0 %v448
    %549 = vmatprep.subr.bf16.mxu0 %v453
    %550 = vmatpush1.bf16.msra.mxu0 %v452
    %551 = vmatprep.subr.bf16.mxu0 %v457
    %552 = vmatpush1.bf16.msra.mxu0 %v456
    %553 = vmatprep.subr.bf16.mxu0 %v461
    %554 = vmatpush1.bf16.msra.mxu0 %v460
    %555 = vmatprep.subr.bf16.mxu0 %v465
    %556 = vmatpush1.bf16.msra.mxu0 %v464
    %557 = vmatprep.subr.bf16.mxu0 %v469
    %558 = vmatpush1.bf16.msra.mxu0 %v468
    %559 = vmatprep.subr.bf16.mxu0 0
    %560 = vmatpush1.bf16.msra.mxu0 0
    %561 = vmatprep.subr.bf16.mxu0 0
    %562 = vmatpush1.bf16.msra.mxu0 0
    %563 = vmatprep.subr.bf16.mxu0 0
    %564 = vmatpush1.bf16.msra.mxu0 0
    %565 = vmatprep.subr.bf16.mxu0 0
    %566 = vmatpush1.bf16.msra.mxu0 0
    %567 = vmatprep.subr.bf16.mxu0 0
    %568 = vmatpush1.bf16.msra.mxu0 0
    %569 = vmatprep.subr.bf16.mxu0 0
    %570 = vmatpush1.bf16.msra.mxu0 0
    %571 = vmatprep.subr.bf16.mxu0 0
    %572 = vmatpush1.bf16.msra.mxu0 0
    %573 = vmatprep.subr.bf16.mxu0 0
    %574 = vmatpush1.bf16.msra.mxu0 0
    %575 = vmatprep.mubr.bf16.mxu0 0
    %576 = vmatmul.mubr.bf16.gmra.mrb[0].mxu0 %v319
    %v577 = vpop.f32.mrb[0].mxu0
    %v578 = vadd.f32 %v333, %v577
    %v579 = vpop.f32.mrb[0].mxu0
    %v580 = vadd.f32 %v337, %v579
    %v581 = vpop.f32.mrb[0].mxu0
    %v582 = vpop.f32.mrb[0].mxu0
    %583 = vdwg.mxu0
    %v584 = vmax.f32 %v537, 0.0
    %v585 = vmax.f32 %v539, 0.0
    %v586 = vmax.f32 %v578, 0.0
    %v587 = vmax.f32 %v580, 0.0
    %v588 = vld [vmem:[%s11] sm:$0xf]
    %v589 = vld [vmem:[%s11 + $0x4] sm:$0xf]
    %v590 = vld [vmem:[%s11 + $0x8] sm:$0xf]
    %v591 = vld [vmem:[%s11 + $0xc] sm:$0xf]
    %v592 = vld [vmem:[%s11 + $0x10] sm:$0xf]
    %v593 = vld [vmem:[%s11 + $0x14] sm:$0xf]
    %v594 = vld [vmem:[%s11 + $0x18] sm:$0xf]
    %v595 = vld [vmem:[%s11 + $0x1c] sm:$0xf]
    %v596 = vld [vmem:[%s11 + $0x20] sm:$0xf]
    %v597 = vld [vmem:[%s11 + $0x24] sm:$0xf]
    %v598 = vld [vmem:[%s11 + $0x28] sm:$0xf]
    %v599 = vld [vmem:[%s11 + $0x2c] sm:$0xf]
    %v600 = vld [vmem:[%s11 + $0x30] sm:$0xf]
    %v601 = vld [vmem:[%s11 + $0x34] sm:$0xf]
    %v602 = vld [vmem:[%s11 + $0x38] sm:$0xf]
    %v603 = vld [vmem:[%s11 + $0x3c] sm:$0xf]
    %v604 = vld [vmem:[%s11 + $0x40] sm:$0xf]
    %v605 = vld [vmem:[%s11 + $0x44] sm:$0xf]
    %v606 = vld [vmem:[%s11 + $0x48] sm:$0xf]
    %v607 = vld [vmem:[%s11 + $0x4c] sm:$0xf]
    %v608 = vld [vmem:[%s11 + $0x50] sm:$0xf]
    %v609 = vld [vmem:[%s11 + $0x54] sm:$0xf]
    %v610 = vld [vmem:[%s11 + $0x58] sm:$0xf]
    %v611 = vld [vmem:[%s11 + $0x5c] sm:$0xf]
    %v612 = vld [vmem:[%s11 + $0x60] sm:$0xf]
    %v613 = vld [vmem:[%s11 + $0x64] sm:$0xf]
    %v614 = vld [vmem:[%s11 + $0x68] sm:$0xf]
    %v615 = vld [vmem:[%s11 + $0x6c] sm:$0xf]
    %v616 = vld [vmem:[%s11 + $0x70] sm:$0xf]
    %v617 = vld [vmem:[%s11 + $0x74] sm:$0xf]
    %v618 = vld [vmem:[%s11 + $0x78] sm:$0xf]
    %v619 = vld [vmem:[%s11 + $0x7c] sm:$0xf]
    %v620 = vld [vmem:[%s11 + $0x80] sm:$0xf]
    %v621 = vld [vmem:[%s11 + $0x84] sm:$0xf]
    %v622 = vld [vmem:[%s11 + $0x88] sm:$0xf]
    %v623 = vld [vmem:[%s11 + $0x8c] sm:$0xf]
    %v624 = vld [vmem:[%s11 + $0x90] sm:$0xf]
    %v625 = vld [vmem:[%s11 + $0x94] sm:$0xf]
    %v626 = vld [vmem:[%s11 + $0x98] sm:$0xf]
    %v627 = vld [vmem:[%s11 + $0x9c] sm:$0xf]
    %v628 = vld [vmem:[%s11 + $0xa0] sm:$0xf]
    %v629 = vld [vmem:[%s11 + $0xa4] sm:$0xf]
    %v630 = vld [vmem:[%s11 + $0xa8] sm:$0xf]
    %v631 = vld [vmem:[%s11 + $0xac] sm:$0xf]
    %v632 = vld [vmem:[%s11 + $0xb0] sm:$0xf]
    %v633 = vld [vmem:[%s11 + $0xb4] sm:$0xf]
    %v634 = vld [vmem:[%s11 + $0xb8] sm:$0xf]
    %v635 = vld [vmem:[%s11 + $0xbc] sm:$0xf]
    %v636 = vld [vmem:[%s11 + $0xc0] sm:$0xf]
    %v637 = vld [vmem:[%s11 + $0xc4] sm:$0xf]
    %v638 = vld [vmem:[%s11 + $0xc8] sm:$0xf]
    %v639 = vld [vmem:[%s11 + $0xcc] sm:$0xf]
    %v640 = vld [vmem:[%s11 + $0xd0] sm:$0xf]
    %v641 = vld [vmem:[%s11 + $0xd4] sm:$0xf]
    %v642 = vld [vmem:[%s11 + $0xd8] sm:$0xf]
    %v643 = vld [vmem:[%s11 + $0xdc] sm:$0xf]
    %v644 = vld [vmem:[%s11 + $0xe0] sm:$0xf]
    %v645 = vld [vmem:[%s11 + $0xe4] sm:$0xf]
    %v646 = vld [vmem:[%s11 + $0xe8] sm:$0xf]
    %v647 = vld [vmem:[%s11 + $0xec] sm:$0xf]
    %v648 = vld [vmem:[%s11 + $0xf0] sm:$0xf]
    %v649 = vld [vmem:[%s11 + $0xf4] sm:$0xf]
    %v650 = vld [vmem:[%s11 + $0xf8] sm:$0x3]
    %v651 = vpack.c.bf16 %v584, %v584
    %v652 = vpack.c.bf16 %v585, %v585
    %v653 = vpack.c.bf16 %v586, %v586
    %v654 = vpack.c.bf16 %v587, %v587
    %v655 = vld [vmem:[%s12] sm:$0x1]
    %v657 = vlaneseq
    %v658 = vshrl.u32 %v657, 7
    %v659 = vsub.s32 0, %v658
    %v660 = vrot.slane %v655, %v659
    %v725 = vunpack.c.l.b16 %v588
    %v726 = vunpack.c.l.b16 %v589
    %v727 = vunpack.c.l.b16 %v590
    %v728 = vunpack.c.l.b16 %v591
    %v729 = vunpack.c.l.b16 %v592
    %v730 = vunpack.c.l.b16 %v593
    %v731 = vunpack.c.l.b16 %v594
    %v732 = vunpack.c.l.b16 %v595
    %v733 = vunpack.c.l.b16 %v596
    %v734 = vunpack.c.l.b16 %v597
    %v735 = vunpack.c.l.b16 %v598
    %v736 = vunpack.c.l.b16 %v599
    %v737 = vunpack.c.l.b16 %v600
    %v738 = vunpack.c.l.b16 %v601
    %v739 = vunpack.c.l.b16 %v602
    %v740 = vunpack.c.l.b16 %v603
    %v741 = vunpack.c.l.b16 %v604
    %v742 = vunpack.c.l.b16 %v605
    %v743 = vunpack.c.l.b16 %v606
    %v744 = vunpack.c.l.b16 %v607
    %v745 = vunpack.c.l.b16 %v608
    %v746 = vunpack.c.l.b16 %v609
    %v747 = vunpack.c.l.b16 %v610
    %v748 = vunpack.c.l.b16 %v611
    %v749 = vunpack.c.l.b16 %v612
    %v750 = vunpack.c.l.b16 %v613
    %v751 = vunpack.c.l.b16 %v614
    %v752 = vunpack.c.l.b16 %v615
    %v753 = vunpack.c.l.b16 %v616
    %v754 = vunpack.c.l.b16 %v617
    %v755 = vunpack.c.l.b16 %v618
    %v756 = vunpack.c.l.b16 %v619
    %v757 = vunpack.c.l.b16 %v620
    %v758 = vunpack.c.l.b16 %v621
    %v759 = vunpack.c.l.b16 %v622
    %v760 = vunpack.c.l.b16 %v623
    %v761 = vunpack.c.l.b16 %v624
    %v762 = vunpack.c.l.b16 %v625
    %v763 = vunpack.c.l.b16 %v626
    %v764 = vunpack.c.l.b16 %v627
    %v765 = vunpack.c.l.b16 %v628
    %v766 = vunpack.c.l.b16 %v629
    %v767 = vunpack.c.l.b16 %v630
    %v768 = vunpack.c.l.b16 %v631
    %v769 = vunpack.c.l.b16 %v632
    %v770 = vunpack.c.l.b16 %v633
    %v771 = vunpack.c.l.b16 %v634
    %v772 = vunpack.c.l.b16 %v635
    %v773 = vunpack.c.l.b16 %v636
    %v774 = vunpack.c.l.b16 %v637
    %v775 = vunpack.c.l.b16 %v638
    %v776 = vunpack.c.l.b16 %v639
    %v777 = vunpack.c.l.b16 %v640
    %v778 = vunpack.c.l.b16 %v641
    %v779 = vunpack.c.l.b16 %v642
    %v780 = vunpack.c.l.b16 %v643
    %v781 = vunpack.c.l.b16 %v644
    %v782 = vunpack.c.l.b16 %v645
    %v783 = vunpack.c.l.b16 %v646
    %v784 = vunpack.c.l.b16 %v647
    %v785 = vunpack.c.l.b16 %v648
    %v786 = vunpack.c.l.b16 %v649
    %v787 = vunpack.c.l.b16 %v650
    %v788 = vpack.c.b16 %v726, %v725
    %v789 = vpack.c.b16 %v728, %v727
    %v790 = vpack.c.b16 %v730, %v729
    %v791 = vpack.c.b16 %v732, %v731
    %v792 = vpack.c.b16 %v734, %v733
    %v793 = vpack.c.b16 %v736, %v735
    %v794 = vpack.c.b16 %v738, %v737
    %v795 = vpack.c.b16 %v740, %v739
    %v796 = vpack.c.b16 %v742, %v741
    %v797 = vpack.c.b16 %v744, %v743
    %v798 = vpack.c.b16 %v746, %v745
    %v799 = vpack.c.b16 %v748, %v747
    %v800 = vpack.c.b16 %v750, %v749
    %v801 = vpack.c.b16 %v752, %v751
    %v802 = vpack.c.b16 %v754, %v753
    %v803 = vpack.c.b16 %v756, %v755
    %v804 = vpack.c.b16 %v758, %v757
    %v805 = vpack.c.b16 %v760, %v759
    %v806 = vpack.c.b16 %v762, %v761
    %v807 = vpack.c.b16 %v764, %v763
    %v808 = vpack.c.b16 %v766, %v765
    %v809 = vpack.c.b16 %v768, %v767
    %v810 = vpack.c.b16 %v770, %v769
    %v811 = vpack.c.b16 %v772, %v771
    %v812 = vpack.c.b16 %v774, %v773
    %v813 = vpack.c.b16 %v776, %v775
    %v814 = vpack.c.b16 %v778, %v777
    %v815 = vpack.c.b16 %v780, %v779
    %v816 = vpack.c.b16 %v782, %v781
    %v817 = vpack.c.b16 %v784, %v783
    %v818 = vpack.c.b16 %v786, %v785
    %v819 = vpack.c.b16 %v787, %v787
    %vm851 = vcmask 949248
    %v853 = vsel %vm851, %v654, 0
    %vm855 = vcmask 1041408
    %v857 = vsel %vm855, %v819, 0
    %859 = vmatprep.subr.bf16.mxu0 0
    %860 = vmatpush1.bf16.msra.mxu0 %v788
    %861 = vmatprep.subr.bf16.mxu0 0
    %862 = vmatpush1.bf16.msra.mxu0 %v789
    %863 = vmatprep.subr.bf16.mxu0 0
    %864 = vmatpush1.bf16.msra.mxu0 %v790
    %865 = vmatprep.subr.bf16.mxu0 0
    %866 = vmatpush1.bf16.msra.mxu0 %v791
    %867 = vmatprep.subr.bf16.mxu0 0
    %868 = vmatpush1.bf16.msra.mxu0 %v792
    %869 = vmatprep.subr.bf16.mxu0 0
    %870 = vmatpush1.bf16.msra.mxu0 %v793
    %871 = vmatprep.subr.bf16.mxu0 0
    %872 = vmatpush1.bf16.msra.mxu0 %v794
    %873 = vmatprep.subr.bf16.mxu0 0
    %874 = vmatpush1.bf16.msra.mxu0 %v795
    %875 = vmatprep.subr.bf16.mxu0 0
    %876 = vmatpush1.bf16.msra.mxu0 %v796
    %877 = vmatprep.subr.bf16.mxu0 0
    %878 = vmatpush1.bf16.msra.mxu0 %v797
    %879 = vmatprep.subr.bf16.mxu0 0
    %880 = vmatpush1.bf16.msra.mxu0 %v798
    %881 = vmatprep.subr.bf16.mxu0 0
    %882 = vmatpush1.bf16.msra.mxu0 %v799
    %883 = vmatprep.subr.bf16.mxu0 0
    %884 = vmatpush1.bf16.msra.mxu0 %v800
    %885 = vmatprep.subr.bf16.mxu0 0
    %886 = vmatpush1.bf16.msra.mxu0 %v801
    %887 = vmatprep.subr.bf16.mxu0 0
    %888 = vmatpush1.bf16.msra.mxu0 %v802
    %889 = vmatprep.subr.bf16.mxu0 0
    %890 = vmatpush1.bf16.msra.mxu0 %v803
    %891 = vmatprep.mubr.bf16.mxu0 %v652
    %892 = vmatmul.mubr.bf16.gmra.mrb[0].mxu0 %v651
    %v893 = vpop.f32.mrb[0].mxu0
    %v894 = vadd.f32 %v660, %v893
    %v895 = vpop.f32.mrb[0].mxu0
    %v896 = vpop.f32.mrb[0].mxu0
    %v897 = vpop.f32.mrb[0].mxu0
    %898 = vdwg.mxu0
    %899 = vmatprep.subr.bf16.mxu0 0
    %900 = vmatpush1.bf16.msra.mxu0 %v804
    %901 = vmatprep.subr.bf16.mxu0 0
    %902 = vmatpush1.bf16.msra.mxu0 %v805
    %903 = vmatprep.subr.bf16.mxu0 0
    %904 = vmatpush1.bf16.msra.mxu0 %v806
    %905 = vmatprep.subr.bf16.mxu0 0
    %906 = vmatpush1.bf16.msra.mxu0 %v807
    %907 = vmatprep.subr.bf16.mxu0 0
    %908 = vmatpush1.bf16.msra.mxu0 %v808
    %909 = vmatprep.subr.bf16.mxu0 0
    %910 = vmatpush1.bf16.msra.mxu0 %v809
    %911 = vmatprep.subr.bf16.mxu0 0
    %912 = vmatpush1.bf16.msra.mxu0 %v810
    %913 = vmatprep.subr.bf16.mxu0 0
    %914 = vmatpush1.bf16.msra.mxu0 %v811
    %915 = vmatprep.subr.bf16.mxu0 0
    %916 = vmatpush1.bf16.msra.mxu0 %v812
    %917 = vmatprep.subr.bf16.mxu0 0
    %918 = vmatpush1.bf16.msra.mxu0 %v813
    %919 = vmatprep.subr.bf16.mxu0 0
    %920 = vmatpush1.bf16.msra.mxu0 %v814
    %921 = vmatprep.subr.bf16.mxu0 0
    %922 = vmatpush1.bf16.msra.mxu0 %v815
    %923 = vmatprep.subr.bf16.mxu0 0
    %924 = vmatpush1.bf16.msra.mxu0 %v816
    %925 = vmatprep.subr.bf16.mxu0 0
    %926 = vmatpush1.bf16.msra.mxu0 %v817
    %927 = vmatprep.subr.bf16.mxu0 0
    %928 = vmatpush1.bf16.msra.mxu0 %v818
    %929 = vmatprep.subr.bf16.mxu0 0
    %930 = vmatpush1.bf16.msra.mxu0 %v857
    %931 = vmatprep.mubr.bf16.mxu0 %v853
    %932 = vmatmul.mubr.bf16.gmra.mrb[0].mxu0 %v653
    %v933 = vpop.f32.mrb[0].mxu0
    %v934 = vadd.f32 %v894, %v933
    %v935 = vpop.f32.mrb[0].mxu0
    %v936 = vpop.f32.mrb[0].mxu0
    %v937 = vpop.f32.mrb[0].mxu0
    %938 = vdwg.mxu0
    %v939 = vld [vmem:[%s13] sm:$0xf]
    %v940 = vpack.c.bf16 %v934, %v934
    %v941 = vld [vmem:[%s14] sm:$0x1]
    %v943 = vlaneseq
    %v944 = vshrl.u32 %v943, 7
    %v945 = vsub.s32 0, %v944
    %v946 = vrot.slane %v941, %v945
    %vm948 = vcmask 64512
    %v950 = vsel %vm948, %v940, 0
    %vm952 = vcmask 1043456
    %v954 = vsel %vm952, %v939, 0
    %956 = vmatprep.subr.bf16.mxu0 0
    %957 = vmatpush1.bf16.msra.mxu0 %v954
    %958 = vmatprep.subr.bf16.mxu0 0
    %959 = vmatpush1.bf16.msra.mxu0 0
    %960 = vmatprep.subr.bf16.mxu0 0
    %961 = vmatpush1.bf16.msra.mxu0 0
    %962 = vmatprep.subr.bf16.mxu0 0
    %963 = vmatpush1.bf16.msra.mxu0 0
    %964 = vmatprep.subr.bf16.mxu0 0
    %965 = vmatpush1.bf16.msra.mxu0 0
    %966 = vmatprep.subr.bf16.mxu0 0
    %967 = vmatpush1.bf16.msra.mxu0 0
    %968 = vmatprep.subr.bf16.mxu0 0
    %969 = vmatpush1.bf16.msra.mxu0 0
    %970 = vmatprep.subr.bf16.mxu0 0
    %971 = vmatpush1.bf16.msra.mxu0 0
    %972 = vmatprep.subr.bf16.mxu0 0
    %973 = vmatpush1.bf16.msra.mxu0 0
    %974 = vmatprep.subr.bf16.mxu0 0
    %975 = vmatpush1.bf16.msra.mxu0 0
    %976 = vmatprep.subr.bf16.mxu0 0
    %977 = vmatpush1.bf16.msra.mxu0 0
    %978 = vmatprep.subr.bf16.mxu0 0
    %979 = vmatpush1.bf16.msra.mxu0 0
    %980 = vmatprep.subr.bf16.mxu0 0
    %981 = vmatpush1.bf16.msra.mxu0 0
    %982 = vmatprep.subr.bf16.mxu0 0
    %983 = vmatpush1.bf16.msra.mxu0 0
    %984 = vmatprep.subr.bf16.mxu0 0
    %985 = vmatpush1.bf16.msra.mxu0 0
    %986 = vmatprep.subr.bf16.mxu0 0
    %987 = vmatpush1.bf16.msra.mxu0 0
    %988 = vmatprep.mubr.bf16.mxu0 0
    %989 = vmatmul.mubr.bf16.gmra.mrb[0].mxu0 %v950
    %v990 = vpop.f32.mrb[0].mxu0
    %v991 = vadd.f32 %v946, %v990
    %v992 = vpop.f32.mrb[0].mxu0
    %v993 = vpop.f32.mrb[0].mxu0
    %v994 = vpop.f32.mrb[0].mxu0
    %995 = vdwg.mxu0
    %vm996 = vcmask 58368
    %997 = vst.msk [vmem:[#allocation3] sm:$0x3] %vm996, %v991
    %v998 = vlaneseq
    %v999 = vand.u32 %v998, 127
    %vm1000 = vcmp.ge.s32.totalorder %v999, 64
    %vm1001 = vcmp.lt.s32.totalorder %v999, 96
    %vm1002 = vmand %vm1000, %vm1001
    %v1003 = vsel %vm1002, %v169, %v163
    %1004 = vst [vmem:[%s16] sm:$0x3] %v1003
    // Predicated region
    $region62: #{_vae_forward.5} parent=1 // pred_check
      _
    $region63: #{_vae_forward.5} parent=1 // pred_check_branch
      %1006 = sbr.rel (0) target = $region65
    $region64: #{_vae_forward.5} parent=1 // pred_region
      %s1008 = ssub.s32 32, 32
      %1009 = vsyncadd [#allocation4], %s1008
      %s1011 = sshll.u32 [#allocation3], 4
      %s1012 = int_to_ptr.vmem [resolvable:$true] %s1011
      %1014 = dma.vmem_to_hbm [thread:$0]  %s1012, 32, %s15, [#allocation4]
    $region65: #{_vae_forward.5} parent=1 // pred_fallthru
      _
    // Predicated region
    $region66: #{_vae_forward.5} parent=1 // pred_check
      _
    $region67: #{_vae_forward.5} parent=1 // pred_check_branch
      %1016 = sbr.rel (0) target = $region69
    $region68: #{_vae_forward.5} parent=1 // pred_region
      _
    $region69: #{_vae_forward.5} parent=1 // pred_fallthru
      _
    // Predicated region
    $region70: #{_vae_forward.5} parent=1 // pred_check
      _
    $region71: #{_vae_forward.5} parent=1 // pred_check_branch
      %1018 = sbr.rel (0) target = $region73
    $region72: #{_vae_forward.5} parent=1 // pred_region
      %1019 = dma.done [#allocation4], 32
    $region73: #{_vae_forward.5} parent=1 // pred_fallthru
      _
    // Predicated region
    $region74: #{_vae_forward.5} parent=1 // pred_check
      _
    $region75: #{_vae_forward.5} parent=1 // pred_check_branch
      %1021 = sbr.rel (0) target = $region77
    $region76: #{_vae_forward.5} parent=1 // pred_region
      _
    $region77: #{_vae_forward.5} parent=1 // pred_fallthru
      _
    %1022 = vsyncpa [#allocation4], 1

// kernel: _vae_forward.4
$region0: #{_vae_forward.4}
  #allocation0 [shape = 'u32[]', space=smem, size = 0x4, offset = 0x4, fixed_abs, tag = 'smem constant byte address 0x4 - core index']
  #allocation1 [shape = 'u32[144,128]{1,0:T(1,128)}', space=vmem, size = 0x12000, scoped, tag = 'internal scratch']
  #allocation2 [shape = 'f32[8,128]{1,0:T(8,128)}', space=vmem, size = 0x1000, scoped, tag = 'scratch operand']
  %s0 = inlined_call_operand.vmem [shape: f32[2,8,8], index: 0, kind: input, shape index: {}]
  %s1 = inlined_call_operand.hbm [shape: bf16[8,128], index: 1, kind: input, shape index: {}]
  %s2 = inlined_call_operand.hbm [shape: f32[1,128], index: 2, kind: input, shape index: {}]
  %s3 = inlined_call_operand.hbm [shape: bf16[2,128,384], index: 3, kind: input, shape index: {}]
  %s4 = inlined_call_operand.hbm [shape: f32[2,1,384], index: 4, kind: input, shape index: {}]
  %s5 = inlined_call_operand.hbm [shape: bf16[2,128,128], index: 5, kind: input, shape index: {}]
  %s6 = inlined_call_operand.hbm [shape: f32[2,1,128], index: 6, kind: input, shape index: {}]
  %s7 = inlined_call_operand.hbm [shape: bf16[2,128,2048], index: 7, kind: input, shape index: {}]
  %s8 = inlined_call_operand.vmem [shape: f32[2,1,2048], index: 8, kind: input, shape index: {}]
  %s9 = inlined_call_operand.hbm [shape: bf16[2,2048,128], index: 9, kind: input, shape index: {}]
  %s10 = inlined_call_operand.vmem [shape: f32[2,1,128], index: 10, kind: input, shape index: {}]
  %s11 = inlined_call_operand.vmem [shape: f32[2,1,128], index: 11, kind: input, shape index: {}]
  %s12 = inlined_call_operand.vmem [shape: f32[2,1,128], index: 12, kind: input, shape index: {}]
  %s13 = inlined_call_operand.vmem [shape: f32[2,1,128], index: 13, kind: input, shape index: {}]
  %s14 = inlined_call_operand.vmem [shape: f32[2,1,128], index: 14, kind: input, shape index: {}]
  %s15 = inlined_call_operand.vmem [shape: f32[2,1,128], index: 15, kind: output, shape index: {}]
  %s16 = sld [smem:[#allocation0]]
  $region133: #{_vae_forward.4} parent=0
    _
  %s18 = ssub.s32 1, %s16
  %s19 = scalar_select 0, %s18, %s16
  $region1: #{_vae_forward.4} parent=0
    #allocation3 [shape = 'u8[2048]{0}', space=vmem, size = 0x800, scoped, tag = 'input window, operand 1, single buffered']
    #allocation4 [shape = 's32[2]{0}', space=sflag, size = 0x8, scoped, tag = 'scoped memory for _vae_forward.4']
    #allocation5 [shape = 'u8[512]{0}', space=vmem, size = 0x400, scoped, tag = 'input window, operand 2, single buffered']
    #allocation6 [shape = 's32[1]{0}', space=sflag, size = 0x4, scoped, tag = 'scoped memory for _vae_forward.4']
    #allocation7 [shape = 'u8[196608]{0}', space=vmem, size = 0x30000, scoped, tag = 'input window, operand 3']
    #allocation8 [shape = 'u8[3072]{0}', space=vmem, size = 0xc00, scoped, tag = 'input window, operand 4']
    #allocation9 [shape = 'u8[65536]{0}', space=vmem, size = 0x10000, scoped, tag = 'input window, operand 5']
    #allocation10 [shape = 'u8[1024]{0}', space=vmem, size = 0x400, scoped, tag = 'input window, operand 6']
    #allocation11 [shape = 'u8[1048576]{0}', space=vmem, size = 0x100000, scoped, tag = 'input window, operand 7']
    #allocation12 [shape = 'u8[1048576]{0}', space=vmem, size = 0x100000, scoped, tag = 'input window, operand 9']
    %20 = vsyncpa [#allocation4], 0
    %21 = vsyncpa [#allocation6], 0
    loop: start=0, step=1, limit=6
    $region2: #{_vae_forward.4} parent=1 // loop_pre_header
      _
    $region3: #{_vae_forward.4} parent=1 // loop_header
      %s23 = sphi 0, %s27
      %p24 = scmp.ge.s32.totalorder %s23, 6
      %s30 = sphi 0, %s42
      %s31 = sphi 0, %s38
      %s32 = sphi 0, %s30
      %s33 = sphi 0, %s31
      %s34 = sphi 0, %s32
      %s35 = sphi 0, %s33
      %s45 = sphi 0, %s47
      %s48 = sphi 0, %s45
      %s49 = sphi 0, %s48
      %s65 = sphi 0, %s49
      %s69 = sphi 0, %s69
      %s71 = sphi 0, %s69
      %s72 = sphi 0, %s71
      %s86 = sphi 0, %s72
      %s90 = sphi 0, %s90
      %s92 = sphi 0, %s90
      %s93 = sphi 0, %s92
      %s107 = sphi 0, %s93
      %s113 = sphi 0, %s115
      %s116 = sphi 0, %s113
      %s117 = sphi 0, %s116
      %s133 = sphi 0, %s117
      %s139 = sphi 0, %s141
      %s142 = sphi 0, %s139
      %s143 = sphi 0, %s142
      %s159 = sphi 0, %s143
      %s165 = sphi 0, %s167
      %s168 = sphi 0, %s165
      %s169 = sphi 0, %s168
      %s185 = sphi 0, %s169
      %s191 = sphi 0, %s193
      %s194 = sphi 0, %s191
      %s195 = sphi 0, %s194
      %s211 = sphi 0, %s195
      %s217 = sphi 0, %s219
      %s220 = sphi 0, %s217
      %s221 = sphi 0, %s220
      %s237 = sphi 0, %s221
      %s243 = sphi 0, %s245
      %s246 = sphi 0, %s243
      %s247 = sphi 0, %s246
      %s263 = sphi 0, %s247
      %s269 = sphi 0, %s271
      %s272 = sphi 0, %s269
      %s273 = sphi 0, %s272
      %s289 = sphi 0, %s273
      %s295 = sphi 0, %s297
      %s298 = sphi 0, %s295
      %s299 = sphi 0, %s298
      %s315 = sphi 0, %s299
      %s321 = sphi 0, %s323
      %s324 = sphi 0, %s321
      %s325 = sphi 0, %s324
      %s341 = sphi 0, %s325
      %s347 = sphi 0, %s349
      %s350 = sphi 0, %s347
      %s351 = sphi 0, %s350
      %s367 = sphi 0, %s351
      %s373 = sphi 0, %s375
      %s376 = sphi 0, %s373
      %s377 = sphi 0, %s376
      %s393 = sphi 0, %s377
      %s399 = sphi 0, %s401
      %s402 = sphi 0, %s399
      %s403 = sphi 0, %s402
      %s419 = sphi 0, %s403
      %s425 = sphi 0, %s427
      %s428 = sphi 0, %s425
      %s429 = sphi 0, %s428
      %s445 = sphi 0, %s429
    $region4: #{_vae_forward.4} parent=1 // loop_header_branch
      %26 = sbr.rel (%p24) target = $region8
    $region5: #{_vae_forward.4} parent=1 // loop_body
      %s28 = ssub.s32 %s23, 1
      %s29 = ssub.s32 %s23, 2
      %s36 = sadd.s32 1, %s31
      %p37 = scmp.ge.s32.totalorder %s36, 2
      %s38 = scalar_select %p37, 0, %s36
      %s39 = sadd.s32 1, %s30
      %s40 = scalar_select %p37, %s39, %s30
      %p41 = scmp.ge.s32.totalorder %s40, 2
      %s42 = scalar_select %p41, 0, %s40
      %s43 = ssub.s32 %s30, %s42
      %p44 = scmp.eq.s32.totalorder %s43, 0
      %s46 = sadd.s32 %s45, 1
      %s47 = scalar_select %p44, %s45, %s46
      %p50 = pneg %p44
      %p51 = scmp.eq.s32.totalorder %s23, 3
      %p52 = por %p50, %p51
      %p53 = scmp.ne.s32.totalorder %s45, %s48
      %p54 = scmp.eq.s32.totalorder %s23, 0
      %p55 = por %p53, %p54
      %p56 = scmp.ne.s32.totalorder %s45, %s48
      %p57 = scmp.eq.s32.totalorder %s28, 3
      %p58 = por %p56, %p57
      %p59 = scmp.ne.s32.totalorder %s48, %s49
      %p60 = scmp.eq.s32.totalorder %s28, 0
      %p61 = por %p59, %p60
      %p62 = scmp.ne.s32.totalorder %s48, %s49
      %p63 = scmp.eq.s32.totalorder %s29, 3
      %p64 = por %p62, %p63
      %p66 = scmp.ne.s32.totalorder %s49, %s65
      %p67 = scmp.eq.s32.totalorder %s29, 0
      %p68 = por %p66, %p67
      %s70 = sadd.s32 %s69, 1
      %p73 = scmp.eq.s32.totalorder %s23, 3
      %p74 = scmp.ne.s32.totalorder %s69, %s71
      %p75 = scmp.eq.s32.totalorder %s23, 0
      %p76 = por %p74, %p75
      %p77 = scmp.ne.s32.totalorder %s69, %s71
      %p78 = scmp.eq.s32.totalorder %s28, 3
      %p79 = por %p77, %p78
      %p80 = scmp.ne.s32.totalorder %s71, %s72
      %p81 = scmp.eq.s32.totalorder %s28, 0
      %p82 = por %p80, %p81
      %p83 = scmp.ne.s32.totalorder %s71, %s72
      %p84 = scmp.eq.s32.totalorder %s29, 3
      %p85 = por %p83, %p84
      %p87 = scmp.ne.s32.totalorder %s72, %s86
      %p88 = scmp.eq.s32.totalorder %s29, 0
      %p89 = por %p87, %p88
      %s91 = sadd.s32 %s90, 1
      %p94 = scmp.eq.s32.totalorder %s23, 3
      %p95 = scmp.ne.s32.totalorder %s90, %s92
      %p96 = scmp.eq.s32.totalorder %s23, 0
      %p97 = por %p95, %p96
      %p98 = scmp.ne.s32.totalorder %s90, %s92
      %p99 = scmp.eq.s32.totalorder %s28, 3
      %p100 = por %p98, %p99
      %p101 = scmp.ne.s32.totalorder %s92, %s93
      %p102 = scmp.eq.s32.totalorder %s28, 0
      %p103 = por %p101, %p102
      %p104 = scmp.ne.s32.totalorder %s92, %s93
      %p105 = scmp.eq.s32.totalorder %s29, 3
      %p106 = por %p104, %p105
      %p108 = scmp.ne.s32.totalorder %s93, %s107
      %p109 = scmp.eq.s32.totalorder %s29, 0
      %p110 = por %p108, %p109
      %s111 = ssub.s32 %s31, %s38
      %p112 = scmp.eq.s32.totalorder %s111, 0
      %s114 = sadd.s32 %s113, 1
      %s115 = scalar_select %p112, %s113, %s114
      %p118 = pneg %p112
      %p119 = scmp.eq.s32.totalorder %s23, 3
      %p120 = por %p118, %p119
      %p121 = scmp.ne.s32.totalorder %s113, %s116
      %p122 = scmp.eq.s32.totalorder %s23, 0
      %p123 = por %p121, %p122
      %p124 = scmp.ne.s32.totalorder %s113, %s116
      %p125 = scmp.eq.s32.totalorder %s28, 3
      %p126 = por %p124, %p125
      %p127 = scmp.ne.s32.totalorder %s116, %s117
      %p128 = scmp.eq.s32.totalorder %s28, 0
      %p129 = por %p127, %p128
      %p130 = scmp.ne.s32.totalorder %s116, %s117
      %p131 = scmp.eq.s32.totalorder %s29, 3
      %p132 = por %p130, %p131
      %p134 = scmp.ne.s32.totalorder %s117, %s133
      %p135 = scmp.eq.s32.totalorder %s29, 0
      %p136 = por %p134, %p135
      %s137 = ssub.s32 %s31, %s38
      %p138 = scmp.eq.s32.totalorder %s137, 0
      %s140 = sadd.s32 %s139, 1
      %s141 = scalar_select %p138, %s139, %s140
      %p144 = pneg %p138
      %p145 = scmp.eq.s32.totalorder %s23, 3
      %p146 = por %p144, %p145
      %p147 = scmp.ne.s32.totalorder %s139, %s142
      %p148 = scmp.eq.s32.totalorder %s23, 0
      %p149 = por %p147, %p148
      %p150 = scmp.ne.s32.totalorder %s139, %s142
      %p151 = scmp.eq.s32.totalorder %s28, 3
      %p152 = por %p150, %p151
      %p153 = scmp.ne.s32.totalorder %s142, %s143
      %p154 = scmp.eq.s32.totalorder %s28, 0
      %p155 = por %p153, %p154
      %p156 = scmp.ne.s32.totalorder %s142, %s143
      %p157 = scmp.eq.s32.totalorder %s29, 3
      %p158 = por %p156, %p157
      %p160 = scmp.ne.s32.totalorder %s143, %s159
      %p161 = scmp.eq.s32.totalorder %s29, 0
      %p162 = por %p160, %p161
      %s163 = ssub.s32 %s31, %s38
      %p164 = scmp.eq.s32.totalorder %s163, 0
      %s166 = sadd.s32 %s165, 1
      %s167 = scalar_select %p164, %s165, %s166
      %p170 = pneg %p164
      %p171 = scmp.eq.s32.totalorder %s23, 3
      %p172 = por %p170, %p171
      %p173 = scmp.ne.s32.totalorder %s165, %s168
      %p174 = scmp.eq.s32.totalorder %s23, 0
      %p175 = por %p173, %p174
      %p176 = scmp.ne.s32.totalorder %s165, %s168
      %p177 = scmp.eq.s32.totalorder %s28, 3
      %p178 = por %p176, %p177
      %p179 = scmp.ne.s32.totalorder %s168, %s169
      %p180 = scmp.eq.s32.totalorder %s28, 0
      %p181 = por %p179, %p180
      %p182 = scmp.ne.s32.totalorder %s168, %s169
      %p183 = scmp.eq.s32.totalorder %s29, 3
      %p184 = por %p182, %p183
      %p186 = scmp.ne.s32.totalorder %s169, %s185
      %p187 = scmp.eq.s32.totalorder %s29, 0
      %p188 = por %p186, %p187
      %s189 = ssub.s32 %s31, %s38
      %p190 = scmp.eq.s32.totalorder %s189, 0
      %s192 = sadd.s32 %s191, 1
      %s193 = scalar_select %p190, %s191, %s192
      %p196 = pneg %p190
      %p197 = scmp.eq.s32.totalorder %s23, 3
      %p198 = por %p196, %p197
      %p199 = scmp.ne.s32.totalorder %s191, %s194
      %p200 = scmp.eq.s32.totalorder %s23, 0
      %p201 = por %p199, %p200
      %p202 = scmp.ne.s32.totalorder %s191, %s194
      %p203 = scmp.eq.s32.totalorder %s28, 3
      %p204 = por %p202, %p203
      %p205 = scmp.ne.s32.totalorder %s194, %s195
      %p206 = scmp.eq.s32.totalorder %s28, 0
      %p207 = por %p205, %p206
      %p208 = scmp.ne.s32.totalorder %s194, %s195
      %p209 = scmp.eq.s32.totalorder %s29, 3
      %p210 = por %p208, %p209
      %p212 = scmp.ne.s32.totalorder %s195, %s211
      %p213 = scmp.eq.s32.totalorder %s29, 0
      %p214 = por %p212, %p213
      %s215 = ssub.s32 %s31, %s38
      %p216 = scmp.eq.s32.totalorder %s215, 0
      %s218 = sadd.s32 %s217, 1
      %s219 = scalar_select %p216, %s217, %s218
      %p222 = pneg %p216
      %p223 = scmp.eq.s32.totalorder %s23, 3
      %p224 = por %p222, %p223
      %p225 = scmp.ne.s32.totalorder %s217, %s220
      %p226 = scmp.eq.s32.totalorder %s23, 0
      %p227 = por %p225, %p226
      %p228 = scmp.ne.s32.totalorder %s217, %s220
      %p229 = scmp.eq.s32.totalorder %s28, 3
      %p230 = por %p228, %p229
      %p231 = scmp.ne.s32.totalorder %s220, %s221
      %p232 = scmp.eq.s32.totalorder %s28, 0
      %p233 = por %p231, %p232
      %p234 = scmp.ne.s32.totalorder %s220, %s221
      %p235 = scmp.eq.s32.totalorder %s29, 3
      %p236 = por %p234, %p235
      %p238 = scmp.ne.s32.totalorder %s221, %s237
      %p239 = scmp.eq.s32.totalorder %s29, 0
      %p240 = por %p238, %p239
      %s241 = ssub.s32 %s31, %s38
      %p242 = scmp.eq.s32.totalorder %s241, 0
      %s244 = sadd.s32 %s243, 1
      %s245 = scalar_select %p242, %s243, %s244
      %p248 = pneg %p242
      %p249 = scmp.eq.s32.totalorder %s23, 3
      %p250 = por %p248, %p249
      %p251 = scmp.ne.s32.totalorder %s243, %s246
      %p252 = scmp.eq.s32.totalorder %s23, 0
      %p253 = por %p251, %p252
      %p254 = scmp.ne.s32.totalorder %s243, %s246
      %p255 = scmp.eq.s32.totalorder %s28, 3
      %p256 = por %p254, %p255
      %p257 = scmp.ne.s32.totalorder %s246, %s247
      %p258 = scmp.eq.s32.totalorder %s28, 0
      %p259 = por %p257, %p258
      %p260 = scmp.ne.s32.totalorder %s246, %s247
      %p261 = scmp.eq.s32.totalorder %s29, 3
      %p262 = por %p260, %p261
      %p264 = scmp.ne.s32.totalorder %s247, %s263
      %p265 = scmp.eq.s32.totalorder %s29, 0
      %p266 = por %p264, %p265
      %s267 = ssub.s32 %s31, %s38
      %p268 = scmp.eq.s32.totalorder %s267, 0
      %s270 = sadd.s32 %s269, 1
      %s271 = scalar_select %p268, %s269, %s270
      %p274 = pneg %p268
      %p275 = scmp.eq.s32.totalorder %s23, 3
      %p276 = por %p274, %p275
      %p277 = scmp.ne.s32.totalorder %s269, %s272
      %p278 = scmp.eq.s32.totalorder %s23, 0
      %p279 = por %p277, %p278
      %p280 = scmp.ne.s32.totalorder %s269, %s272
      %p281 = scmp.eq.s32.totalorder %s28, 3
      %p282 = por %p280, %p281
      %p283 = scmp.ne.s32.totalorder %s272, %s273
      %p284 = scmp.eq.s32.totalorder %s28, 0
      %p285 = por %p283, %p284
      %p286 = scmp.ne.s32.totalorder %s272, %s273
      %p287 = scmp.eq.s32.totalorder %s29, 3
      %p288 = por %p286, %p287
      %p290 = scmp.ne.s32.totalorder %s273, %s289
      %p291 = scmp.eq.s32.totalorder %s29, 0
      %p292 = por %p290, %p291
      %s293 = ssub.s32 %s31, %s38
      %p294 = scmp.eq.s32.totalorder %s293, 0
      %s296 = sadd.s32 %s295, 1
      %s297 = scalar_select %p294, %s295, %s296
      %p300 = pneg %p294
      %p301 = scmp.eq.s32.totalorder %s23, 3
      %p302 = por %p300, %p301
      %p303 = scmp.ne.s32.totalorder %s295, %s298
      %p304 = scmp.eq.s32.totalorder %s23, 0
      %p305 = por %p303, %p304
      %p306 = scmp.ne.s32.totalorder %s295, %s298
      %p307 = scmp.eq.s32.totalorder %s28, 3
      %p308 = por %p306, %p307
      %p309 = scmp.ne.s32.totalorder %s298, %s299
      %p310 = scmp.eq.s32.totalorder %s28, 0
      %p311 = por %p309, %p310
      %p312 = scmp.ne.s32.totalorder %s298, %s299
      %p313 = scmp.eq.s32.totalorder %s29, 3
      %p314 = por %p312, %p313
      %p316 = scmp.ne.s32.totalorder %s299, %s315
      %p317 = scmp.eq.s32.totalorder %s29, 0
      %p318 = por %p316, %p317
      %s319 = ssub.s32 %s31, %s38
      %p320 = scmp.eq.s32.totalorder %s319, 0
      %s322 = sadd.s32 %s321, 1
      %s323 = scalar_select %p320, %s321, %s322
      %p326 = pneg %p320
      %p327 = scmp.eq.s32.totalorder %s23, 3
      %p328 = por %p326, %p327
      %p329 = scmp.ne.s32.totalorder %s321, %s324
      %p330 = scmp.eq.s32.totalorder %s23, 0
      %p331 = por %p329, %p330
      %p332 = scmp.ne.s32.totalorder %s321, %s324
      %p333 = scmp.eq.s32.totalorder %s28, 3
      %p334 = por %p332, %p333
      %p335 = scmp.ne.s32.totalorder %s324, %s325
      %p336 = scmp.eq.s32.totalorder %s28, 0
      %p337 = por %p335, %p336
      %p338 = scmp.ne.s32.totalorder %s324, %s325
      %p339 = scmp.eq.s32.totalorder %s29, 3
      %p340 = por %p338, %p339
      %p342 = scmp.ne.s32.totalorder %s325, %s341
      %p343 = scmp.eq.s32.totalorder %s29, 0
      %p344 = por %p342, %p343
      %s345 = ssub.s32 %s31, %s38
      %p346 = scmp.eq.s32.totalorder %s345, 0
      %s348 = sadd.s32 %s347, 1
      %s349 = scalar_select %p346, %s347, %s348
      %p352 = pneg %p346
      %p353 = scmp.eq.s32.totalorder %s23, 3
      %p354 = por %p352, %p353
      %p355 = scmp.ne.s32.totalorder %s347, %s350
      %p356 = scmp.eq.s32.totalorder %s23, 0
      %p357 = por %p355, %p356
      %p358 = scmp.ne.s32.totalorder %s347, %s350
      %p359 = scmp.eq.s32.totalorder %s28, 3
      %p360 = por %p358, %p359
      %p361 = scmp.ne.s32.totalorder %s350, %s351
      %p362 = scmp.eq.s32.totalorder %s28, 0
      %p363 = por %p361, %p362
      %p364 = scmp.ne.s32.totalorder %s350, %s351
      %p365 = scmp.eq.s32.totalorder %s29, 3
      %p366 = por %p364, %p365
      %p368 = scmp.ne.s32.totalorder %s351, %s367
      %p369 = scmp.eq.s32.totalorder %s29, 0
      %p370 = por %p368, %p369
      %s371 = ssub.s32 %s31, %s38
      %p372 = scmp.eq.s32.totalorder %s371, 0
      %s374 = sadd.s32 %s373, 1
      %s375 = scalar_select %p372, %s373, %s374
      %p378 = pneg %p372
      %p379 = scmp.eq.s32.totalorder %s23, 3
      %p380 = por %p378, %p379
      %p381 = scmp.ne.s32.totalorder %s373, %s376
      %p382 = scmp.eq.s32.totalorder %s23, 0
      %p383 = por %p381, %p382
      %p384 = scmp.ne.s32.totalorder %s373, %s376
      %p385 = scmp.eq.s32.totalorder %s28, 3
      %p386 = por %p384, %p385
      %p387 = scmp.ne.s32.totalorder %s376, %s377
      %p388 = scmp.eq.s32.totalorder %s28, 0
      %p389 = por %p387, %p388
      %p390 = scmp.ne.s32.totalorder %s376, %s377
      %p391 = scmp.eq.s32.totalorder %s29, 3
      %p392 = por %p390, %p391
      %p394 = scmp.ne.s32.totalorder %s377, %s393
      %p395 = scmp.eq.s32.totalorder %s29, 0
      %p396 = por %p394, %p395
      %s397 = ssub.s32 %s31, %s38
      %p398 = scmp.eq.s32.totalorder %s397, 0
      %s400 = sadd.s32 %s399, 1
      %s401 = scalar_select %p398, %s399, %s400
      %p404 = pneg %p398
      %p405 = scmp.eq.s32.totalorder %s23, 3
      %p406 = por %p404, %p405
      %p407 = scmp.ne.s32.totalorder %s399, %s402
      %p408 = scmp.eq.s32.totalorder %s23, 0
      %p409 = por %p407, %p408
      %p410 = scmp.ne.s32.totalorder %s399, %s402
      %p411 = scmp.eq.s32.totalorder %s28, 3
      %p412 = por %p410, %p411
      %p413 = scmp.ne.s32.totalorder %s402, %s403
      %p414 = scmp.eq.s32.totalorder %s28, 0
      %p415 = por %p413, %p414
      %p416 = scmp.ne.s32.totalorder %s402, %s403
      %p417 = scmp.eq.s32.totalorder %s29, 3
      %p418 = por %p416, %p417
      %p420 = scmp.ne.s32.totalorder %s403, %s419
      %p421 = scmp.eq.s32.totalorder %s29, 0
      %p422 = por %p420, %p421
      %s423 = ssub.s32 %s30, %s42
      %p424 = scmp.eq.s32.totalorder %s423, 0
      %s426 = sadd.s32 %s425, 1
      %s427 = scalar_select %p424, %s425, %s426
      %p430 = pneg %p424
      %p431 = scmp.eq.s32.totalorder %s23, 3
      %p432 = por %p430, %p431
      %p433 = scmp.ne.s32.totalorder %s425, %s428
      %p434 = scmp.eq.s32.totalorder %s23, 0
      %p435 = por %p433, %p434
      %p436 = scmp.ne.s32.totalorder %s425, %s428
      %p437 = scmp.eq.s32.totalorder %s28, 3
      %p438 = por %p436, %p437
      %p439 = scmp.ne.s32.totalorder %s428, %s429
      %p440 = scmp.eq.s32.totalorder %s28, 0
      %p441 = por %p439, %p440
      %p442 = scmp.ne.s32.totalorder %s428, %s429
      %p443 = scmp.eq.s32.totalorder %s29, 3
      %p444 = por %p442, %p443
      %p446 = scmp.ne.s32.totalorder %s429, %s445
      %p447 = scmp.eq.s32.totalorder %s29, 0
      %p448 = por %p446, %p447
      %p449 = scmp.le.s32.totalorder 1, %s23
      %p450 = scmp.lt.s32.totalorder %s23, 5
      %p451 = pnand %p449, %p450
      %p452 = pneg %p451
      // Predicated region
      $region9: #{_vae_forward.4} parent=5 // pred_check
        _
      $region10: #{_vae_forward.4} parent=5 // pred_check_branch
        %454 = sbr.rel (%p451) target = $region12
      $region11: #{_vae_forward.4} parent=5 // pred_region
        %s455 = ssub.s32 %s23, 1
        // Predicated region
        $region13: #{_vae_forward.4} parent=11 // pred_check
          %p456 = pneg %p82
        $region14: #{_vae_forward.4} parent=11 // pred_check_branch
          %458 = sbr.rel (%p456) target = $region16
        $region15: #{_vae_forward.4} parent=11 // pred_region
          %s460 = ssub.s32 64, 64
          %461 = vsyncadd [#allocation4], %s460
          %s463 = sshll.u32 [#allocation3], 4
          %s464 = int_to_ptr.vmem [resolvable:$true] %s463
          %466 = dma.hbm_to_vmem [thread:$0]  %s1, 64, %s464, [#allocation4]
        $region16: #{_vae_forward.4} parent=11 // pred_fallthru
          _
        // Predicated region
        $region17: #{_vae_forward.4} parent=11 // pred_check
          %p467 = pneg %p103
        $region18: #{_vae_forward.4} parent=11 // pred_check_branch
          %469 = sbr.rel (%p467) target = $region20
        $region19: #{_vae_forward.4} parent=11 // pred_region
          %s471 = ssub.s32 16, 16
          %472 = vsyncadd [#allocation6], %s471
          %s474 = sshll.u32 [#allocation5], 4
          %s475 = int_to_ptr.vmem [resolvable:$true] %s474
          %477 = dma.hbm_to_vmem [thread:$0]  %s2, 16, %s475, [#allocation6]
        $region20: #{_vae_forward.4} parent=11 // pred_fallthru
          _
      $region12: #{_vae_forward.4} parent=5 // pred_fallthru
        _
      %p478 = scmp.lt.s32.totalorder %s23, 4
      // Predicated region
      $region21: #{_vae_forward.4} parent=5 // pred_check
        %p479 = pneg %p478
      $region22: #{_vae_forward.4} parent=5 // pred_check_branch
        %481 = sbr.rel (%p479) target = $region24
      $region23: #{_vae_forward.4} parent=5 // pred_region
        // Predicated region
        $region25: #{_vae_forward.4} parent=23 // pred_check
          %p482 = pneg %p55
        $region26: #{_vae_forward.4} parent=23 // pred_check_branch
          %484 = sbr.rel (%p482) target = $region28
        $region27: #{_vae_forward.4} parent=23 // pred_region
          %p485 = scmp.lt.s32.totalorder %s30, 1
          %s486 = scalar_select %p485, %s30, 1
          %s487 = smul.addr %s486, 8
          %s488 = scalar_lea.vmem %s0, %s487
        $region28: #{_vae_forward.4} parent=23 // pred_fallthru
          _
        // Predicated region
        $region29: #{_vae_forward.4} parent=23 // pred_check
          %p489 = pneg %p123
        $region30: #{_vae_forward.4} parent=23 // pred_check_branch
          %491 = sbr.rel (%p489) target = $region32
        $region31: #{_vae_forward.4} parent=23 // pred_region
          %s492 = sand.u32 %s23, 1
          %s493 = scalar_lea.sflag [#allocation4], %s492
          %s494 = sand.u32 %s113, 1
          %s495 = smul.addr %s494, 192
          %s496 = scalar_lea.vmem [#allocation7], %s495
          %s498 = ssub.s32 3072, 3072
          %499 = vsyncadd %s493, %s498
          %s500 = smul.addr %s31, 48
          %s501 = smul.addr %s500, 64
          %s502 = scalar_lea.hbm %s3, %s501
          %s503 = sshll.u32 %s496, 4
          %s504 = int_to_ptr.vmem [resolvable:$true] %s503
          %509 = dma.hbm_to_vmem [thread:$0]  %s502, 3072, %s504, %s493, 192, 192, 12
        $region32: #{_vae_forward.4} parent=23 // pred_fallthru
          _
        // Predicated region
        $region33: #{_vae_forward.4} parent=23 // pred_check
          %p510 = pneg %p149
        $region34: #{_vae_forward.4} parent=23 // pred_check_branch
          %512 = sbr.rel (%p510) target = $region36
        $region35: #{_vae_forward.4} parent=23 // pred_region
          %s513 = sand.u32 %s23, 1
          %s514 = scalar_lea.sflag [#allocation4], %s513
          %s515 = sand.u32 %s139, 1
          %s516 = smul.addr %s515, 3
          %s517 = scalar_lea.vmem [#allocation8], %s516
          %s519 = ssub.s32 48, 48
          %520 = vsyncadd %s514, %s519
          %s521 = smul.addr %s31, 3
          %s522 = smul.addr %s521, 16
          %s523 = scalar_lea.hbm %s4, %s522
          %s525 = sshll.u32 %s517, 4
          %s526 = int_to_ptr.vmem [resolvable:$true] %s525
          %528 = dma.hbm_to_vmem [thread:$0]  %s523, 48, %s526, %s514
        $region36: #{_vae_forward.4} parent=23 // pred_fallthru
          _
        // Predicated region
        $region37: #{_vae_forward.4} parent=23 // pred_check
          %p529 = pneg %p175
        $region38: #{_vae_forward.4} parent=23 // pred_check_branch
          %531 = sbr.rel (%p529) target = $region40
        $region39: #{_vae_forward.4} parent=23 // pred_region
          %s532 = sand.u32 %s23, 1
          %s533 = scalar_lea.sflag [#allocation4], %s532
          %s534 = sand.u32 %s165, 1
          %s535 = smul.addr %s534, 64
          %s536 = scalar_lea.vmem [#allocation9], %s535
          %s538 = ssub.s32 1024, 1024
          %539 = vsyncadd %s533, %s538
          %s540 = smul.addr %s31, 16
          %s541 = smul.addr %s540, 64
          %s542 = scalar_lea.hbm %s5, %s541
          %s543 = sshll.u32 %s536, 4
          %s544 = int_to_ptr.vmem [resolvable:$true] %s543
          %549 = dma.hbm_to_vmem [thread:$0]  %s542, 1024, %s544, %s533, 64, 64, 4
        $region40: #{_vae_forward.4} parent=23 // pred_fallthru
          _
        // Predicated region
        $region41: #{_vae_forward.4} parent=23 // pred_check
          %p550 = pneg %p201
        $region42: #{_vae_forward.4} parent=23 // pred_check_branch
          %552 = sbr.rel (%p550) target = $region44
        $region43: #{_vae_forward.4} parent=23 // pred_region
          %s553 = sand.u32 %s23, 1
          %s554 = scalar_lea.sflag [#allocation4], %s553
          %s555 = sand.u32 %s191, 1
          %s556 = scalar_lea.vmem [#allocation10], %s555
          %s558 = ssub.s32 16, 16
          %559 = vsyncadd %s554, %s558
          %s560 = smul.addr %s31, 16
          %s561 = scalar_lea.hbm %s6, %s560
          %s563 = sshll.u32 %s556, 4
          %s564 = int_to_ptr.vmem [resolvable:$true] %s563
          %566 = dma.hbm_to_vmem [thread:$0]  %s561, 16, %s564, %s554
        $region44: #{_vae_forward.4} parent=23 // pred_fallthru
          _
        // Predicated region
        $region45: #{_vae_forward.4} parent=23 // pred_check
          %p567 = pneg %p227
        $region46: #{_vae_forward.4} parent=23 // pred_check_branch
          %569 = sbr.rel (%p567) target = $region48
        $region47: #{_vae_forward.4} parent=23 // pred_region
          %s570 = sand.u32 %s23, 1
          %s571 = scalar_lea.sflag [#allocation4], %s570
          %s572 = sand.u32 %s217, 1
          %s573 = smul.addr %s572, 1024
          %s574 = scalar_lea.vmem [#allocation11], %s573
          %s576 = ssub.s32 16384, 16384
          %577 = vsyncadd %s571, %s576
          %s578 = smul.addr %s31, 256
          %s579 = smul.addr %s578, 64
          %s580 = scalar_lea.hbm %s7, %s579
          %s581 = sshll.u32 %s574, 4
          %s582 = int_to_ptr.vmem [resolvable:$true] %s581
          %587 = dma.hbm_to_vmem [thread:$0]  %s580, 16384, %s582, %s571, 1024, 1024, 64
        $region48: #{_vae_forward.4} parent=23 // pred_fallthru
          _
        // Predicated region
        $region49: #{_vae_forward.4} parent=23 // pred_check
          %p588 = pneg %p253
        $region50: #{_vae_forward.4} parent=23 // pred_check_branch
          %590 = sbr.rel (%p588) target = $region52
        $region51: #{_vae_forward.4} parent=23 // pred_region
          %p591 = scmp.lt.s32.totalorder %s31, 1
          %s592 = scalar_select %p591, %s31, 1
          %s593 = smul.addr %s592, 16
          %s594 = scalar_lea.vmem %s8, %s593
        $region52: #{_vae_forward.4} parent=23 // pred_fallthru
          _
        // Predicated region
        $region53: #{_vae_forward.4} parent=23 // pred_check
          %p595 = pneg %p279
        $region54: #{_vae_forward.4} parent=23 // pred_check_branch
          %597 = sbr.rel (%p595) target = $region56
        $region55: #{_vae_forward.4} parent=23 // pred_region
          %s598 = sand.u32 %s23, 1
          %s599 = scalar_lea.sflag [#allocation4], %s598
          %s600 = sand.u32 %s269, 1
          %s601 = smul.addr %s600, 1024
          %s602 = scalar_lea.vmem [#allocation12], %s601
          %s604 = ssub.s32 16384, 16384
          %605 = vsyncadd %s599, %s604
          %s606 = smul.addr %s31, 256
          %s607 = smul.addr %s606, 64
          %s608 = scalar_lea.hbm %s9, %s607
          %s609 = sshll.u32 %s602, 4
          %s610 = int_to_ptr.vmem [resolvable:$true] %s609
          %615 = dma.hbm_to_vmem [thread:$0]  %s608, 16384, %s610, %s599, 64, 64, 4
        $region56: #{_vae_forward.4} parent=23 // pred_fallthru
          _
        // Predicated region
        $region57: #{_vae_forward.4} parent=23 // pred_check
          %p616 = pneg %p305
        $region58: #{_vae_forward.4} parent=23 // pred_check_branch
          %618 = sbr.rel (%p616) target = $region60
        $region59: #{_vae_forward.4} parent=23 // pred_region
          %p619 = scmp.lt.s32.totalorder %s31, 1
          %s620 = scalar_select %p619, %s31, 1
          %s621 = scalar_lea.vmem %s10, %s620
        $region60: #{_vae_forward.4} parent=23 // pred_fallthru
          _
        // Predicated region
        $region61: #{_vae_forward.4} parent=23 // pred_check
          %p622 = pneg %p331
        $region62: #{_vae_forward.4} parent=23 // pred_check_branch
          %624 = sbr.rel (%p622) target = $region64
        $region63: #{_vae_forward.4} parent=23 // pred_region
          %p625 = scmp.lt.s32.totalorder %s31, 1
          %s626 = scalar_select %p625, %s31, 1
          %s627 = scalar_lea.vmem %s11, %s626
        $region64: #{_vae_forward.4} parent=23 // pred_fallthru
          _
        // Predicated region
        $region65: #{_vae_forward.4} parent=23 // pred_check
          %p628 = pneg %p357
        $region66: #{_vae_forward.4} parent=23 // pred_check_branch
          %630 = sbr.rel (%p628) target = $region68
        $region67: #{_vae_forward.4} parent=23 // pred_region
          %p631 = scmp.lt.s32.totalorder %s31, 1
          %s632 = scalar_select %p631, %s31, 1
          %s633 = scalar_lea.vmem %s12, %s632
        $region68: #{_vae_forward.4} parent=23 // pred_fallthru
          _
        // Predicated region
        $region69: #{_vae_forward.4} parent=23 // pred_check
          %p634 = pneg %p383
        $region70: #{_vae_forward.4} parent=23 // pred_check_branch
          %636 = sbr.rel (%p634) target = $region72
        $region71: #{_vae_forward.4} parent=23 // pred_region
          %p637 = scmp.lt.s32.totalorder %s31, 1
          %s638 = scalar_select %p637, %s31, 1
          %s639 = scalar_lea.vmem %s13, %s638
        $region72: #{_vae_forward.4} parent=23 // pred_fallthru
          _
        // Predicated region
        $region73: #{_vae_forward.4} parent=23 // pred_check
          %p640 = pneg %p409
        $region74: #{_vae_forward.4} parent=23 // pred_check_branch
          %642 = sbr.rel (%p640) target = $region76
        $region75: #{_vae_forward.4} parent=23 // pred_region
          %p643 = scmp.lt.s32.totalorder %s31, 1
          %s644 = scalar_select %p643, %s31, 1
          %s645 = scalar_lea.vmem %s14, %s644
        $region76: #{_vae_forward.4} parent=23 // pred_fallthru
          _
      $region24: #{_vae_forward.4} parent=5 // pred_fallthru
        _
      %p646 = scmp.le.s32.totalorder 1, %s23
      %p647 = scmp.lt.s32.totalorder %s23, 5
      %p648 = pnand %p646, %p647
      %p649 = pneg %p648
      // Predicated region
      $region77: #{_vae_forward.4} parent=5 // pred_check
        _
      $region78: #{_vae_forward.4} parent=5 // pred_check_branch
        %651 = sbr.rel (%p648) target = $region80
      $region79: #{_vae_forward.4} parent=5 // pred_region
        %s652 = ssub.s32 %s23, 1
        // Predicated region
        $region81: #{_vae_forward.4} parent=79 // pred_check
          %p653 = pneg %p82
        $region82: #{_vae_forward.4} parent=79 // pred_check_branch
          %655 = sbr.rel (%p653) target = $region84
        $region83: #{_vae_forward.4} parent=79 // pred_region
          %656 = dma.done [#allocation4], 64
        $region84: #{_vae_forward.4} parent=79 // pred_fallthru
          _
        // Predicated region
        $region85: #{_vae_forward.4} parent=79 // pred_check
          %p657 = pneg %p103
        $region86: #{_vae_forward.4} parent=79 // pred_check_branch
          %659 = sbr.rel (%p657) target = $region88
        $region87: #{_vae_forward.4} parent=79 // pred_region
          %660 = dma.done [#allocation6], 16
        $region88: #{_vae_forward.4} parent=79 // pred_fallthru
          _
        %s661 = sand.u32 %s28, 1
        %s662 = scalar_lea.sflag [#allocation4], %s661
        %s663 = sand.u32 %s116, 1
        %s664 = smul.addr %s663, 192
        %s665 = scalar_lea.vmem [#allocation7], %s664
        // Predicated region
        $region89: #{_vae_forward.4} parent=79 // pred_check
          %p666 = pneg %p129
        $region90: #{_vae_forward.4} parent=79 // pred_check_branch
          %668 = sbr.rel (%p666) target = $region92
        $region91: #{_vae_forward.4} parent=79 // pred_region
          %669 = dma.done %s662, 3072
        $region92: #{_vae_forward.4} parent=79 // pred_fallthru
          _
        %s670 = sand.u32 %s28, 1
        %s671 = scalar_lea.sflag [#allocation4], %s670
        %s672 = sand.u32 %s142, 1
        %s673 = smul.addr %s672, 3
        %s674 = scalar_lea.vmem [#allocation8], %s673
        // Predicated region
        $region93: #{_vae_forward.4} parent=79 // pred_check
          %p675 = pneg %p155
        $region94: #{_vae_forward.4} parent=79 // pred_check_branch
          %677 = sbr.rel (%p675) target = $region96
        $region95: #{_vae_forward.4} parent=79 // pred_region
          %678 = dma.done %s671, 48
        $region96: #{_vae_forward.4} parent=79 // pred_fallthru
          _
        %s679 = sand.u32 %s28, 1
        %s680 = scalar_lea.sflag [#allocation4], %s679
        %s681 = sand.u32 %s168, 1
        %s682 = smul.addr %s681, 64
        %s683 = scalar_lea.vmem [#allocation9], %s682
        // Predicated region
        $region97: #{_vae_forward.4} parent=79 // pred_check
          %p684 = pneg %p181
        $region98: #{_vae_forward.4} parent=79 // pred_check_branch
          %686 = sbr.rel (%p684) target = $region100
        $region99: #{_vae_forward.4} parent=79 // pred_region
          %687 = dma.done %s680, 1024
        $region100: #{_vae_forward.4} parent=79 // pred_fallthru
          _
        %s688 = sand.u32 %s28, 1
        %s689 = scalar_lea.sflag [#allocation4], %s688
        %s690 = sand.u32 %s194, 1
        %s691 = scalar_lea.vmem [#allocation10], %s690
        // Predicated region
        $region101: #{_vae_forward.4} parent=79 // pred_check
          %p692 = pneg %p207
        $region102: #{_vae_forward.4} parent=79 // pred_check_branch
          %694 = sbr.rel (%p692) target = $region104
        $region103: #{_vae_forward.4} parent=79 // pred_region
          %695 = dma.done %s689, 16
        $region104: #{_vae_forward.4} parent=79 // pred_fallthru
          _
        %s696 = sand.u32 %s28, 1
        %s697 = scalar_lea.sflag [#allocation4], %s696
        %s698 = sand.u32 %s220, 1
        %s699 = smul.addr %s698, 1024
        %s700 = scalar_lea.vmem [#allocation11], %s699
        // Predicated region
        $region105: #{_vae_forward.4} parent=79 // pred_check
          %p701 = pneg %p233
        $region106: #{_vae_forward.4} parent=79 // pred_check_branch
          %703 = sbr.rel (%p701) target = $region108
        $region107: #{_vae_forward.4} parent=79 // pred_region
          %704 = dma.done %s697, 16384
        $region108: #{_vae_forward.4} parent=79 // pred_fallthru
          _
        %s705 = sand.u32 %s28, 1
        %s706 = scalar_lea.sflag [#allocation4], %s705
        %s707 = sand.u32 %s272, 1
        %s708 = smul.addr %s707, 1024
        %s709 = scalar_lea.vmem [#allocation12], %s708
        // Predicated region
        $region109: #{_vae_forward.4} parent=79 // pred_check
          %p710 = pneg %p285
        $region110: #{_vae_forward.4} parent=79 // pred_check_branch
          %712 = sbr.rel (%p710) target = $region112
        $region111: #{_vae_forward.4} parent=79 // pred_region
          %713 = dma.done %s706, 16384
        $region112: #{_vae_forward.4} parent=79 // pred_fallthru
          _
        %p714 = scmp.lt.s32.totalorder %s32, 1
        %s715 = scalar_select %p714, %s32, 1
        %s716 = smul.addr %s715, 8
        %s717 = scalar_lea.vmem %s0, %s716
        %p718 = pneg %p61
        %p719 = pneg %p58
        %p720 = pneg %p82
        %p721 = pneg %p79
        %p722 = pneg %p103
        %p723 = pneg %p100
        %s724 = sand.u32 %s28, 1
        %s725 = scalar_lea.sflag [#allocation4], %s724
        %s726 = sand.u32 %s116, 1
        %s727 = smul.addr %s726, 192
        %s728 = scalar_lea.vmem [#allocation7], %s727
        %p729 = pneg %p129
        %p730 = pneg %p126
        %s731 = sand.u32 %s28, 1
        %s732 = scalar_lea.sflag [#allocation4], %s731
        %s733 = sand.u32 %s142, 1
        %s734 = smul.addr %s733, 3
        %s735 = scalar_lea.vmem [#allocation8], %s734
        %p736 = pneg %p155
        %p737 = pneg %p152
        %s738 = sand.u32 %s28, 1
        %s739 = scalar_lea.sflag [#allocation4], %s738
        %s740 = sand.u32 %s168, 1
        %s741 = smul.addr %s740, 64
        %s742 = scalar_lea.vmem [#allocation9], %s741
        %p743 = pneg %p181
        %p744 = pneg %p178
        %s745 = sand.u32 %s28, 1
        %s746 = scalar_lea.sflag [#allocation4], %s745
        %s747 = sand.u32 %s194, 1
        %s748 = scalar_lea.vmem [#allocation10], %s747
        %p749 = pneg %p207
        %p750 = pneg %p204
        %s751 = sand.u32 %s28, 1
        %s752 = scalar_lea.sflag [#allocation4], %s751
        %s753 = sand.u32 %s220, 1
        %s754 = smul.addr %s753, 1024
        %s755 = scalar_lea.vmem [#allocation11], %s754
        %p756 = pneg %p233
        %p757 = pneg %p230
        %p758 = scmp.lt.s32.totalorder %s33, 1
        %s759 = scalar_select %p758, %s33, 1
        %s760 = smul.addr %s759, 16
        %s761 = scalar_lea.vmem %s8, %s760
        %p762 = pneg %p259
        %p763 = pneg %p256
        %s764 = sand.u32 %s28, 1
        %s765 = scalar_lea.sflag [#allocation4], %s764
        %s766 = sand.u32 %s272, 1
        %s767 = smul.addr %s766, 1024
        %s768 = scalar_lea.vmem [#allocation12], %s767
        %p769 = pneg %p285
        %p770 = pneg %p282
        %p771 = scmp.lt.s32.totalorder %s33, 1
        %s772 = scalar_select %p771, %s33, 1
        %s773 = scalar_lea.vmem %s10, %s772
        %p774 = pneg %p311
        %p775 = pneg %p308
        %p776 = scmp.lt.s32.totalorder %s33, 1
        %s777 = scalar_select %p776, %s33, 1
        %s778 = scalar_lea.vmem %s11, %s777
        %p779 = pneg %p337
        %p780 = pneg %p334
        %p781 = scmp.lt.s32.totalorder %s33, 1
        %s782 = scalar_select %p781, %s33, 1
        %s783 = scalar_lea.vmem %s12, %s782
        %p784 = pneg %p363
        %p785 = pneg %p360
        %p786 = scmp.lt.s32.totalorder %s33, 1
        %s787 = scalar_select %p786, %s33, 1
        %s788 = scalar_lea.vmem %s13, %s787
        %p789 = pneg %p389
        %p790 = pneg %p386
        %p791 = scmp.lt.s32.totalorder %s33, 1
        %s792 = scalar_select %p791, %s33, 1
        %s793 = scalar_lea.vmem %s14, %s792
        %p794 = pneg %p415
        %p795 = pneg %p412
        %p796 = pneg %p441
        %p797 = pneg %p438
        %p798 = scmp.lt.s32.totalorder %s32, 1
        %s799 = scalar_select %p798, %s32, 1
        %s800 = scalar_lea.vmem %s15, %s799
        %p801 = scmp.lt.s32.totalorder %s32, 1
        %s802 = scalar_select %p801, %s32, 1
        %s803 = smul.addr %s802, 8
        %s804 = scalar_lea.vmem %s0, %s803
        %p805 = scmp.lt.s32.totalorder %s33, 1
        %s806 = scalar_select %p805, %s33, 1
        %s807 = smul.addr %s806, 16
        %s808 = scalar_lea.vmem %s8, %s807
        %p809 = scmp.lt.s32.totalorder %s33, 1
        %s810 = scalar_select %p809, %s33, 1
        %s811 = scalar_lea.vmem %s10, %s810
        %p812 = scmp.lt.s32.totalorder %s33, 1
        %s813 = scalar_select %p812, %s33, 1
        %s814 = scalar_lea.vmem %s11, %s813
        %p815 = scmp.lt.s32.totalorder %s33, 1
        %s816 = scalar_select %p815, %s33, 1
        %s817 = scalar_lea.vmem %s12, %s816
        %p818 = scmp.lt.s32.totalorder %s33, 1
        %s819 = scalar_select %p818, %s33, 1
        %s820 = scalar_lea.vmem %s13, %s819
        %p821 = scmp.lt.s32.totalorder %s33, 1
        %s822 = scalar_select %p821, %s33, 1
        %s823 = scalar_lea.vmem %s14, %s822
        %p824 = scmp.lt.s32.totalorder %s32, 1
        %s825 = scalar_select %p824, %s32, 1
        %s826 = scalar_lea.vmem %s15, %s825
        %p828 = scmp.eq.s32.totalorder %s33, 0
        // Predicated region
        $region113: #{_vae_forward.4} parent=79 // pred_check
          %p829 = pneg %p828
        $region114: #{_vae_forward.4} parent=79 // pred_check_branch
          %831 = sbr.rel (%p829) target = $region116
        $region115: #{_vae_forward.4} parent=79 // pred_region
          %v832 = vld [vmem:[%s804] sm:$0xff]
          %v833 = vld [vmem:[#allocation3] sm:$0xf]
          %v834 = vpack.c.bf16 %v832, %v832
          %v835 = vld [vmem:[#allocation5] sm:$0x1]
          %v837 = vlaneseq
          %v838 = vshrl.u32 %v837, 7
          %v839 = vsub.s32 0, %v838
          %v840 = vrot.slane %v835, %v839
          %vm842 = vcmask 64512
          %v844 = vsel %vm842, %v834, 0
          %vm846 = vcmask 1043456
          %v848 = vsel %vm846, %v833, 0
          %850 = vmatprep.subr.bf16.mxu0 0
          %851 = vmatpush1.bf16.msra.mxu0 %v848
          %852 = vmatprep.subr.bf16.mxu0 0
          %853 = vmatpush1.bf16.msra.mxu0 0
          %854 = vmatprep.subr.bf16.mxu0 0
          %855 = vmatpush1.bf16.msra.mxu0 0
          %856 = vmatprep.subr.bf16.mxu0 0
          %857 = vmatpush1.bf16.msra.mxu0 0
          %858 = vmatprep.subr.bf16.mxu0 0
          %859 = vmatpush1.bf16.msra.mxu0 0
          %860 = vmatprep.subr.bf16.mxu0 0
          %861 = vmatpush1.bf16.msra.mxu0 0
          %862 = vmatprep.subr.bf16.mxu0 0
          %863 = vmatpush1.bf16.msra.mxu0 0
          %864 = vmatprep.subr.bf16.mxu0 0
          %865 = vmatpush1.bf16.msra.mxu0 0
          %866 = vmatprep.subr.bf16.mxu0 0
          %867 = vmatpush1.bf16.msra.mxu0 0
          %868 = vmatprep.subr.bf16.mxu0 0
          %869 = vmatpush1.bf16.msra.mxu0 0
          %870 = vmatprep.subr.bf16.mxu0 0
          %871 = vmatpush1.bf16.msra.mxu0 0
          %872 = vmatprep.subr.bf16.mxu0 0
          %873 = vmatpush1.bf16.msra.mxu0 0
          %874 = vmatprep.subr.bf16.mxu0 0
          %875 = vmatpush1.bf16.msra.mxu0 0
          %876 = vmatprep.subr.bf16.mxu0 0
          %877 = vmatpush1.bf16.msra.mxu0 0
          %878 = vmatprep.subr.bf16.mxu0 0
          %879 = vmatpush1.bf16.msra.mxu0 0
          %880 = vmatprep.subr.bf16.mxu0 0
          %881 = vmatpush1.bf16.msra.mxu0 0
          %882 = vmatprep.mubr.bf16.mxu0 0
          %883 = vmatmul.mubr.bf16.gmra.mrb[0].mxu0 %v844
          %v884 = vpop.f32.mrb[0].mxu0
          %v885 = vadd.f32 %v840, %v884
          %v886 = vpop.f32.mrb[0].mxu0
          %v887 = vpop.f32.mrb[0].mxu0
          %v888 = vpop.f32.mrb[0].mxu0
          %889 = vdwg.mxu0
          %890 = vst [vmem:[#allocation2] sm:$0xff] %v885
        $region116: #{_vae_forward.4} parent=79 // pred_fallthru
          _
        %v891 = vld [vmem:[#allocation2] sm:$0xff]
        %v892 = vld [vmem:[%s665] sm:$0xff]
        %v893 = vld [vmem:[%s665 + $0x8] sm:$0xf]
        %v894 = vld [vmem:[%s665 + $0xc] sm:$0xff]
        %v895 = vld [vmem:[%s665 + $0x14] sm:$0xf]
        %v896 = vld [vmem:[%s665 + $0x18] sm:$0xff]
        %v897 = vld [vmem:[%s665 + $0x20] sm:$0xf]
        %v898 = vld [vmem:[%s665 + $0x24] sm:$0xff]
        %v899 = vld [vmem:[%s665 + $0x2c] sm:$0xf]
        %v900 = vld [vmem:[%s665 + $0x30] sm:$0xff]
        %v901 = vld [vmem:[%s665 + $0x38] sm:$0xf]
        %v902 = vld [vmem:[%s665 + $0x3c] sm:$0xff]
        %v903 = vld [vmem:[%s665 + $0x44] sm:$0xf]
        %v904 = vld [vmem:[%s665 + $0x48] sm:$0xff]
        %v905 = vld [vmem:[%s665 + $0x50] sm:$0xf]
        %v906 = vld [vmem:[%s665 + $0x54] sm:$0xff]
        %v907 = vld [vmem:[%s665 + $0x5c] sm:$0xf]
        %v908 = vld [vmem:[%s665 + $0x60] sm:$0xff]
        %v909 = vld [vmem:[%s665 + $0x68] sm:$0xf]
        %v910 = vld [vmem:[%s665 + $0x6c] sm:$0xff]
        %v911 = vld [vmem:[%s665 + $0x74] sm:$0xf]
        %v912 = vld [vmem:[%s665 + $0x78] sm:$0xff]
        %v913 = vld [vmem:[%s665 + $0x80] sm:$0xf]
        %v914 = vld [vmem:[%s665 + $0x84] sm:$0xff]
        %v915 = vld [vmem:[%s665 + $0x8c] sm:$0xf]
        %v916 = vld [vmem:[%s665 + $0x90] sm:$0xff]
        %v917 = vld [vmem:[%s665 + $0x98] sm:$0xf]
        %v918 = vld [vmem:[%s665 + $0x9c] sm:$0xff]
        %v919 = vld [vmem:[%s665 + $0xa4] sm:$0xf]
        %v920 = vld [vmem:[%s665 + $0xa8] sm:$0xff]
        %v921 = vld [vmem:[%s665 + $0xb0] sm:$0xf]
        %v922 = vld [vmem:[%s665 + $0xb4] sm:$0xff]
        %v923 = vld [vmem:[%s665 + $0xbc] sm:$0xf]
        %v924 = vpack.c.bf16 %v891, %v891
        %v925 = vld [vmem:[%s674] sm:$0x7]
        %v927 = vlaneseq
        %v928 = vshrl.u32 %v927, 7
        %v929 = vsub.s32 0, %v928
        %v930 = vrot.slane %v925, %v929
        %v931 = vlaneseq
        %v932 = vshrl.u32 %v931, 7
        %v933 = vsub.s32 1, %v932
        %v934 = vrot.slane %v925, %v933
        %v935 = vlaneseq
        %v936 = vshrl.u32 %v935, 7
        %v937 = vsub.s32 2, %v936
        %v938 = vrot.slane %v925, %v937
        %v974 = vunpack.c.l.b16 %v892
        %v975 = vunpack.c.h.b16 %v892
        %v976 = vunpack.c.l.b16 %v893
        %v977 = vunpack.c.l.b16 %v894
        %v978 = vunpack.c.h.b16 %v894
        %v979 = vunpack.c.l.b16 %v895
        %v980 = vunpack.c.l.b16 %v896
        %v981 = vunpack.c.h.b16 %v896
        %v982 = vunpack.c.l.b16 %v897
        %v983 = vunpack.c.l.b16 %v898
        %v984 = vunpack.c.h.b16 %v898
        %v985 = vunpack.c.l.b16 %v899
        %v986 = vunpack.c.l.b16 %v900
        %v987 = vunpack.c.h.b16 %v900
        %v988 = vunpack.c.l.b16 %v901
        %v989 = vunpack.c.l.b16 %v902
        %v990 = vunpack.c.h.b16 %v902
        %v991 = vunpack.c.l.b16 %v903
        %v992 = vunpack.c.l.b16 %v904
        %v993 = vunpack.c.h.b16 %v904
        %v994 = vunpack.c.l.b16 %v905
        %v995 = vunpack.c.l.b16 %v906
        %v996 = vunpack.c.h.b16 %v906
        %v997 = vunpack.c.l.b16 %v907
        %v998 = vunpack.c.l.b16 %v908
        %v999 = vunpack.c.h.b16 %v908
        %v1000 = vunpack.c.l.b16 %v909
        %v1001 = vunpack.c.l.b16 %v910
        %v1002 = vunpack.c.h.b16 %v910
        %v1003 = vunpack.c.l.b16 %v911
        %v1004 = vunpack.c.l.b16 %v912
        %v1005 = vunpack.c.h.b16 %v912
        %v1006 = vunpack.c.l.b16 %v913
        %v1007 = vunpack.c.l.b16 %v914
        %v1008 = vunpack.c.h.b16 %v914
        %v1009 = vunpack.c.l.b16 %v915
        %v1010 = vunpack.c.l.b16 %v916
        %v1011 = vunpack.c.h.b16 %v916
        %v1012 = vunpack.c.l.b16 %v917
        %v1013 = vunpack.c.l.b16 %v918
        %v1014 = vunpack.c.h.b16 %v918
        %v1015 = vunpack.c.l.b16 %v919
        %v1016 = vunpack.c.l.b16 %v920
        %v1017 = vunpack.c.h.b16 %v920
        %v1018 = vunpack.c.l.b16 %v921
        %v1019 = vunpack.c.l.b16 %v922
        %v1020 = vunpack.c.h.b16 %v922
        %v1021 = vunpack.c.l.b16 %v923
        %v1022 = vpack.c.b16 %v977, %v974
        %v1023 = vpack.c.b16 %v978, %v975
        %v1024 = vpack.c.b16 %v979, %v976
        %v1025 = vpack.c.b16 %v983, %v980
        %v1026 = vpack.c.b16 %v984, %v981
        %v1027 = vpack.c.b16 %v985, %v982
        %v1028 = vpack.c.b16 %v989, %v986
        %v1029 = vpack.c.b16 %v990, %v987
        %v1030 = vpack.c.b16 %v991, %v988
        %v1031 = vpack.c.b16 %v995, %v992
        %v1032 = vpack.c.b16 %v996, %v993
        %v1033 = vpack.c.b16 %v997, %v994
        %v1034 = vpack.c.b16 %v1001, %v998
        %v1035 = vpack.c.b16 %v1002, %v999
        %v1036 = vpack.c.b16 %v1003, %v1000
        %v1037 = vpack.c.b16 %v1007, %v1004
        %v1038 = vpack.c.b16 %v1008, %v1005
        %v1039 = vpack.c.b16 %v1009, %v1006
        %v1040 = vpack.c.b16 %v1013, %v1010
        %v1041 = vpack.c.b16 %v1014, %v1011
        %v1042 = vpack.c.b16 %v1015, %v1012
        %v1043 = vpack.c.b16 %v1019, %v1016
        %v1044 = vpack.c.b16 %v1020, %v1017
        %v1045 = vpack.c.b16 %v1021, %v1018
        %1070 = vmatprep.subr.bf16.mxu0 %v1023
        %1071 = vmatpush1.bf16.msra.mxu0 %v1022
        %1072 = vmatprep.subr.bf16.mxu0 %v1026
        %1073 = vmatpush1.bf16.msra.mxu0 %v1025
        %1074 = vmatprep.subr.bf16.mxu0 %v1029
        %1075 = vmatpush1.bf16.msra.mxu0 %v1028
        %1076 = vmatprep.subr.bf16.mxu0 %v1032
        %1077 = vmatpush1.bf16.msra.mxu0 %v1031
        %1078 = vmatprep.subr.bf16.mxu0 %v1035
        %1079 = vmatpush1.bf16.msra.mxu0 %v1034
        %1080 = vmatprep.subr.bf16.mxu0 %v1038
        %1081 = vmatpush1.bf16.msra.mxu0 %v1037
        %1082 = vmatprep.subr.bf16.mxu0 %v1041
        %1083 = vmatpush1.bf16.msra.mxu0 %v1040
        %1084 = vmatprep.subr.bf16.mxu0 %v1044
        %1085 = vmatpush1.bf16.msra.mxu0 %v1043
        %1086 = vmatprep.subr.bf16.mxu0 0
        %1087 = vmatpush1.bf16.msra.mxu0 0
        %1088 = vmatprep.subr.bf16.mxu0 0
        %1089 = vmatpush1.bf16.msra.mxu0 0
        %1090 = vmatprep.subr.bf16.mxu0 0
        %1091 = vmatpush1.bf16.msra.mxu0 0
        %1092 = vmatprep.subr.bf16.mxu0 0
        %1093 = vmatpush1.bf16.msra.mxu0 0
        %1094 = vmatprep.subr.bf16.mxu0 0
        %1095 = vmatpush1.bf16.msra.mxu0 0
        %1096 = vmatprep.subr.bf16.mxu0 0
        %1097 = vmatpush1.bf16.msra.mxu0 0
        %1098 = vmatprep.subr.bf16.mxu0 0
        %1099 = vmatpush1.bf16.msra.mxu0 0
        %1100 = vmatprep.subr.bf16.mxu0 0
        %1101 = vmatpush1.bf16.msra.mxu0 0
        %1102 = vmatprep.mubr.bf16.mxu0 0
        %1103 = vmatmul.mubr.bf16.gmra.mrb[0].mxu0 %v924
        %v1104 = vpop.f32.mrb[0].mxu0
        %v1105 = vadd.f32 %v930, %v1104
        %v1106 = vpop.f32.mrb[0].mxu0
        %v1107 = vadd.f32 %v934, %v1106
        %v1108 = vpop.f32.mrb[0].mxu0
        %v1109 = vpop.f32.mrb[0].mxu0
        %1110 = vdwg.mxu0
        %1111 = vmatprep.subr.bf16.mxu0 0
        %1112 = vmatpush1.bf16.msra.mxu0 %v1024
        %1113 = vmatprep.subr.bf16.mxu0 0
        %1114 = vmatpush1.bf16.msra.mxu0 %v1027
        %1115 = vmatprep.subr.bf16.mxu0 0
        %1116 = vmatpush1.bf16.msra.mxu0 %v1030
        %1117 = vmatprep.subr.bf16.mxu0 0
        %1118 = vmatpush1.bf16.msra.mxu0 %v1033
        %1119 = vmatprep.subr.bf16.mxu0 0
        %1120 = vmatpush1.bf16.msra.mxu0 %v1036
        %1121 = vmatprep.subr.bf16.mxu0 0
        %1122 = vmatpush1.bf16.msra.mxu0 %v1039
        %1123 = vmatprep.subr.bf16.mxu0 0
        %1124 = vmatpush1.bf16.msra.mxu0 %v1042
        %1125 = vmatprep.subr.bf16.mxu0 0
        %1126 = vmatpush1.bf16.msra.mxu0 %v1045
        %1127 = vmatprep.subr.bf16.mxu0 0
        %1128 = vmatpush1.bf16.msra.mxu0 0
        %1129 = vmatprep.subr.bf16.mxu0 0
        %1130 = vmatpush1.bf16.msra.mxu0 0
        %1131 = vmatprep.subr.bf16.mxu0 0
        %1132 = vmatpush1.bf16.msra.mxu0 0
        %1133 = vmatprep.subr.bf16.mxu0 0
        %1134 = vmatpush1.bf16.msra.mxu0 0
        %1135 = vmatprep.subr.bf16.mxu0 0
        %1136 = vmatpush1.bf16.msra.mxu0 0
        %1137 = vmatprep.subr.bf16.mxu0 0
        %1138 = vmatpush1.bf16.msra.mxu0 0
        %1139 = vmatprep.subr.bf16.mxu0 0
        %1140 = vmatpush1.bf16.msra.mxu0 0
        %1141 = vmatprep.subr.bf16.mxu0 0
        %1142 = vmatpush1.bf16.msra.mxu0 0
        %1143 = vmatprep.mubr.bf16.mxu0 0
        %1144 = vmatmul.mubr.bf16.gmra.mrb[0].mxu0 %v924
        %v1145 = vpop.f32.mrb[0].mxu0
        %v1146 = vadd.f32 %v938, %v1145
        %v1147 = vpop.f32.mrb[0].mxu0
        %v1148 = vpop.f32.mrb[0].mxu0
        %v1149 = vpop.f32.mrb[0].mxu0
        %1150 = vdwg.mxu0
        %v1151 = vpack.c.bf16 %v1105, %v1105
        %v1152 = vpack.c.bf16 %v1107, %v1107
        %v1153 = vpack.c.bf16 %v1146, %v1146
        %vm1154 = vcmask 261120
        %v1156 = vsel %vm1154, %v1151, 0
        %v1159 = vsel %vm1154, %v1152, 0
        %1161 = vmatprep.subr.bf16.mxu0 0
        %1162 = vmatpush1.bf16.xpose.msra.mxu0 %v1159
        %1163 = vmatprep.subr.bf16.mxu0 0
        %1164 = vmatpush1.bf16.xpose.msra.mxu0 0
        %1165 = vmatprep.subr.bf16.mxu0 0
        %1166 = vmatpush1.bf16.xpose.msra.mxu0 0
        %1167 = vmatprep.subr.bf16.mxu0 0
        %1168 = vmatpush1.bf16.xpose.msra.mxu0 0
        %1169 = vmatprep.subr.bf16.mxu0 0
        %1170 = vmatpush1.bf16.xpose.msra.mxu0 0
        %1171 = vmatprep.subr.bf16.mxu0 0
        %1172 = vmatpush1.bf16.xpose.msra.mxu0 0
        %1173 = vmatprep.subr.bf16.mxu0 0
        %1174 = vmatpush1.bf16.xpose.msra.mxu0 0
        %1175 = vmatprep.subr.bf16.mxu0 0
        %1176 = vmatpush1.bf16.xpose.msra.mxu0 0
        %1177 = vmatprep.subr.bf16.mxu0 0
        %1178 = vmatpush1.bf16.xpose.msra.mxu0 0
        %1179 = vmatprep.subr.bf16.mxu0 0
        %1180 = vmatpush1.bf16.xpose.msra.mxu0 0
        %1181 = vmatprep.subr.bf16.mxu0 0
        %1182 = vmatpush1.bf16.xpose.msra.mxu0 0
        %1183 = vmatprep.subr.bf16.mxu0 0
        %1184 = vmatpush1.bf16.xpose.msra.mxu0 0
        %1185 = vmatprep.subr.bf16.mxu0 0
        %1186 = vmatpush1.bf16.xpose.msra.mxu0 0
        %1187 = vmatprep.subr.bf16.mxu0 0
        %1188 = vmatpush1.bf16.xpose.msra.mxu0 0
        %1189 = vmatprep.subr.bf16.mxu0 0
        %1190 = vmatpush1.bf16.xpose.msra.mxu0 0
        %1191 = vmatprep.subr.bf16.mxu0 0
        %1192 = vmatpush1.bf16.xpose.msra.mxu0 0
        %1193 = vmatprep.mubr.bf16.mxu0 0
        %1194 = vmatmul.mubr.bf16.gmra.mrb[0].mxu0 %v1156
        %v1195 = vpop.f32.mrb[0].mxu0
        %v1196 = vadd.f32 0.0, %v1195
        %v1197 = vpop.f32.mrb[0].mxu0
        %v1198 = vpop.f32.mrb[0].mxu0
        %v1199 = vpop.f32.mrb[0].mxu0
        %1200 = vdwg.mxu0
        %v1201 = vmul.f32 %v1196, 0.17677669
        %vm1202 = vcmask 64512
        %v1203 = vsel %vm1202, %v1201, -inf
        %1204 = vmax.xlane.f32.xlu0 %v1203
        %v1205 = vpop.xlane.xlu0 %1204
        %v1206 = vsub.f32 %v1201, %v1205
        %v1207 = vmul.f32 %v1206, 1.442695
        %v1208 = vpow.pop %v1207
        %v1209 = vsel %vm1202, %v1208, 0.0
        %1210 = vadd.xlane.f32.xlu0 %v1209
        %v1211 = vpop.xlane.xlu0 %1210
        %v1212 = vrcp.pop %v1211
        %v1213 = vmul.f32 %v1208, %v1212
        %v1214 = vpack.c.bf16 %v1213, %v1213
        %v1216 = vsel %vm1202, %v1214, 0
        %vm1218 = vcmask 1043456
        %v1220 = vsel %vm1218, %v1153, 0
        %1222 = vmatprep.subr.bf16.mxu0 0
        %1223 = vmatpush1.bf16.msra.mxu0 %v1220
        %1224 = vmatprep.subr.bf16.mxu0 0
        %1225 = vmatpush1.bf16.msra.mxu0 0
        %1226 = vmatprep.subr.bf16.mxu0 0
        %1227 = vmatpush1.bf16.msra.mxu0 0
        %1228 = vmatprep.subr.bf16.mxu0 0
        %1229 = vmatpush1.bf16.msra.mxu0 0
        %1230 = vmatprep.subr.bf16.mxu0 0
        %1231 = vmatpush1.bf16.msra.mxu0 0
        %1232 = vmatprep.subr.bf16.mxu0 0
        %1233 = vmatpush1.bf16.msra.mxu0 0
        %1234 = vmatprep.subr.bf16.mxu0 0
        %1235 = vmatpush1.bf16.msra.mxu0 0
        %1236 = vmatprep.subr.bf16.mxu0 0
        %1237 = vmatpush1.bf16.msra.mxu0 0
        %1238 = vmatprep.subr.bf16.mxu0 0
        %1239 = vmatpush1.bf16.msra.mxu0 0
        %1240 = vmatprep.subr.bf16.mxu0 0
        %1241 = vmatpush1.bf16.msra.mxu0 0
        %1242 = vmatprep.subr.bf16.mxu0 0
        %1243 = vmatpush1.bf16.msra.mxu0 0
        %1244 = vmatprep.subr.bf16.mxu0 0
        %1245 = vmatpush1.bf16.msra.mxu0 0
        %1246 = vmatprep.subr.bf16.mxu0 0
        %1247 = vmatpush1.bf16.msra.mxu0 0
        %1248 = vmatprep.subr.bf16.mxu0 0
        %1249 = vmatpush1.bf16.msra.mxu0 0
        %1250 = vmatprep.subr.bf16.mxu0 0
        %1251 = vmatpush1.bf16.msra.mxu0 0
        %1252 = vmatprep.subr.bf16.mxu0 0
        %1253 = vmatpush1.bf16.msra.mxu0 0
        %1254 = vmatprep.mubr.bf16.mxu0 0
        %1255 = vmatmul.mubr.bf16.gmra.mrb[0].mxu0 %v1216
        %v1256 = vpop.f32.mrb[0].mxu0
        %v1257 = vadd.f32 0.0, %v1256
        %v1258 = vpop.f32.mrb[0].mxu0
        %v1259 = vpop.f32.mrb[0].mxu0
        %v1260 = vpop.f32.mrb[0].mxu0
        %1261 = vdwg.mxu0
        %v1262 = vld [vmem:[%s683] sm:$0xf]
        %v1263 = vld [vmem:[%s683 + $0x4] sm:$0xf]
        %v1264 = vld [vmem:[%s683 + $0x8] sm:$0xf]
        %v1265 = vld [vmem:[%s683 + $0xc] sm:$0xf]
        %v1266 = vpack.c.bf16 %v1257, %v1257
        %1268 = vrot.lane.b32.xlu0 %v1151, 96
        %v1269 = vpop.permute.xlu0 %1268
        %1271 = vrot.lane.b32.xlu0 %v1152, 96
        %v1272 = vpop.permute.xlu0 %1271
        %v1274 = vsel %vm1154, %v1269, 0
        %v1277 = vsel %vm1154, %v1272, 0
        %1279 = vmatprep.subr.bf16.mxu0 0
        %1280 = vmatpush1.bf16.xpose.msra.mxu0 %v1277
        %1281 = vmatprep.subr.bf16.mxu0 0
        %1282 = vmatpush1.bf16.xpose.msra.mxu0 0
        %1283 = vmatprep.subr.bf16.mxu0 0
        %1284 = vmatpush1.bf16.xpose.msra.mxu0 0
        %1285 = vmatprep.subr.bf16.mxu0 0
        %1286 = vmatpush1.bf16.xpose.msra.mxu0 0
        %1287 = vmatprep.subr.bf16.mxu0 0
        %1288 = vmatpush1.bf16.xpose.msra.mxu0 0
        %1289 = vmatprep.subr.bf16.mxu0 0
        %1290 = vmatpush1.bf16.xpose.msra.mxu0 0
        %1291 = vmatprep.subr.bf16.mxu0 0
        %1292 = vmatpush1.bf16.xpose.msra.mxu0 0
        %1293 = vmatprep.subr.bf16.mxu0 0
        %1294 = vmatpush1.bf16.xpose.msra.mxu0 0
        %1295 = vmatprep.subr.bf16.mxu0 0
        %1296 = vmatpush1.bf16.xpose.msra.mxu0 0
        %1297 = vmatprep.subr.bf16.mxu0 0
        %1298 = vmatpush1.bf16.xpose.msra.mxu0 0
        %1299 = vmatprep.subr.bf16.mxu0 0
        %1300 = vmatpush1.bf16.xpose.msra.mxu0 0
        %1301 = vmatprep.subr.bf16.mxu0 0
        %1302 = vmatpush1.bf16.xpose.msra.mxu0 0
        %1303 = vmatprep.subr.bf16.mxu0 0
        %1304 = vmatpush1.bf16.xpose.msra.mxu0 0
        %1305 = vmatprep.subr.bf16.mxu0 0
        %1306 = vmatpush1.bf16.xpose.msra.mxu0 0
        %1307 = vmatprep.subr.bf16.mxu0 0
        %1308 = vmatpush1.bf16.xpose.msra.mxu0 0
        %1309 = vmatprep.subr.bf16.mxu0 0
        %1310 = vmatpush1.bf16.xpose.msra.mxu0 0
        %1311 = vmatprep.mubr.bf16.mxu0 0
        %1312 = vmatmul.mubr.bf16.gmra.mrb[0].mxu0 %v1274
        %v1313 = vpop.f32.mrb[0].mxu0
        %v1314 = vadd.f32 0.0, %v1313
        %v1315 = vpop.f32.mrb[0].mxu0
        %v1316 = vpop.f32.mrb[0].mxu0
        %v1317 = vpop.f32.mrb[0].mxu0
        %1318 = vdwg.mxu0
        %v1319 = vmul.f32 %v1314, 0.17677669
        %v1320 = vsel %vm1202, %v1319, -inf
        %1321 = vmax.xlane.f32.xlu0 %v1320
        %v1322 = vpop.xlane.xlu0 %1321
        %v1323 = vsub.f32 %v1319, %v1322
        %v1324 = vmul.f32 %v1323, 1.442695
        %v1325 = vpow.pop %v1324
        %v1326 = vsel %vm1202, %v1325, 0.0
        %1327 = vadd.xlane.f32.xlu0 %v1326
        %v1328 = vpop.xlane.xlu0 %1327
        %v1329 = vrcp.pop %v1328
        %v1330 = vmul.f32 %v1325, %v1329
        %v1331 = vpack.c.bf16 %v1330, %v1330
        %1333 = vrot.lane.b32.xlu0 %v1153, 96
        %v1334 = vpop.permute.xlu0 %1333
        %v1336 = vsel %vm1202, %v1331, 0
        %v1339 = vsel %vm1218, %v1334, 0
        %1341 = vmatprep.subr.bf16.mxu0 0
        %1342 = vmatpush1.bf16.msra.mxu0 %v1339
        %1343 = vmatprep.subr.bf16.mxu0 0
        %1344 = vmatpush1.bf16.msra.mxu0 0
        %1345 = vmatprep.subr.bf16.mxu0 0
        %1346 = vmatpush1.bf16.msra.mxu0 0
        %1347 = vmatprep.subr.bf16.mxu0 0
        %1348 = vmatpush1.bf16.msra.mxu0 0
        %1349 = vmatprep.subr.bf16.mxu0 0
        %1350 = vmatpush1.bf16.msra.mxu0 0
        %1351 = vmatprep.subr.bf16.mxu0 0
        %1352 = vmatpush1.bf16.msra.mxu0 0
        %1353 = vmatprep.subr.bf16.mxu0 0
        %1354 = vmatpush1.bf16.msra.mxu0 0
        %1355 = vmatprep.subr.bf16.mxu0 0
        %1356 = vmatpush1.bf16.msra.mxu0 0
        %1357 = vmatprep.subr.bf16.mxu0 0
        %1358 = vmatpush1.bf16.msra.mxu0 0
        %1359 = vmatprep.subr.bf16.mxu0 0
        %1360 = vmatpush1.bf16.msra.mxu0 0
        %1361 = vmatprep.subr.bf16.mxu0 0
        %1362 = vmatpush1.bf16.msra.mxu0 0
        %1363 = vmatprep.subr.bf16.mxu0 0
        %1364 = vmatpush1.bf16.msra.mxu0 0
        %1365 = vmatprep.subr.bf16.mxu0 0
        %1366 = vmatpush1.bf16.msra.mxu0 0
        %1367 = vmatprep.subr.bf16.mxu0 0
        %1368 = vmatpush1.bf16.msra.mxu0 0
        %1369 = vmatprep.subr.bf16.mxu0 0
        %1370 = vmatpush1.bf16.msra.mxu0 0
        %1371 = vmatprep.subr.bf16.mxu0 0
        %1372 = vmatpush1.bf16.msra.mxu0 0
        %1373 = vmatprep.mubr.bf16.mxu0 0
        %1374 = vmatmul.mubr.bf16.gmra.mrb[0].mxu0 %v1336
        %v1375 = vpop.f32.mrb[0].mxu0
        %v1376 = vadd.f32 0.0, %v1375
        %v1377 = vpop.f32.mrb[0].mxu0
        %v1378 = vpop.f32.mrb[0].mxu0
        %v1379 = vpop.f32.mrb[0].mxu0
        %1380 = vdwg.mxu0
        %v1381 = vld [vmem:[%s683 + $0x10] sm:$0xf]
        %v1382 = vld [vmem:[%s683 + $0x14] sm:$0xf]
        %v1383 = vld [vmem:[%s683 + $0x18] sm:$0xf]
        %v1384 = vld [vmem:[%s683 + $0x1c] sm:$0xf]
        %v1385 = vpack.c.bf16 %v1376, %v1376
        %v1390 = vunpack.c.l.b16 %v1381
        %v1391 = vunpack.c.l.b16 %v1382
        %v1392 = vunpack.c.l.b16 %v1383
        %v1393 = vunpack.c.l.b16 %v1384
        %v1394 = vpack.c.b16 %v1391, %v1390
        %v1395 = vpack.c.b16 %v1393, %v1392
        %v1399 = vsel %vm1154, %v1385, 0
        %1401 = vmatprep.subr.bf16.mxu0 0
        %1402 = vmatpush1.bf16.msra.mxu0 %v1394
        %1403 = vmatprep.subr.bf16.mxu0 0
        %1404 = vmatpush1.bf16.msra.mxu0 %v1395
        %1405 = vmatprep.subr.bf16.mxu0 0
        %1406 = vmatpush1.bf16.msra.mxu0 0
        %1407 = vmatprep.subr.bf16.mxu0 0
        %1408 = vmatpush1.bf16.msra.mxu0 0
        %1409 = vmatprep.subr.bf16.mxu0 0
        %1410 = vmatpush1.bf16.msra.mxu0 0
        %1411 = vmatprep.subr.bf16.mxu0 0
        %1412 = vmatpush1.bf16.msra.mxu0 0
        %1413 = vmatprep.subr.bf16.mxu0 0
        %1414 = vmatpush1.bf16.msra.mxu0 0
        %1415 = vmatprep.subr.bf16.mxu0 0
        %1416 = vmatpush1.bf16.msra.mxu0 0
        %1417 = vmatprep.subr.bf16.mxu0 0
        %1418 = vmatpush1.bf16.msra.mxu0 0
        %1419 = vmatprep.subr.bf16.mxu0 0
        %1420 = vmatpush1.bf16.msra.mxu0 0
        %1421 = vmatprep.subr.bf16.mxu0 0
        %1422 = vmatpush1.bf16.msra.mxu0 0
        %1423 = vmatprep.subr.bf16.mxu0 0
        %1424 = vmatpush1.bf16.msra.mxu0 0
        %1425 = vmatprep.subr.bf16.mxu0 0
        %1426 = vmatpush1.bf16.msra.mxu0 0
        %1427 = vmatprep.subr.bf16.mxu0 0
        %1428 = vmatpush1.bf16.msra.mxu0 0
        %1429 = vmatprep.subr.bf16.mxu0 0
        %1430 = vmatpush1.bf16.msra.mxu0 0
        %1431 = vmatprep.subr.bf16.mxu0 0
        %1432 = vmatpush1.bf16.msra.mxu0 0
        %1433 = vmatprep.mubr.bf16.mxu0 0
        %1434 = vmatmul.mubr.bf16.gmra.mrb[0].mxu0 %v1399
        %v1435 = vpop.f32.mrb[0].mxu0
        %v1436 = vadd.f32 0.0, %v1435
        %v1437 = vpop.f32.mrb[0].mxu0
        %v1438 = vpop.f32.mrb[0].mxu0
        %v1439 = vpop.f32.mrb[0].mxu0
        %1440 = vdwg.mxu0
        %v1445 = vunpack.c.l.b16 %v1262
        %v1446 = vunpack.c.l.b16 %v1263
        %v1447 = vunpack.c.l.b16 %v1264
        %v1448 = vunpack.c.l.b16 %v1265
        %v1449 = vpack.c.b16 %v1446, %v1445
        %v1450 = vpack.c.b16 %v1448, %v1447
        %v1454 = vsel %vm1154, %v1266, 0
        %1456 = vmatprep.subr.bf16.mxu0 0
        %1457 = vmatpush1.bf16.msra.mxu0 %v1449
        %1458 = vmatprep.subr.bf16.mxu0 0
        %1459 = vmatpush1.bf16.msra.mxu0 %v1450
        %1460 = vmatprep.subr.bf16.mxu0 0
        %1461 = vmatpush1.bf16.msra.mxu0 0
        %1462 = vmatprep.subr.bf16.mxu0 0
        %1463 = vmatpush1.bf16.msra.mxu0 0
        %1464 = vmatprep.subr.bf16.mxu0 0
        %1465 = vmatpush1.bf16.msra.mxu0 0
        %1466 = vmatprep.subr.bf16.mxu0 0
        %1467 = vmatpush1.bf16.msra.mxu0 0
        %1468 = vmatprep.subr.bf16.mxu0 0
        %1469 = vmatpush1.bf16.msra.mxu0 0
        %1470 = vmatprep.subr.bf16.mxu0 0
        %1471 = vmatpush1.bf16.msra.mxu0 0
        %1472 = vmatprep.subr.bf16.mxu0 0
        %1473 = vmatpush1.bf16.msra.mxu0 0
        %1474 = vmatprep.subr.bf16.mxu0 0
        %1475 = vmatpush1.bf16.msra.mxu0 0
        %1476 = vmatprep.subr.bf16.mxu0 0
        %1477 = vmatpush1.bf16.msra.mxu0 0
        %1478 = vmatprep.subr.bf16.mxu0 0
        %1479 = vmatpush1.bf16.msra.mxu0 0
        %1480 = vmatprep.subr.bf16.mxu0 0
        %1481 = vmatpush1.bf16.msra.mxu0 0
        %1482 = vmatprep.subr.bf16.mxu0 0
        %1483 = vmatpush1.bf16.msra.mxu0 0
        %1484 = vmatprep.subr.bf16.mxu0 0
        %1485 = vmatpush1.bf16.msra.mxu0 0
        %1486 = vmatprep.subr.bf16.mxu0 0
        %1487 = vmatpush1.bf16.msra.mxu0 0
        %1488 = vmatprep.mubr.bf16.mxu0 0
        %1489 = vmatmul.mubr.bf16.gmra.mrb[0].mxu0 %v1454
        %v1490 = vpop.f32.mrb[0].mxu0
        %v1491 = vadd.f32 %v1436, %v1490
        %v1492 = vpop.f32.mrb[0].mxu0
        %v1493 = vpop.f32.mrb[0].mxu0
        %v1494 = vpop.f32.mrb[0].mxu0
        %1495 = vdwg.mxu0
        %1496 = vrot.lane.b32.xlu0 %v1151, 64
        %v1497 = vpop.permute.xlu0 %1496
        %1498 = vrot.lane.b32.xlu0 %v1152, 64
        %v1499 = vpop.permute.xlu0 %1498
        %v1501 = vsel %vm1154, %v1497, 0
        %v1504 = vsel %vm1154, %v1499, 0
        %1506 = vmatprep.subr.bf16.mxu0 0
        %1507 = vmatpush1.bf16.xpose.msra.mxu0 %v1504
        %1508 = vmatprep.subr.bf16.mxu0 0
        %1509 = vmatpush1.bf16.xpose.msra.mxu0 0
        %1510 = vmatprep.subr.bf16.mxu0 0
        %1511 = vmatpush1.bf16.xpose.msra.mxu0 0
        %1512 = vmatprep.subr.bf16.mxu0 0
        %1513 = vmatpush1.bf16.xpose.msra.mxu0 0
        %1514 = vmatprep.subr.bf16.mxu0 0
        %1515 = vmatpush1.bf16.xpose.msra.mxu0 0
        %1516 = vmatprep.subr.bf16.mxu0 0
        %1517 = vmatpush1.bf16.xpose.msra.mxu0 0
        %1518 = vmatprep.subr.bf16.mxu0 0
        %1519 = vmatpush1.bf16.xpose.msra.mxu0 0
        %1520 = vmatprep.subr.bf16.mxu0 0
        %1521 = vmatpush1.bf16.xpose.msra.mxu0 0
        %1522 = vmatprep.subr.bf16.mxu0 0
        %1523 = vmatpush1.bf16.xpose.msra.mxu0 0
        %1524 = vmatprep.subr.bf16.mxu0 0
        %1525 = vmatpush1.bf16.xpose.msra.mxu0 0
        %1526 = vmatprep.subr.bf16.mxu0 0
        %1527 = vmatpush1.bf16.xpose.msra.mxu0 0
        %1528 = vmatprep.subr.bf16.mxu0 0
        %1529 = vmatpush1.bf16.xpose.msra.mxu0 0
        %1530 = vmatprep.subr.bf16.mxu0 0
        %1531 = vmatpush1.bf16.xpose.msra.mxu0 0
        %1532 = vmatprep.subr.bf16.mxu0 0
        %1533 = vmatpush1.bf16.xpose.msra.mxu0 0
        %1534 = vmatprep.subr.bf16.mxu0 0
        %1535 = vmatpush1.bf16.xpose.msra.mxu0 0
        %1536 = vmatprep.subr.bf16.mxu0 0
        %1537 = vmatpush1.bf16.xpose.msra.mxu0 0
        %1538 = vmatprep.mubr.bf16.mxu0 0
        %1539 = vmatmul.mubr.bf16.gmra.mrb[0].mxu0 %v1501
        %v1540 = vpop.f32.mrb[0].mxu0
        %v1541 = vadd.f32 0.0, %v1540
        %v1542 = vpop.f32.mrb[0].mxu0
        %v1543 = vpop.f32.mrb[0].mxu0
        %v1544 = vpop.f32.mrb[0].mxu0
        %1545 = vdwg.mxu0
        %v1546 = vmul.f32 %v1541, 0.17677669
        %v1547 = vsel %vm1202, %v1546, -inf
        %1548 = vmax.xlane.f32.xlu0 %v1547
        %v1549 = vpop.xlane.xlu0 %1548
        %v1550 = vsub.f32 %v1546, %v1549
        %v1551 = vmul.f32 %v1550, 1.442695
        %v1552 = vpow.pop %v1551
        %v1553 = vsel %vm1202, %v1552, 0.0
        %1554 = vadd.xlane.f32.xlu0 %v1553
        %v1555 = vpop.xlane.xlu0 %1554
        %v1556 = vrcp.pop %v1555
        %v1557 = vmul.f32 %v1552, %v1556
        %v1558 = vpack.c.bf16 %v1557, %v1557
        %1559 = vrot.lane.b32.xlu0 %v1153, 64
        %v1560 = vpop.permute.xlu0 %1559
        %v1562 = vsel %vm1202, %v1558, 0
        %v1565 = vsel %vm1218, %v1560, 0
        %1567 = vmatprep.subr.bf16.mxu0 0
        %1568 = vmatpush1.bf16.msra.mxu0 %v1565
        %1569 = vmatprep.subr.bf16.mxu0 0
        %1570 = vmatpush1.bf16.msra.mxu0 0
        %1571 = vmatprep.subr.bf16.mxu0 0
        %1572 = vmatpush1.bf16.msra.mxu0 0
        %1573 = vmatprep.subr.bf16.mxu0 0
        %1574 = vmatpush1.bf16.msra.mxu0 0
        %1575 = vmatprep.subr.bf16.mxu0 0
        %1576 = vmatpush1.bf16.msra.mxu0 0
        %1577 = vmatprep.subr.bf16.mxu0 0
        %1578 = vmatpush1.bf16.msra.mxu0 0
        %1579 = vmatprep.subr.bf16.mxu0 0
        %1580 = vmatpush1.bf16.msra.mxu0 0
        %1581 = vmatprep.subr.bf16.mxu0 0
        %1582 = vmatpush1.bf16.msra.mxu0 0
        %1583 = vmatprep.subr.bf16.mxu0 0
        %1584 = vmatpush1.bf16.msra.mxu0 0
        %1585 = vmatprep.subr.bf16.mxu0 0
        %1586 = vmatpush1.bf16.msra.mxu0 0
        %1587 = vmatprep.subr.bf16.mxu0 0
        %1588 = vmatpush1.bf16.msra.mxu0 0
        %1589 = vmatprep.subr.bf16.mxu0 0
        %1590 = vmatpush1.bf16.msra.mxu0 0
        %1591 = vmatprep.subr.bf16.mxu0 0
        %1592 = vmatpush1.bf16.msra.mxu0 0
        %1593 = vmatprep.subr.bf16.mxu0 0
        %1594 = vmatpush1.bf16.msra.mxu0 0
        %1595 = vmatprep.subr.bf16.mxu0 0
        %1596 = vmatpush1.bf16.msra.mxu0 0
        %1597 = vmatprep.subr.bf16.mxu0 0
        %1598 = vmatpush1.bf16.msra.mxu0 0
        %1599 = vmatprep.mubr.bf16.mxu0 0
        %1600 = vmatmul.mubr.bf16.gmra.mrb[0].mxu0 %v1562
        %v1601 = vpop.f32.mrb[0].mxu0
        %v1602 = vadd.f32 0.0, %v1601
        %v1603 = vpop.f32.mrb[0].mxu0
        %v1604 = vpop.f32.mrb[0].mxu0
        %v1605 = vpop.f32.mrb[0].mxu0
        %1606 = vdwg.mxu0
        %v1607 = vld [vmem:[%s683 + $0x20] sm:$0xf]
        %v1608 = vld [vmem:[%s683 + $0x24] sm:$0xf]
        %v1609 = vld [vmem:[%s683 + $0x28] sm:$0xf]
        %v1610 = vld [vmem:[%s683 + $0x2c] sm:$0xf]
        %v1611 = vpack.c.bf16 %v1602, %v1602
        %v1616 = vunpack.c.l.b16 %v1607
        %v1617 = vunpack.c.l.b16 %v1608
        %v1618 = vunpack.c.l.b16 %v1609
        %v1619 = vunpack.c.l.b16 %v1610
        %v1620 = vpack.c.b16 %v1617, %v1616
        %v1621 = vpack.c.b16 %v1619, %v1618
        %v1625 = vsel %vm1154, %v1611, 0
        %1627 = vmatprep.subr.bf16.mxu0 0
        %1628 = vmatpush1.bf16.msra.mxu0 %v1620
        %1629 = vmatprep.subr.bf16.mxu0 0
        %1630 = vmatpush1.bf16.msra.mxu0 %v1621
        %1631 = vmatprep.subr.bf16.mxu0 0
        %1632 = vmatpush1.bf16.msra.mxu0 0
        %1633 = vmatprep.subr.bf16.mxu0 0
        %1634 = vmatpush1.bf16.msra.mxu0 0
        %1635 = vmatprep.subr.bf16.mxu0 0
        %1636 = vmatpush1.bf16.msra.mxu0 0
        %1637 = vmatprep.subr.bf16.mxu0 0
        %1638 = vmatpush1.bf16.msra.mxu0 0
        %1639 = vmatprep.subr.bf16.mxu0 0
        %1640 = vmatpush1.bf16.msra.mxu0 0
        %1641 = vmatprep.subr.bf16.mxu0 0
        %1642 = vmatpush1.bf16.msra.mxu0 0
        %1643 = vmatprep.subr.bf16.mxu0 0
        %1644 = vmatpush1.bf16.msra.mxu0 0
        %1645 = vmatprep.subr.bf16.mxu0 0
        %1646 = vmatpush1.bf16.msra.mxu0 0
        %1647 = vmatprep.subr.bf16.mxu0 0
        %1648 = vmatpush1.bf16.msra.mxu0 0
        %1649 = vmatprep.subr.bf16.mxu0 0
        %1650 = vmatpush1.bf16.msra.mxu0 0
        %1651 = vmatprep.subr.bf16.mxu0 0
        %1652 = vmatpush1.bf16.msra.mxu0 0
        %1653 = vmatprep.subr.bf16.mxu0 0
        %1654 = vmatpush1.bf16.msra.mxu0 0
        %1655 = vmatprep.subr.bf16.mxu0 0
        %1656 = vmatpush1.bf16.msra.mxu0 0
        %1657 = vmatprep.subr.bf16.mxu0 0
        %1658 = vmatpush1.bf16.msra.mxu0 0
        %1659 = vmatprep.mubr.bf16.mxu0 0
        %1660 = vmatmul.mubr.bf16.gmra.mrb[0].mxu0 %v1625
        %v1661 = vpop.f32.mrb[0].mxu0
        %v1662 = vadd.f32 0.0, %v1661
        %v1663 = vpop.f32.mrb[0].mxu0
        %v1664 = vpop.f32.mrb[0].mxu0
        %v1665 = vpop.f32.mrb[0].mxu0
        %1666 = vdwg.mxu0
        %v1667 = vadd.f32 %v1491, %v1662
        %1668 = vrot.lane.b32.xlu0 %v1151, 32
        %v1669 = vpop.permute.xlu0 %1668
        %1670 = vrot.lane.b32.xlu0 %v1152, 32
        %v1671 = vpop.permute.xlu0 %1670
        %v1673 = vsel %vm1154, %v1669, 0
        %v1676 = vsel %vm1154, %v1671, 0
        %1678 = vmatprep.subr.bf16.mxu0 0
        %1679 = vmatpush1.bf16.xpose.msra.mxu0 %v1676
        %1680 = vmatprep.subr.bf16.mxu0 0
        %1681 = vmatpush1.bf16.xpose.msra.mxu0 0
        %1682 = vmatprep.subr.bf16.mxu0 0
        %1683 = vmatpush1.bf16.xpose.msra.mxu0 0
        %1684 = vmatprep.subr.bf16.mxu0 0
        %1685 = vmatpush1.bf16.xpose.msra.mxu0 0
        %1686 = vmatprep.subr.bf16.mxu0 0
        %1687 = vmatpush1.bf16.xpose.msra.mxu0 0
        %1688 = vmatprep.subr.bf16.mxu0 0
        %1689 = vmatpush1.bf16.xpose.msra.mxu0 0
        %1690 = vmatprep.subr.bf16.mxu0 0
        %1691 = vmatpush1.bf16.xpose.msra.mxu0 0
        %1692 = vmatprep.subr.bf16.mxu0 0
        %1693 = vmatpush1.bf16.xpose.msra.mxu0 0
        %1694 = vmatprep.subr.bf16.mxu0 0
        %1695 = vmatpush1.bf16.xpose.msra.mxu0 0
        %1696 = vmatprep.subr.bf16.mxu0 0
        %1697 = vmatpush1.bf16.xpose.msra.mxu0 0
        %1698 = vmatprep.subr.bf16.mxu0 0
        %1699 = vmatpush1.bf16.xpose.msra.mxu0 0
        %1700 = vmatprep.subr.bf16.mxu0 0
        %1701 = vmatpush1.bf16.xpose.msra.mxu0 0
        %1702 = vmatprep.subr.bf16.mxu0 0
        %1703 = vmatpush1.bf16.xpose.msra.mxu0 0
        %1704 = vmatprep.subr.bf16.mxu0 0
        %1705 = vmatpush1.bf16.xpose.msra.mxu0 0
        %1706 = vmatprep.subr.bf16.mxu0 0
        %1707 = vmatpush1.bf16.xpose.msra.mxu0 0
        %1708 = vmatprep.subr.bf16.mxu0 0
        %1709 = vmatpush1.bf16.xpose.msra.mxu0 0
        %1710 = vmatprep.mubr.bf16.mxu0 0
        %1711 = vmatmul.mubr.bf16.gmra.mrb[0].mxu0 %v1673
        %v1712 = vpop.f32.mrb[0].mxu0
        %v1713 = vadd.f32 0.0, %v1712
        %v1714 = vpop.f32.mrb[0].mxu0
        %v1715 = vpop.f32.mrb[0].mxu0
        %v1716 = vpop.f32.mrb[0].mxu0
        %1717 = vdwg.mxu0
        %v1718 = vmul.f32 %v1713, 0.17677669
        %v1719 = vsel %vm1202, %v1718, -inf
        %1720 = vmax.xlane.f32.xlu0 %v1719
        %v1721 = vpop.xlane.xlu0 %1720
        %v1722 = vsub.f32 %v1718, %v1721
        %v1723 = vmul.f32 %v1722, 1.442695
        %v1724 = vpow.pop %v1723
        %v1725 = vsel %vm1202, %v1724, 0.0
        %1726 = vadd.xlane.f32.xlu0 %v1725
        %v1727 = vpop.xlane.xlu0 %1726
        %v1728 = vrcp.pop %v1727
        %v1729 = vmul.f32 %v1724, %v1728
        %v1730 = vpack.c.bf16 %v1729, %v1729
        %1731 = vrot.lane.b32.xlu0 %v1153, 32
        %v1732 = vpop.permute.xlu0 %1731
        %v1734 = vsel %vm1202, %v1730, 0
        %v1737 = vsel %vm1218, %v1732, 0
        %1739 = vmatprep.subr.bf16.mxu0 0
        %1740 = vmatpush1.bf16.msra.mxu0 %v1737
        %1741 = vmatprep.subr.bf16.mxu0 0
        %1742 = vmatpush1.bf16.msra.mxu0 0
        %1743 = vmatprep.subr.bf16.mxu0 0
        %1744 = vmatpush1.bf16.msra.mxu0 0
        %1745 = vmatprep.subr.bf16.mxu0 0
        %1746 = vmatpush1.bf16.msra.mxu0 0
        %1747 = vmatprep.subr.bf16.mxu0 0
        %1748 = vmatpush1.bf16.msra.mxu0 0
        %1749 = vmatprep.subr.bf16.mxu0 0
        %1750 = vmatpush1.bf16.msra.mxu0 0
        %1751 = vmatprep.subr.bf16.mxu0 0
        %1752 = vmatpush1.bf16.msra.mxu0 0
        %1753 = vmatprep.subr.bf16.mxu0 0
        %1754 = vmatpush1.bf16.msra.mxu0 0
        %1755 = vmatprep.subr.bf16.mxu0 0
        %1756 = vmatpush1.bf16.msra.mxu0 0
        %1757 = vmatprep.subr.bf16.mxu0 0
        %1758 = vmatpush1.bf16.msra.mxu0 0
        %1759 = vmatprep.subr.bf16.mxu0 0
        %1760 = vmatpush1.bf16.msra.mxu0 0
        %1761 = vmatprep.subr.bf16.mxu0 0
        %1762 = vmatpush1.bf16.msra.mxu0 0
        %1763 = vmatprep.subr.bf16.mxu0 0
        %1764 = vmatpush1.bf16.msra.mxu0 0
        %1765 = vmatprep.subr.bf16.mxu0 0
        %1766 = vmatpush1.bf16.msra.mxu0 0
        %1767 = vmatprep.subr.bf16.mxu0 0
        %1768 = vmatpush1.bf16.msra.mxu0 0
        %1769 = vmatprep.subr.bf16.mxu0 0
        %1770 = vmatpush1.bf16.msra.mxu0 0
        %1771 = vmatprep.mubr.bf16.mxu0 0
        %1772 = vmatmul.mubr.bf16.gmra.mrb[0].mxu0 %v1734
        %v1773 = vpop.f32.mrb[0].mxu0
        %v1774 = vadd.f32 0.0, %v1773
        %v1775 = vpop.f32.mrb[0].mxu0
        %v1776 = vpop.f32.mrb[0].mxu0
        %v1777 = vpop.f32.mrb[0].mxu0
        %1778 = vdwg.mxu0
        %v1779 = vld [vmem:[%s683 + $0x30] sm:$0xf]
        %v1780 = vld [vmem:[%s683 + $0x34] sm:$0xf]
        %v1781 = vld [vmem:[%s683 + $0x38] sm:$0xf]
        %v1782 = vld [vmem:[%s683 + $0x3c] sm:$0xf]
        %v1783 = vpack.c.bf16 %v1774, %v1774
        %v1788 = vunpack.c.l.b16 %v1779
        %v1789 = vunpack.c.l.b16 %v1780
        %v1790 = vunpack.c.l.b16 %v1781
        %v1791 = vunpack.c.l.b16 %v1782
        %v1792 = vpack.c.b16 %v1789, %v1788
        %v1793 = vpack.c.b16 %v1791, %v1790
        %v1797 = vsel %vm1154, %v1783, 0
        %1799 = vmatprep.subr.bf16.mxu0 0
        %1800 = vmatpush1.bf16.msra.mxu0 %v1792
        %1801 = vmatprep.subr.bf16.mxu0 0
        %1802 = vmatpush1.bf16.msra.mxu0 %v1793
        %1803 = vmatprep.subr.bf16.mxu0 0
        %1804 = vmatpush1.bf16.msra.mxu0 0
        %1805 = vmatprep.subr.bf16.mxu0 0
        %1806 = vmatpush1.bf16.msra.mxu0 0
        %1807 = vmatprep.subr.bf16.mxu0 0
        %1808 = vmatpush1.bf16.msra.mxu0 0
        %1809 = vmatprep.subr.bf16.mxu0 0
        %1810 = vmatpush1.bf16.msra.mxu0 0
        %1811 = vmatprep.subr.bf16.mxu0 0
        %1812 = vmatpush1.bf16.msra.mxu0 0
        %1813 = vmatprep.subr.bf16.mxu0 0
        %1814 = vmatpush1.bf16.msra.mxu0 0
        %1815 = vmatprep.subr.bf16.mxu0 0
        %1816 = vmatpush1.bf16.msra.mxu0 0
        %1817 = vmatprep.subr.bf16.mxu0 0
        %1818 = vmatpush1.bf16.msra.mxu0 0
        %1819 = vmatprep.subr.bf16.mxu0 0
        %1820 = vmatpush1.bf16.msra.mxu0 0
        %1821 = vmatprep.subr.bf16.mxu0 0
        %1822 = vmatpush1.bf16.msra.mxu0 0
        %1823 = vmatprep.subr.bf16.mxu0 0
        %1824 = vmatpush1.bf16.msra.mxu0 0
        %1825 = vmatprep.subr.bf16.mxu0 0
        %1826 = vmatpush1.bf16.msra.mxu0 0
        %1827 = vmatprep.subr.bf16.mxu0 0
        %1828 = vmatpush1.bf16.msra.mxu0 0
        %1829 = vmatprep.subr.bf16.mxu0 0
        %1830 = vmatpush1.bf16.msra.mxu0 0
        %1831 = vmatprep.mubr.bf16.mxu0 0
        %1832 = vmatmul.mubr.bf16.gmra.mrb[0].mxu0 %v1797
        %v1833 = vpop.f32.mrb[0].mxu0
        %v1834 = vadd.f32 0.0, %v1833
        %v1835 = vpop.f32.mrb[0].mxu0
        %v1836 = vpop.f32.mrb[0].mxu0
        %v1837 = vpop.f32.mrb[0].mxu0
        %1838 = vdwg.mxu0
        %v1839 = vadd.f32 %v1667, %v1834
        %v1840 = vld [vmem:[%s691] sm:$0x1]
        %v1842 = vlaneseq
        %v1843 = vshrl.u32 %v1842, 7
        %v1844 = vsub.s32 0, %v1843
        %v1845 = vrot.slane %v1840, %v1844
        %v1847 = vadd.f32 %v1839, %v1845
        %v1848 = vadd.f32 %v891, %v1847
        %v1849 = vld [vmem:[%s814] sm:$0x1]
        %v1850 = vld [vmem:[%s817] sm:$0x1]
        %1851 = vadd.xlane.f32.xlu0 %v1848
        %v1852 = vpop.xlane.xlu0 %1851
        %v1853 = vrcp.pop 128.0
        %v1854 = vmul.f32 %v1852, %v1853
        %v1855 = vsub.f32 %v1848, %v1854
        %v1856 = vmul.f32 %v1855, %v1855
        %1857 = vadd.xlane.f32.xlu0 %v1856
        %v1858 = vpop.xlane.xlu0 %1857
        %v1859 = vmul.f32 %v1858, %v1853
        %v1860 = vadd.f32 %v1859, 1e-05
        %v1861 = vrsqrt.pop %v1860
        %v1862 = vmul.f32 %v1855, %v1861
        %v1864 = vlaneseq
        %v1865 = vshrl.u32 %v1864, 7
        %v1866 = vsub.s32 0, %v1865
        %v1867 = vrot.slane %v1849, %v1866
        %v1869 = vmul.f32 %v1862, %v1867
        %v1871 = vlaneseq
        %v1872 = vshrl.u32 %v1871, 7
        %v1873 = vsub.s32 0, %v1872
        %v1874 = vrot.slane %v1850, %v1873
        %v1876 = vadd.f32 %v1869, %v1874
        %v1877 = vld [vmem:[%s700] sm:$0xff]
        %v1878 = vld [vmem:[%s700 + $0x8] sm:$0xff]
        %v1879 = vld [vmem:[%s700 + $0x10] sm:$0xff]
        %v1880 = vld [vmem:[%s700 + $0x18] sm:$0xff]
        %v1881 = vld [vmem:[%s700 + $0x20] sm:$0xff]
        %v1882 = vld [vmem:[%s700 + $0x28] sm:$0xff]
        %v1883 = vld [vmem:[%s700 + $0x30] sm:$0xff]
        %v1884 = vld [vmem:[%s700 + $0x38] sm:$0xff]
        %v1885 = vld [vmem:[%s700 + $0x40] sm:$0xff]
        %v1886 = vld [vmem:[%s700 + $0x48] sm:$0xff]
        %v1887 = vld [vmem:[%s700 + $0x50] sm:$0xff]
        %v1888 = vld [vmem:[%s700 + $0x58] sm:$0xff]
        %v1889 = vld [vmem:[%s700 + $0x60] sm:$0xff]
        %v1890 = vld [vmem:[%s700 + $0x68] sm:$0xff]
        %v1891 = vld [vmem:[%s700 + $0x70] sm:$0xff]
        %v1892 = vld [vmem:[%s700 + $0x78] sm:$0xff]
        %v1893 = vld [vmem:[%s700 + $0x80] sm:$0xff]
        %v1894 = vld [vmem:[%s700 + $0x88] sm:$0xff]
        %v1895 = vld [vmem:[%s700 + $0x90] sm:$0xff]
        %v1896 = vld [vmem:[%s700 + $0x98] sm:$0xff]
        %v1897 = vld [vmem:[%s700 + $0xa0] sm:$0xff]
        %v1898 = vld [vmem:[%s700 + $0xa8] sm:$0xff]
        %v1899 = vld [vmem:[%s700 + $0xb0] sm:$0xff]
        %v1900 = vld [vmem:[%s700 + $0xb8] sm:$0xff]
        %v1901 = vld [vmem:[%s700 + $0xc0] sm:$0xff]
        %v1902 = vld [vmem:[%s700 + $0xc8] sm:$0xff]
        %v1903 = vld [vmem:[%s700 + $0xd0] sm:$0xff]
        %v1904 = vld [vmem:[%s700 + $0xd8] sm:$0xff]
        %v1905 = vld [vmem:[%s700 + $0xe0] sm:$0xff]
        %v1906 = vld [vmem:[%s700 + $0xe8] sm:$0xff]
        %v1907 = vld [vmem:[%s700 + $0xf0] sm:$0xff]
        %v1908 = vld [vmem:[%s700 + $0xf8] sm:$0xff]
        %v1909 = vld [vmem:[%s700 + $0x100] sm:$0xff]
        %v1910 = vld [vmem:[%s700 + $0x108] sm:$0xff]
        %v1911 = vld [vmem:[%s700 + $0x110] sm:$0xff]
        %v1912 = vld [vmem:[%s700 + $0x118] sm:$0xff]
        %v1913 = vld [vmem:[%s700 + $0x120] sm:$0xff]
        %v1914 = vld [vmem:[%s700 + $0x128] sm:$0xff]
        %v1915 = vld [vmem:[%s700 + $0x130] sm:$0xff]
        %v1916 = vld [vmem:[%s700 + $0x138] sm:$0xff]
        %v1917 = vld [vmem:[%s700 + $0x140] sm:$0xff]
        %v1918 = vld [vmem:[%s700 + $0x148] sm:$0xff]
        %v1919 = vld [vmem:[%s700 + $0x150] sm:$0xff]
        %v1920 = vld [vmem:[%s700 + $0x158] sm:$0xff]
        %v1921 = vld [vmem:[%s700 + $0x160] sm:$0xff]
        %v1922 = vld [vmem:[%s700 + $0x168] sm:$0xff]
        %v1923 = vld [vmem:[%s700 + $0x170] sm:$0xff]
        %v1924 = vld [vmem:[%s700 + $0x178] sm:$0xff]
        %v1925 = vld [vmem:[%s700 + $0x180] sm:$0xff]
        %v1926 = vld [vmem:[%s700 + $0x188] sm:$0xff]
        %v1927 = vld [vmem:[%s700 + $0x190] sm:$0xff]
        %v1928 = vld [vmem:[%s700 + $0x198] sm:$0xff]
        %v1929 = vld [vmem:[%s700 + $0x1a0] sm:$0xff]
        %v1930 = vld [vmem:[%s700 + $0x1a8] sm:$0xff]
        %v1931 = vld [vmem:[%s700 + $0x1b0] sm:$0xff]
        %v1932 = vld [vmem:[%s700 + $0x1b8] sm:$0xff]
        %v1933 = vld [vmem:[%s700 + $0x1c0] sm:$0xff]
        %v1934 = vld [vmem:[%s700 + $0x1c8] sm:$0xff]
        %v1935 = vld [vmem:[%s700 + $0x1d0] sm:$0xff]
        %v1936 = vld [vmem:[%s700 + $0x1d8] sm:$0xff]
        %v1937 = vld [vmem:[%s700 + $0x1e0] sm:$0xff]
        %v1938 = vld [vmem:[%s700 + $0x1e8] sm:$0xff]
        %v1939 = vld [vmem:[%s700 + $0x1f0] sm:$0xff]
        %v1940 = vld [vmem:[%s700 + $0x1f8] sm:$0xff]
        %v1941 = vld [vmem:[%s700 + $0x200] sm:$0xff]
        %v1942 = vld [vmem:[%s700 + $0x208] sm:$0xff]
        %v1943 = vld [vmem:[%s700 + $0x210] sm:$0xff]
        %v1944 = vld [vmem:[%s700 + $0x218] sm:$0xff]
        %v1945 = vld [vmem:[%s700 + $0x220] sm:$0xff]
        %v1946 = vld [vmem:[%s700 + $0x228] sm:$0xff]
        %v1947 = vld [vmem:[%s700 + $0x230] sm:$0xff]
        %v1948 = vld [vmem:[%s700 + $0x238] sm:$0xff]
        %v1949 = vld [vmem:[%s700 + $0x240] sm:$0xff]
        %v1950 = vld [vmem:[%s700 + $0x248] sm:$0xff]
        %v1951 = vld [vmem:[%s700 + $0x250] sm:$0xff]
        %v1952 = vld [vmem:[%s700 + $0x258] sm:$0xff]
        %v1953 = vld [vmem:[%s700 + $0x260] sm:$0xff]
        %v1954 = vld [vmem:[%s700 + $0x268] sm:$0xff]
        %v1955 = vld [vmem:[%s700 + $0x270] sm:$0xff]
        %v1956 = vld [vmem:[%s700 + $0x278] sm:$0xff]
        %v1957 = vld [vmem:[%s700 + $0x280] sm:$0xff]
        %v1958 = vld [vmem:[%s700 + $0x288] sm:$0xff]
        %v1959 = vld [vmem:[%s700 + $0x290] sm:$0xff]
        %v1960 = vld [vmem:[%s700 + $0x298] sm:$0xff]
        %v1961 = vld [vmem:[%s700 + $0x2a0] sm:$0xff]
        %v1962 = vld [vmem:[%s700 + $0x2a8] sm:$0xff]
        %v1963 = vld [vmem:[%s700 + $0x2b0] sm:$0xff]
        %v1964 = vld [vmem:[%s700 + $0x2b8] sm:$0xff]
        %v1965 = vld [vmem:[%s700 + $0x2c0] sm:$0xff]
        %v1966 = vld [vmem:[%s700 + $0x2c8] sm:$0xff]
        %v1967 = vld [vmem:[%s700 + $0x2d0] sm:$0xff]
        %v1968 = vld [vmem:[%s700 + $0x2d8] sm:$0xff]
        %v1969 = vld [vmem:[%s700 + $0x2e0] sm:$0xff]
        %v1970 = vld [vmem:[%s700 + $0x2e8] sm:$0xff]
        %v1971 = vld [vmem:[%s700 + $0x2f0] sm:$0xff]
        %v1972 = vld [vmem:[%s700 + $0x2f8] sm:$0xff]
        %v1973 = vld [vmem:[%s700 + $0x300] sm:$0xff]
        %v1974 = vld [vmem:[%s700 + $0x308] sm:$0xff]
        %v1975 = vld [vmem:[%s700 + $0x310] sm:$0xff]
        %v1976 = vld [vmem:[%s700 + $0x318] sm:$0xff]
        %v1977 = vld [vmem:[%s700 + $0x320] sm:$0xff]
        %v1978 = vld [vmem:[%s700 + $0x328] sm:$0xff]
        %v1979 = vld [vmem:[%s700 + $0x330] sm:$0xff]
        %v1980 = vld [vmem:[%s700 + $0x338] sm:$0xff]
        %v1981 = vld [vmem:[%s700 + $0x340] sm:$0xff]
        %v1982 = vld [vmem:[%s700 + $0x348] sm:$0xff]
        %v1983 = vld [vmem:[%s700 + $0x350] sm:$0xff]
        %v1984 = vld [vmem:[%s700 + $0x358] sm:$0xff]
        %v1985 = vld [vmem:[%s700 + $0x360] sm:$0xff]
        %v1986 = vld [vmem:[%s700 + $0x368] sm:$0xff]
        %v1987 = vld [vmem:[%s700 + $0x370] sm:$0xff]
        %v1988 = vld [vmem:[%s700 + $0x378] sm:$0xff]
        %v1989 = vld [vmem:[%s700 + $0x380] sm:$0xff]
        %v1990 = vld [vmem:[%s700 + $0x388] sm:$0xff]
        %v1991 = vld [vmem:[%s700 + $0x390] sm:$0xff]
        %v1992 = vld [vmem:[%s700 + $0x398] sm:$0xff]
        %v1993 = vld [vmem:[%s700 + $0x3a0] sm:$0xff]
        %v1994 = vld [vmem:[%s700 + $0x3a8] sm:$0xff]
        %v1995 = vld [vmem:[%s700 + $0x3b0] sm:$0xff]
        %v1996 = vld [vmem:[%s700 + $0x3b8] sm:$0xff]
        %v1997 = vld [vmem:[%s700 + $0x3c0] sm:$0xff]
        %v1998 = vld [vmem:[%s700 + $0x3c8] sm:$0xff]
        %v1999 = vld [vmem:[%s700 + $0x3d0] sm:$0xff]
        %v2000 = vld [vmem:[%s700 + $0x3d8] sm:$0xff]
        %v2001 = vld [vmem:[%s700 + $0x3e0] sm:$0xff]
        %v2002 = vld [vmem:[%s700 + $0x3e8] sm:$0xff]
        %v2003 = vld [vmem:[%s700 + $0x3f0] sm:$0xff]
        %v2004 = vld [vmem:[%s700 + $0x3f8] sm:$0xff]
        %v2005 = vpack.c.bf16 %v1876, %v1876
        %v2006 = vld [vmem:[%s808] sm:$0xff]
        %v2007 = vld [vmem:[%s808 + $0x8] sm:$0xff]
        %v2010 = vlaneseq
        %v2011 = vshrl.u32 %v2010, 7
        %v2012 = vsub.s32 0, %v2011
        %v2013 = vrot.slane %v2006, %v2012
        %v2014 = vlaneseq
        %v2015 = vshrl.u32 %v2014, 7
        %v2016 = vsub.s32 1, %v2015
        %v2017 = vrot.slane %v2006, %v2016
        %v2018 = vlaneseq
        %v2019 = vshrl.u32 %v2018, 7
        %v2020 = vsub.s32 2, %v2019
        %v2021 = vrot.slane %v2006, %v2020
        %v2022 = vlaneseq
        %v2023 = vshrl.u32 %v2022, 7
        %v2024 = vsub.s32 3, %v2023
        %v2025 = vrot.slane %v2006, %v2024
        %v2026 = vlaneseq
        %v2027 = vshrl.u32 %v2026, 7
        %v2028 = vsub.s32 4, %v2027
        %v2029 = vrot.slane %v2006, %v2028
        %v2030 = vlaneseq
        %v2031 = vshrl.u32 %v2030, 7
        %v2032 = vsub.s32 5, %v2031
        %v2033 = vrot.slane %v2006, %v2032
        %v2034 = vlaneseq
        %v2035 = vshrl.u32 %v2034, 7
        %v2036 = vsub.s32 6, %v2035
        %v2037 = vrot.slane %v2006, %v2036
        %v2038 = vlaneseq
        %v2039 = vshrl.u32 %v2038, 7
        %v2040 = vsub.s32 7, %v2039
        %v2041 = vrot.slane %v2006, %v2040
        %v2042 = vlaneseq
        %v2043 = vshrl.u32 %v2042, 7
        %v2044 = vsub.s32 0, %v2043
        %v2045 = vrot.slane %v2007, %v2044
        %v2046 = vlaneseq
        %v2047 = vshrl.u32 %v2046, 7
        %v2048 = vsub.s32 1, %v2047
        %v2049 = vrot.slane %v2007, %v2048
        %v2050 = vlaneseq
        %v2051 = vshrl.u32 %v2050, 7
        %v2052 = vsub.s32 2, %v2051
        %v2053 = vrot.slane %v2007, %v2052
        %v2054 = vlaneseq
        %v2055 = vshrl.u32 %v2054, 7
        %v2056 = vsub.s32 3, %v2055
        %v2057 = vrot.slane %v2007, %v2056
        %v2058 = vlaneseq
        %v2059 = vshrl.u32 %v2058, 7
        %v2060 = vsub.s32 4, %v2059
        %v2061 = vrot.slane %v2007, %v2060
        %v2062 = vlaneseq
        %v2063 = vshrl.u32 %v2062, 7
        %v2064 = vsub.s32 5, %v2063
        %v2065 = vrot.slane %v2007, %v2064
        %v2066 = vlaneseq
        %v2067 = vshrl.u32 %v2066, 7
        %v2068 = vsub.s32 6, %v2067
        %v2069 = vrot.slane %v2007, %v2068
        %v2070 = vlaneseq
        %v2071 = vshrl.u32 %v2070, 7
        %v2072 = vsub.s32 7, %v2071
        %v2073 = vrot.slane %v2007, %v2072
        %v2218 = vunpack.c.l.b16 %v1877
        %v2219 = vunpack.c.h.b16 %v1877
        %v2220 = vunpack.c.l.b16 %v1878
        %v2221 = vunpack.c.h.b16 %v1878
        %v2222 = vunpack.c.l.b16 %v1879
        %v2223 = vunpack.c.h.b16 %v1879
        %v2224 = vunpack.c.l.b16 %v1880
        %v2225 = vunpack.c.h.b16 %v1880
        %v2226 = vunpack.c.l.b16 %v1881
        %v2227 = vunpack.c.h.b16 %v1881
        %v2228 = vunpack.c.l.b16 %v1882
        %v2229 = vunpack.c.h.b16 %v1882
        %v2230 = vunpack.c.l.b16 %v1883
        %v2231 = vunpack.c.h.b16 %v1883
        %v2232 = vunpack.c.l.b16 %v1884
        %v2233 = vunpack.c.h.b16 %v1884
        %v2234 = vunpack.c.l.b16 %v1885
        %v2235 = vunpack.c.h.b16 %v1885
        %v2236 = vunpack.c.l.b16 %v1886
        %v2237 = vunpack.c.h.b16 %v1886
        %v2238 = vunpack.c.l.b16 %v1887
        %v2239 = vunpack.c.h.b16 %v1887
        %v2240 = vunpack.c.l.b16 %v1888
        %v2241 = vunpack.c.h.b16 %v1888
        %v2242 = vunpack.c.l.b16 %v1889
        %v2243 = vunpack.c.h.b16 %v1889
        %v2244 = vunpack.c.l.b16 %v1890
        %v2245 = vunpack.c.h.b16 %v1890
        %v2246 = vunpack.c.l.b16 %v1891
        %v2247 = vunpack.c.h.b16 %v1891
        %v2248 = vunpack.c.l.b16 %v1892
        %v2249 = vunpack.c.h.b16 %v1892
        %v2250 = vunpack.c.l.b16 %v1893
        %v2251 = vunpack.c.h.b16 %v1893
        %v2252 = vunpack.c.l.b16 %v1894
        %v2253 = vunpack.c.h.b16 %v1894
        %v2254 = vunpack.c.l.b16 %v1895
        %v2255 = vunpack.c.h.b16 %v1895
        %v2256 = vunpack.c.l.b16 %v1896
        %v2257 = vunpack.c.h.b16 %v1896
        %v2258 = vunpack.c.l.b16 %v1897
        %v2259 = vunpack.c.h.b16 %v1897
        %v2260 = vunpack.c.l.b16 %v1898
        %v2261 = vunpack.c.h.b16 %v1898
        %v2262 = vunpack.c.l.b16 %v1899
        %v2263 = vunpack.c.h.b16 %v1899
        %v2264 = vunpack.c.l.b16 %v1900
        %v2265 = vunpack.c.h.b16 %v1900
        %v2266 = vunpack.c.l.b16 %v1901
        %v2267 = vunpack.c.h.b16 %v1901
        %v2268 = vunpack.c.l.b16 %v1902
        %v2269 = vunpack.c.h.b16 %v1902
        %v2270 = vunpack.c.l.b16 %v1903
        %v2271 = vunpack.c.h.b16 %v1903
        %v2272 = vunpack.c.l.b16 %v1904
        %v2273 = vunpack.c.h.b16 %v1904
        %v2274 = vunpack.c.l.b16 %v1905
        %v2275 = vunpack.c.h.b16 %v1905
        %v2276 = vunpack.c.l.b16 %v1906
        %v2277 = vunpack.c.h.b16 %v1906
        %v2278 = vunpack.c.l.b16 %v1907
        %v2279 = vunpack.c.h.b16 %v1907
        %v2280 = vunpack.c.l.b16 %v1908
        %v2281 = vunpack.c.h.b16 %v1908
        %v2282 = vunpack.c.l.b16 %v1909
        %v2283 = vunpack.c.h.b16 %v1909
        %v2284 = vunpack.c.l.b16 %v1910
        %v2285 = vunpack.c.h.b16 %v1910
        %v2286 = vunpack.c.l.b16 %v1911
        %v2287 = vunpack.c.h.b16 %v1911
        %v2288 = vunpack.c.l.b16 %v1912
        %v2289 = vunpack.c.h.b16 %v1912
        %v2290 = vunpack.c.l.b16 %v1913
        %v2291 = vunpack.c.h.b16 %v1913
        %v2292 = vunpack.c.l.b16 %v1914
        %v2293 = vunpack.c.h.b16 %v1914
        %v2294 = vunpack.c.l.b16 %v1915
        %v2295 = vunpack.c.h.b16 %v1915
        %v2296 = vunpack.c.l.b16 %v1916
        %v2297 = vunpack.c.h.b16 %v1916
        %v2298 = vunpack.c.l.b16 %v1917
        %v2299 = vunpack.c.h.b16 %v1917
        %v2300 = vunpack.c.l.b16 %v1918
        %v2301 = vunpack.c.h.b16 %v1918
        %v2302 = vunpack.c.l.b16 %v1919
        %v2303 = vunpack.c.h.b16 %v1919
        %v2304 = vunpack.c.l.b16 %v1920
        %v2305 = vunpack.c.h.b16 %v1920
        %v2306 = vunpack.c.l.b16 %v1921
        %v2307 = vunpack.c.h.b16 %v1921
        %v2308 = vunpack.c.l.b16 %v1922
        %v2309 = vunpack.c.h.b16 %v1922
        %v2310 = vunpack.c.l.b16 %v1923
        %v2311 = vunpack.c.h.b16 %v1923
        %v2312 = vunpack.c.l.b16 %v1924
        %v2313 = vunpack.c.h.b16 %v1924
        %v2314 = vunpack.c.l.b16 %v1925
        %v2315 = vunpack.c.h.b16 %v1925
        %v2316 = vunpack.c.l.b16 %v1926
        %v2317 = vunpack.c.h.b16 %v1926
        %v2318 = vunpack.c.l.b16 %v1927
        %v2319 = vunpack.c.h.b16 %v1927
        %v2320 = vunpack.c.l.b16 %v1928
        %v2321 = vunpack.c.h.b16 %v1928
        %v2322 = vunpack.c.l.b16 %v1929
        %v2323 = vunpack.c.h.b16 %v1929
        %v2324 = vunpack.c.l.b16 %v1930
        %v2325 = vunpack.c.h.b16 %v1930
        %v2326 = vunpack.c.l.b16 %v1931
        %v2327 = vunpack.c.h.b16 %v1931
        %v2328 = vunpack.c.l.b16 %v1932
        %v2329 = vunpack.c.h.b16 %v1932
        %v2330 = vunpack.c.l.b16 %v1933
        %v2331 = vunpack.c.h.b16 %v1933
        %v2332 = vunpack.c.l.b16 %v1934
        %v2333 = vunpack.c.h.b16 %v1934
        %v2334 = vunpack.c.l.b16 %v1935
        %v2335 = vunpack.c.h.b16 %v1935
        %v2336 = vunpack.c.l.b16 %v1936
        %v2337 = vunpack.c.h.b16 %v1936
        %v2338 = vunpack.c.l.b16 %v1937
        %v2339 = vunpack.c.h.b16 %v1937
        %v2340 = vunpack.c.l.b16 %v1938
        %v2341 = vunpack.c.h.b16 %v1938
        %v2342 = vunpack.c.l.b16 %v1939
        %v2343 = vunpack.c.h.b16 %v1939
        %v2344 = vunpack.c.l.b16 %v1940
        %v2345 = vunpack.c.h.b16 %v1940
        %v2346 = vunpack.c.l.b16 %v1941
        %v2347 = vunpack.c.h.b16 %v1941
        %v2348 = vunpack.c.l.b16 %v1942
        %v2349 = vunpack.c.h.b16 %v1942
        %v2350 = vunpack.c.l.b16 %v1943
        %v2351 = vunpack.c.h.b16 %v1943
        %v2352 = vunpack.c.l.b16 %v1944
        %v2353 = vunpack.c.h.b16 %v1944
        %v2354 = vunpack.c.l.b16 %v1945
        %v2355 = vunpack.c.h.b16 %v1945
        %v2356 = vunpack.c.l.b16 %v1946
        %v2357 = vunpack.c.h.b16 %v1946
        %v2358 = vunpack.c.l.b16 %v1947
        %v2359 = vunpack.c.h.b16 %v1947
        %v2360 = vunpack.c.l.b16 %v1948
        %v2361 = vunpack.c.h.b16 %v1948
        %v2362 = vunpack.c.l.b16 %v1949
        %v2363 = vunpack.c.h.b16 %v1949
        %v2364 = vunpack.c.l.b16 %v1950
        %v2365 = vunpack.c.h.b16 %v1950
        %v2366 = vunpack.c.l.b16 %v1951
        %v2367 = vunpack.c.h.b16 %v1951
        %v2368 = vunpack.c.l.b16 %v1952
        %v2369 = vunpack.c.h.b16 %v1952
        %v2370 = vunpack.c.l.b16 %v1953
        %v2371 = vunpack.c.h.b16 %v1953
        %v2372 = vunpack.c.l.b16 %v1954
        %v2373 = vunpack.c.h.b16 %v1954
        %v2374 = vunpack.c.l.b16 %v1955
        %v2375 = vunpack.c.h.b16 %v1955
        %v2376 = vunpack.c.l.b16 %v1956
        %v2377 = vunpack.c.h.b16 %v1956
        %v2378 = vunpack.c.l.b16 %v1957
        %v2379 = vunpack.c.h.b16 %v1957
        %v2380 = vunpack.c.l.b16 %v1958
        %v2381 = vunpack.c.h.b16 %v1958
        %v2382 = vunpack.c.l.b16 %v1959
        %v2383 = vunpack.c.h.b16 %v1959
        %v2384 = vunpack.c.l.b16 %v1960
        %v2385 = vunpack.c.h.b16 %v1960
        %v2386 = vunpack.c.l.b16 %v1961
        %v2387 = vunpack.c.h.b16 %v1961
        %v2388 = vunpack.c.l.b16 %v1962
        %v2389 = vunpack.c.h.b16 %v1962
        %v2390 = vunpack.c.l.b16 %v1963
        %v2391 = vunpack.c.h.b16 %v1963
        %v2392 = vunpack.c.l.b16 %v1964
        %v2393 = vunpack.c.h.b16 %v1964
        %v2394 = vunpack.c.l.b16 %v1965
        %v2395 = vunpack.c.h.b16 %v1965
        %v2396 = vunpack.c.l.b16 %v1966
        %v2397 = vunpack.c.h.b16 %v1966
        %v2398 = vunpack.c.l.b16 %v1967
        %v2399 = vunpack.c.h.b16 %v1967
        %v2400 = vunpack.c.l.b16 %v1968
        %v2401 = vunpack.c.h.b16 %v1968
        %v2402 = vunpack.c.l.b16 %v1969
        %v2403 = vunpack.c.h.b16 %v1969
        %v2404 = vunpack.c.l.b16 %v1970
        %v2405 = vunpack.c.h.b16 %v1970
        %v2406 = vunpack.c.l.b16 %v1971
        %v2407 = vunpack.c.h.b16 %v1971
        %v2408 = vunpack.c.l.b16 %v1972
        %v2409 = vunpack.c.h.b16 %v1972
        %v2410 = vunpack.c.l.b16 %v1973
        %v2411 = vunpack.c.h.b16 %v1973
        %v2412 = vunpack.c.l.b16 %v1974
        %v2413 = vunpack.c.h.b16 %v1974
        %v2414 = vunpack.c.l.b16 %v1975
        %v2415 = vunpack.c.h.b16 %v1975
        %v2416 = vunpack.c.l.b16 %v1976
        %v2417 = vunpack.c.h.b16 %v1976
        %v2418 = vunpack.c.l.b16 %v1977
        %v2419 = vunpack.c.h.b16 %v1977
        %v2420 = vunpack.c.l.b16 %v1978
        %v2421 = vunpack.c.h.b16 %v1978
        %v2422 = vunpack.c.l.b16 %v1979
        %v2423 = vunpack.c.h.b16 %v1979
        %v2424 = vunpack.c.l.b16 %v1980
        %v2425 = vunpack.c.h.b16 %v1980
        %v2426 = vunpack.c.l.b16 %v1981
        %v2427 = vunpack.c.h.b16 %v1981
        %v2428 = vunpack.c.l.b16 %v1982
        %v2429 = vunpack.c.h.b16 %v1982
        %v2430 = vunpack.c.l.b16 %v1983
        %v2431 = vunpack.c.h.b16 %v1983
        %v2432 = vunpack.c.l.b16 %v1984
        %v2433 = vunpack.c.h.b16 %v1984
        %v2434 = vunpack.c.l.b16 %v1985
        %v2435 = vunpack.c.h.b16 %v1985
        %v2436 = vunpack.c.l.b16 %v1986
        %v2437 = vunpack.c.h.b16 %v1986
        %v2438 = vunpack.c.l.b16 %v1987
        %v2439 = vunpack.c.h.b16 %v1987
        %v2440 = vunpack.c.l.b16 %v1988
        %v2441 = vunpack.c.h.b16 %v1988
        %v2442 = vunpack.c.l.b16 %v1989
        %v2443 = vunpack.c.h.b16 %v1989
        %v2444 = vunpack.c.l.b16 %v1990
        %v2445 = vunpack.c.h.b16 %v1990
        %v2446 = vunpack.c.l.b16 %v1991
        %v2447 = vunpack.c.h.b16 %v1991
        %v2448 = vunpack.c.l.b16 %v1992
        %v2449 = vunpack.c.h.b16 %v1992
        %v2450 = vunpack.c.l.b16 %v1993
        %v2451 = vunpack.c.h.b16 %v1993
        %v2452 = vunpack.c.l.b16 %v1994
        %v2453 = vunpack.c.h.b16 %v1994
        %v2454 = vunpack.c.l.b16 %v1995
        %v2455 = vunpack.c.h.b16 %v1995
        %v2456 = vunpack.c.l.b16 %v1996
        %v2457 = vunpack.c.h.b16 %v1996
        %v2458 = vunpack.c.l.b16 %v1997
        %v2459 = vunpack.c.h.b16 %v1997
        %v2460 = vunpack.c.l.b16 %v1998
        %v2461 = vunpack.c.h.b16 %v1998
        %v2462 = vunpack.c.l.b16 %v1999
        %v2463 = vunpack.c.h.b16 %v1999
        %v2464 = vunpack.c.l.b16 %v2000
        %v2465 = vunpack.c.h.b16 %v2000
        %v2466 = vunpack.c.l.b16 %v2001
        %v2467 = vunpack.c.h.b16 %v2001
        %v2468 = vunpack.c.l.b16 %v2002
        %v2469 = vunpack.c.h.b16 %v2002
        %v2470 = vunpack.c.l.b16 %v2003
        %v2471 = vunpack.c.h.b16 %v2003
        %v2472 = vunpack.c.l.b16 %v2004
        %v2473 = vunpack.c.h.b16 %v2004
        %v2474 = vpack.c.b16 %v2234, %v2218
        %v2475 = vpack.c.b16 %v2235, %v2219
        %v2476 = vpack.c.b16 %v2236, %v2220
        %v2477 = vpack.c.b16 %v2237, %v2221
        %v2478 = vpack.c.b16 %v2238, %v2222
        %v2479 = vpack.c.b16 %v2239, %v2223
        %v2480 = vpack.c.b16 %v2240, %v2224
        %v2481 = vpack.c.b16 %v2241, %v2225
        %v2482 = vpack.c.b16 %v2242, %v2226
        %v2483 = vpack.c.b16 %v2243, %v2227
        %v2484 = vpack.c.b16 %v2244, %v2228
        %v2485 = vpack.c.b16 %v2245, %v2229
        %v2486 = vpack.c.b16 %v2246, %v2230
        %v2487 = vpack.c.b16 %v2247, %v2231
        %v2488 = vpack.c.b16 %v2248, %v2232
        %v2489 = vpack.c.b16 %v2249, %v2233
        %v2490 = vpack.c.b16 %v2266, %v2250
        %v2491 = vpack.c.b16 %v2267, %v2251
        %v2492 = vpack.c.b16 %v2268, %v2252
        %v2493 = vpack.c.b16 %v2269, %v2253
        %v2494 = vpack.c.b16 %v2270, %v2254
        %v2495 = vpack.c.b16 %v2271, %v2255
        %v2496 = vpack.c.b16 %v2272, %v2256
        %v2497 = vpack.c.b16 %v2273, %v2257
        %v2498 = vpack.c.b16 %v2274, %v2258
        %v2499 = vpack.c.b16 %v2275, %v2259
        %v2500 = vpack.c.b16 %v2276, %v2260
        %v2501 = vpack.c.b16 %v2277, %v2261
        %v2502 = vpack.c.b16 %v2278, %v2262
        %v2503 = vpack.c.b16 %v2279, %v2263
        %v2504 = vpack.c.b16 %v2280, %v2264
        %v2505 = vpack.c.b16 %v2281, %v2265
        %v2506 = vpack.c.b16 %v2298, %v2282
        %v2507 = vpack.c.b16 %v2299, %v2283
        %v2508 = vpack.c.b16 %v2300, %v2284
        %v2509 = vpack.c.b16 %v2301, %v2285
        %v2510 = vpack.c.b16 %v2302, %v2286
        %v2511 = vpack.c.b16 %v2303, %v2287
        %v2512 = vpack.c.b16 %v2304, %v2288
        %v2513 = vpack.c.b16 %v2305, %v2289
        %v2514 = vpack.c.b16 %v2306, %v2290
        %v2515 = vpack.c.b16 %v2307, %v2291
        %v2516 = vpack.c.b16 %v2308, %v2292
        %v2517 = vpack.c.b16 %v2309, %v2293
        %v2518 = vpack.c.b16 %v2310, %v2294
        %v2519 = vpack.c.b16 %v2311, %v2295
        %v2520 = vpack.c.b16 %v2312, %v2296
        %v2521 = vpack.c.b16 %v2313, %v2297
        %v2522 = vpack.c.b16 %v2330, %v2314
        %v2523 = vpack.c.b16 %v2331, %v2315
        %v2524 = vpack.c.b16 %v2332, %v2316
        %v2525 = vpack.c.b16 %v2333, %v2317
        %v2526 = vpack.c.b16 %v2334, %v2318
        %v2527 = vpack.c.b16 %v2335, %v2319
        %v2528 = vpack.c.b16 %v2336, %v2320
        %v2529 = vpack.c.b16 %v2337, %v2321
        %v2530 = vpack.c.b16 %v2338, %v2322
        %v2531 = vpack.c.b16 %v2339, %v2323
        %v2532 = vpack.c.b16 %v2340, %v2324
        %v2533 = vpack.c.b16 %v2341, %v2325
        %v2534 = vpack.c.b16 %v2342, %v2326
        %v2535 = vpack.c.b16 %v2343, %v2327
        %v2536 = vpack.c.b16 %v2344, %v2328
        %v2537 = vpack.c.b16 %v2345, %v2329
        %v2538 = vpack.c.b16 %v2362, %v2346
        %v2539 = vpack.c.b16 %v2363, %v2347
        %v2540 = vpack.c.b16 %v2364, %v2348
        %v2541 = vpack.c.b16 %v2365, %v2349
        %v2542 = vpack.c.b16 %v2366, %v2350
        %v2543 = vpack.c.b16 %v2367, %v2351
        %v2544 = vpack.c.b16 %v2368, %v2352
        %v2545 = vpack.c.b16 %v2369, %v2353
        %v2546 = vpack.c.b16 %v2370, %v2354
        %v2547 = vpack.c.b16 %v2371, %v2355
        %v2548 = vpack.c.b16 %v2372, %v2356
        %v2549 = vpack.c.b16 %v2373, %v2357
        %v2550 = vpack.c.b16 %v2374, %v2358
        %v2551 = vpack.c.b16 %v2375, %v2359
        %v2552 = vpack.c.b16 %v2376, %v2360
        %v2553 = vpack.c.b16 %v2377, %v2361
        %v2554 = vpack.c.b16 %v2394, %v2378
        %v2555 = vpack.c.b16 %v2395, %v2379
        %v2556 = vpack.c.b16 %v2396, %v2380
        %v2557 = vpack.c.b16 %v2397, %v2381
        %v2558 = vpack.c.b16 %v2398, %v2382
        %v2559 = vpack.c.b16 %v2399, %v2383
        %v2560 = vpack.c.b16 %v2400, %v2384
        %v2561 = vpack.c.b16 %v2401, %v2385
        %v2562 = vpack.c.b16 %v2402, %v2386
        %v2563 = vpack.c.b16 %v2403, %v2387
        %v2564 = vpack.c.b16 %v2404, %v2388
        %v2565 = vpack.c.b16 %v2405, %v2389
        %v2566 = vpack.c.b16 %v2406, %v2390
        %v2567 = vpack.c.b16 %v2407, %v2391
        %v2568 = vpack.c.b16 %v2408, %v2392
        %v2569 = vpack.c.b16 %v2409, %v2393
        %v2570 = vpack.c.b16 %v2426, %v2410
        %v2571 = vpack.c.b16 %v2427, %v2411
        %v2572 = vpack.c.b16 %v2428, %v2412
        %v2573 = vpack.c.b16 %v2429, %v2413
        %v2574 = vpack.c.b16 %v2430, %v2414
        %v2575 = vpack.c.b16 %v2431, %v2415
        %v2576 = vpack.c.b16 %v2432, %v2416
        %v2577 = vpack.c.b16 %v2433, %v2417
        %v2578 = vpack.c.b16 %v2434, %v2418
        %v2579 = vpack.c.b16 %v2435, %v2419
        %v2580 = vpack.c.b16 %v2436, %v2420
        %v2581 = vpack.c.b16 %v2437, %v2421
        %v2582 = vpack.c.b16 %v2438, %v2422
        %v2583 = vpack.c.b16 %v2439, %v2423
        %v2584 = vpack.c.b16 %v2440, %v2424
        %v2585 = vpack.c.b16 %v2441, %v2425
        %v2586 = vpack.c.b16 %v2458, %v2442
        %v2587 = vpack.c.b16 %v2459, %v2443
        %v2588 = vpack.c.b16 %v2460, %v2444
        %v2589 = vpack.c.b16 %v2461, %v2445
        %v2590 = vpack.c.b16 %v2462, %v2446
        %v2591 = vpack.c.b16 %v2463, %v2447
        %v2592 = vpack.c.b16 %v2464, %v2448
        %v2593 = vpack.c.b16 %v2465, %v2449
        %v2594 = vpack.c.b16 %v2466, %v2450
        %v2595 = vpack.c.b16 %v2467, %v2451
        %v2596 = vpack.c.b16 %v2468, %v2452
        %v2597 = vpack.c.b16 %v2469, %v2453
        %v2598 = vpack.c.b16 %v2470, %v2454
        %v2599 = vpack.c.b16 %v2471, %v2455
        %v2600 = vpack.c.b16 %v2472, %v2456
        %v2601 = vpack.c.b16 %v2473, %v2457
        %2730 = vmatprep.subr.bf16.mxu0 %v2475
        %2731 = vmatpush1.bf16.msra.mxu0 %v2474
        %2732 = vmatprep.subr.bf16.mxu0 %v2491
        %2733 = vmatpush1.bf16.msra.mxu0 %v2490
        %2734 = vmatprep.subr.bf16.mxu0 %v2507
        %2735 = vmatpush1.bf16.msra.mxu0 %v2506
        %2736 = vmatprep.subr.bf16.mxu0 %v2523
        %2737 = vmatpush1.bf16.msra.mxu0 %v2522
        %2738 = vmatprep.subr.bf16.mxu0 %v2539
        %2739 = vmatpush1.bf16.msra.mxu0 %v2538
        %2740 = vmatprep.subr.bf16.mxu0 %v2555
        %2741 = vmatpush1.bf16.msra.mxu0 %v2554
        %2742 = vmatprep.subr.bf16.mxu0 %v2571
        %2743 = vmatpush1.bf16.msra.mxu0 %v2570
        %2744 = vmatprep.subr.bf16.mxu0 %v2587
        %2745 = vmatpush1.bf16.msra.mxu0 %v2586
        %2746 = vmatprep.subr.bf16.mxu0 0
        %2747 = vmatpush1.bf16.msra.mxu0 0
        %2748 = vmatprep.subr.bf16.mxu0 0
        %2749 = vmatpush1.bf16.msra.mxu0 0
        %2750 = vmatprep.subr.bf16.mxu0 0
        %2751 = vmatpush1.bf16.msra.mxu0 0
        %2752 = vmatprep.subr.bf16.mxu0 0
        %2753 = vmatpush1.bf16.msra.mxu0 0
        %2754 = vmatprep.subr.bf16.mxu0 0
        %2755 = vmatpush1.bf16.msra.mxu0 0
        %2756 = vmatprep.subr.bf16.mxu0 0
        %2757 = vmatpush1.bf16.msra.mxu0 0
        %2758 = vmatprep.subr.bf16.mxu0 0
        %2759 = vmatpush1.bf16.msra.mxu0 0
        %2760 = vmatprep.subr.bf16.mxu0 0
        %2761 = vmatpush1.bf16.msra.mxu0 0
        %2762 = vmatprep.mubr.bf16.mxu0 0
        %2763 = vmatmul.mubr.bf16.gmra.mrb[0].mxu0 %v2005
        %v2764 = vpop.f32.mrb[0].mxu0
        %v2765 = vadd.f32 %v2013, %v2764
        %v2766 = vpop.f32.mrb[0].mxu0
        %v2767 = vadd.f32 %v2017, %v2766
        %v2768 = vpop.f32.mrb[0].mxu0
        %v2769 = vpop.f32.mrb[0].mxu0
        %2770 = vdwg.mxu0
        %2771 = vmatprep.subr.bf16.mxu0 %v2477
        %2772 = vmatpush1.bf16.msra.mxu0 %v2476
        %2773 = vmatprep.subr.bf16.mxu0 %v2493
        %2774 = vmatpush1.bf16.msra.mxu0 %v2492
        %2775 = vmatprep.subr.bf16.mxu0 %v2509
        %2776 = vmatpush1.bf16.msra.mxu0 %v2508
        %2777 = vmatprep.subr.bf16.mxu0 %v2525
        %2778 = vmatpush1.bf16.msra.mxu0 %v2524
        %2779 = vmatprep.subr.bf16.mxu0 %v2541
        %2780 = vmatpush1.bf16.msra.mxu0 %v2540
        %2781 = vmatprep.subr.bf16.mxu0 %v2557
        %2782 = vmatpush1.bf16.msra.mxu0 %v2556
        %2783 = vmatprep.subr.bf16.mxu0 %v2573
        %2784 = vmatpush1.bf16.msra.mxu0 %v2572
        %2785 = vmatprep.subr.bf16.mxu0 %v2589
        %2786 = vmatpush1.bf16.msra.mxu0 %v2588
        %2787 = vmatprep.subr.bf16.mxu0 0
        %2788 = vmatpush1.bf16.msra.mxu0 0
        %2789 = vmatprep.subr.bf16.mxu0 0
        %2790 = vmatpush1.bf16.msra.mxu0 0
        %2791 = vmatprep.subr.bf16.mxu0 0
        %2792 = vmatpush1.bf16.msra.mxu0 0
        %2793 = vmatprep.subr.bf16.mxu0 0
        %2794 = vmatpush1.bf16.msra.mxu0 0
        %2795 = vmatprep.subr.bf16.mxu0 0
        %2796 = vmatpush1.bf16.msra.mxu0 0
        %2797 = vmatprep.subr.bf16.mxu0 0
        %2798 = vmatpush1.bf16.msra.mxu0 0
        %2799 = vmatprep.subr.bf16.mxu0 0
        %2800 = vmatpush1.bf16.msra.mxu0 0
        %2801 = vmatprep.subr.bf16.mxu0 0
        %2802 = vmatpush1.bf16.msra.mxu0 0
        %2803 = vmatprep.mubr.bf16.mxu0 0
        %2804 = vmatmul.mubr.bf16.gmra.mrb[0].mxu0 %v2005
        %v2805 = vpop.f32.mrb[0].mxu0
        %v2806 = vadd.f32 %v2021, %v2805
        %v2807 = vpop.f32.mrb[0].mxu0
        %v2808 = vadd.f32 %v2025, %v2807
        %v2809 = vpop.f32.mrb[0].mxu0
        %v2810 = vpop.f32.mrb[0].mxu0
        %2811 = vdwg.mxu0
        %2812 = vmatprep.subr.bf16.mxu0 %v2479
        %2813 = vmatpush1.bf16.msra.mxu0 %v2478
        %2814 = vmatprep.subr.bf16.mxu0 %v2495
        %2815 = vmatpush1.bf16.msra.mxu0 %v2494
        %2816 = vmatprep.subr.bf16.mxu0 %v2511
        %2817 = vmatpush1.bf16.msra.mxu0 %v2510
        %2818 = vmatprep.subr.bf16.mxu0 %v2527
        %2819 = vmatpush1.bf16.msra.mxu0 %v2526
        %2820 = vmatprep.subr.bf16.mxu0 %v2543
        %2821 = vmatpush1.bf16.msra.mxu0 %v2542
        %2822 = vmatprep.subr.bf16.mxu0 %v2559
        %2823 = vmatpush1.bf16.msra.mxu0 %v2558
        %2824 = vmatprep.subr.bf16.mxu0 %v2575
        %2825 = vmatpush1.bf16.msra.mxu0 %v2574
        %2826 = vmatprep.subr.bf16.mxu0 %v2591
        %2827 = vmatpush1.bf16.msra.mxu0 %v2590
        %2828 = vmatprep.subr.bf16.mxu0 0
        %2829 = vmatpush1.bf16.msra.mxu0 0
        %2830 = vmatprep.subr.bf16.mxu0 0
        %2831 = vmatpush1.bf16.msra.mxu0 0
        %2832 = vmatprep.subr.bf16.mxu0 0
        %2833 = vmatpush1.bf16.msra.mxu0 0
        %2834 = vmatprep.subr.bf16.mxu0 0
        %2835 = vmatpush1.bf16.msra.mxu0 0
        %2836 = vmatprep.subr.bf16.mxu0 0
        %2837 = vmatpush1.bf16.msra.mxu0 0
        %2838 = vmatprep.subr.bf16.mxu0 0
        %2839 = vmatpush1.bf16.msra.mxu0 0
        %2840 = vmatprep.subr.bf16.mxu0 0
        %2841 = vmatpush1.bf16.msra.mxu0 0
        %2842 = vmatprep.subr.bf16.mxu0 0
        %2843 = vmatpush1.bf16.msra.mxu0 0
        %2844 = vmatprep.mubr.bf16.mxu0 0
        %2845 = vmatmul.mubr.bf16.gmra.mrb[0].mxu0 %v2005
        %v2846 = vpop.f32.mrb[0].mxu0
        %v2847 = vadd.f32 %v2029, %v2846
        %v2848 = vpop.f32.mrb[0].mxu0
        %v2849 = vadd.f32 %v2033, %v2848
        %v2850 = vpop.f32.mrb[0].mxu0
        %v2851 = vpop.f32.mrb[0].mxu0
        %2852 = vdwg.mxu0
        %2853 = vmatprep.subr.bf16.mxu0 %v2481
        %2854 = vmatpush1.bf16.msra.mxu0 %v2480
        %2855 = vmatprep.subr.bf16.mxu0 %v2497
        %2856 = vmatpush1.bf16.msra.mxu0 %v2496
        %2857 = vmatprep.subr.bf16.mxu0 %v2513
        %2858 = vmatpush1.bf16.msra.mxu0 %v2512
        %2859 = vmatprep.subr.bf16.mxu0 %v2529
        %2860 = vmatpush1.bf16.msra.mxu0 %v2528
        %2861 = vmatprep.subr.bf16.mxu0 %v2545
        %2862 = vmatpush1.bf16.msra.mxu0 %v2544
        %2863 = vmatprep.subr.bf16.mxu0 %v2561
        %2864 = vmatpush1.bf16.msra.mxu0 %v2560
        %2865 = vmatprep.subr.bf16.mxu0 %v2577
        %2866 = vmatpush1.bf16.msra.mxu0 %v2576
        %2867 = vmatprep.subr.bf16.mxu0 %v2593
        %2868 = vmatpush1.bf16.msra.mxu0 %v2592
        %2869 = vmatprep.subr.bf16.mxu0 0
        %2870 = vmatpush1.bf16.msra.mxu0 0
        %2871 = vmatprep.subr.bf16.mxu0 0
        %2872 = vmatpush1.bf16.msra.mxu0 0
        %2873 = vmatprep.subr.bf16.mxu0 0
        %2874 = vmatpush1.bf16.msra.mxu0 0
        %2875 = vmatprep.subr.bf16.mxu0 0
        %2876 = vmatpush1.bf16.msra.mxu0 0
        %2877 = vmatprep.subr.bf16.mxu0 0
        %2878 = vmatpush1.bf16.msra.mxu0 0
        %2879 = vmatprep.subr.bf16.mxu0 0
        %2880 = vmatpush1.bf16.msra.mxu0 0
        %2881 = vmatprep.subr.bf16.mxu0 0
        %2882 = vmatpush1.bf16.msra.mxu0 0
        %2883 = vmatprep.subr.bf16.mxu0 0
        %2884 = vmatpush1.bf16.msra.mxu0 0
        %2885 = vmatprep.mubr.bf16.mxu0 0
        %2886 = vmatmul.mubr.bf16.gmra.mrb[0].mxu0 %v2005
        %v2887 = vpop.f32.mrb[0].mxu0
        %v2888 = vadd.f32 %v2037, %v2887
        %v2889 = vpop.f32.mrb[0].mxu0
        %v2890 = vadd.f32 %v2041, %v2889
        %v2891 = vpop.f32.mrb[0].mxu0
        %v2892 = vpop.f32.mrb[0].mxu0
        %2893 = vdwg.mxu0
        %2894 = vmatprep.subr.bf16.mxu0 %v2483
        %2895 = vmatpush1.bf16.msra.mxu0 %v2482
        %2896 = vmatprep.subr.bf16.mxu0 %v2499
        %2897 = vmatpush1.bf16.msra.mxu0 %v2498
        %2898 = vmatprep.subr.bf16.mxu0 %v2515
        %2899 = vmatpush1.bf16.msra.mxu0 %v2514
        %2900 = vmatprep.subr.bf16.mxu0 %v2531
        %2901 = vmatpush1.bf16.msra.mxu0 %v2530
        %2902 = vmatprep.subr.bf16.mxu0 %v2547
        %2903 = vmatpush1.bf16.msra.mxu0 %v2546
        %2904 = vmatprep.subr.bf16.mxu0 %v2563
        %2905 = vmatpush1.bf16.msra.mxu0 %v2562
        %2906 = vmatprep.subr.bf16.mxu0 %v2579
        %2907 = vmatpush1.bf16.msra.mxu0 %v2578
        %2908 = vmatprep.subr.bf16.mxu0 %v2595
        %2909 = vmatpush1.bf16.msra.mxu0 %v2594
        %2910 = vmatprep.subr.bf16.mxu0 0
        %2911 = vmatpush1.bf16.msra.mxu0 0
        %2912 = vmatprep.subr.bf16.mxu0 0
        %2913 = vmatpush1.bf16.msra.mxu0 0
        %2914 = vmatprep.subr.bf16.mxu0 0
        %2915 = vmatpush1.bf16.msra.mxu0 0
        %2916 = vmatprep.subr.bf16.mxu0 0
        %2917 = vmatpush1.bf16.msra.mxu0 0
        %2918 = vmatprep.subr.bf16.mxu0 0
        %2919 = vmatpush1.bf16.msra.mxu0 0
        %2920 = vmatprep.subr.bf16.mxu0 0
        %2921 = vmatpush1.bf16.msra.mxu0 0
        %2922 = vmatprep.subr.bf16.mxu0 0
        %2923 = vmatpush1.bf16.msra.mxu0 0
        %2924 = vmatprep.subr.bf16.mxu0 0
        %2925 = vmatpush1.bf16.msra.mxu0 0
        %2926 = vmatprep.mubr.bf16.mxu0 0
        %2927 = vmatmul.mubr.bf16.gmra.mrb[0].mxu0 %v2005
        %v2928 = vpop.f32.mrb[0].mxu0
        %v2929 = vadd.f32 %v2045, %v2928
        %v2930 = vpop.f32.mrb[0].mxu0
        %v2931 = vadd.f32 %v2049, %v2930
        %v2932 = vpop.f32.mrb[0].mxu0
        %v2933 = vpop.f32.mrb[0].mxu0
        %2934 = vdwg.mxu0
        %2935 = vmatprep.subr.bf16.mxu0 %v2485
        %2936 = vmatpush1.bf16.msra.mxu0 %v2484
        %2937 = vmatprep.subr.bf16.mxu0 %v2501
        %2938 = vmatpush1.bf16.msra.mxu0 %v2500
        %2939 = vmatprep.subr.bf16.mxu0 %v2517
        %2940 = vmatpush1.bf16.msra.mxu0 %v2516
        %2941 = vmatprep.subr.bf16.mxu0 %v2533
        %2942 = vmatpush1.bf16.msra.mxu0 %v2532
        %2943 = vmatprep.subr.bf16.mxu0 %v2549
        %2944 = vmatpush1.bf16.msra.mxu0 %v2548
        %2945 = vmatprep.subr.bf16.mxu0 %v2565
        %2946 = vmatpush1.bf16.msra.mxu0 %v2564
        %2947 = vmatprep.subr.bf16.mxu0 %v2581
        %2948 = vmatpush1.bf16.msra.mxu0 %v2580
        %2949 = vmatprep.subr.bf16.mxu0 %v2597
        %2950 = vmatpush1.bf16.msra.mxu0 %v2596
        %2951 = vmatprep.subr.bf16.mxu0 0
        %2952 = vmatpush1.bf16.msra.mxu0 0
        %2953 = vmatprep.subr.bf16.mxu0 0
        %2954 = vmatpush1.bf16.msra.mxu0 0
        %2955 = vmatprep.subr.bf16.mxu0 0
        %2956 = vmatpush1.bf16.msra.mxu0 0
        %2957 = vmatprep.subr.bf16.mxu0 0
        %2958 = vmatpush1.bf16.msra.mxu0 0
        %2959 = vmatprep.subr.bf16.mxu0 0
        %2960 = vmatpush1.bf16.msra.mxu0 0
        %2961 = vmatprep.subr.bf16.mxu0 0
        %2962 = vmatpush1.bf16.msra.mxu0 0
        %2963 = vmatprep.subr.bf16.mxu0 0
        %2964 = vmatpush1.bf16.msra.mxu0 0
        %2965 = vmatprep.subr.bf16.mxu0 0
        %2966 = vmatpush1.bf16.msra.mxu0 0
        %2967 = vmatprep.mubr.bf16.mxu0 0
        %2968 = vmatmul.mubr.bf16.gmra.mrb[0].mxu0 %v2005
        %v2969 = vpop.f32.mrb[0].mxu0
        %v2970 = vadd.f32 %v2053, %v2969
        %v2971 = vpop.f32.mrb[0].mxu0
        %v2972 = vadd.f32 %v2057, %v2971
        %v2973 = vpop.f32.mrb[0].mxu0
        %v2974 = vpop.f32.mrb[0].mxu0
        %2975 = vdwg.mxu0
        %2976 = vmatprep.subr.bf16.mxu0 %v2487
        %2977 = vmatpush1.bf16.msra.mxu0 %v2486
        %2978 = vmatprep.subr.bf16.mxu0 %v2503
        %2979 = vmatpush1.bf16.msra.mxu0 %v2502
        %2980 = vmatprep.subr.bf16.mxu0 %v2519
        %2981 = vmatpush1.bf16.msra.mxu0 %v2518
        %2982 = vmatprep.subr.bf16.mxu0 %v2535
        %2983 = vmatpush1.bf16.msra.mxu0 %v2534
        %2984 = vmatprep.subr.bf16.mxu0 %v2551
        %2985 = vmatpush1.bf16.msra.mxu0 %v2550
        %2986 = vmatprep.subr.bf16.mxu0 %v2567
        %2987 = vmatpush1.bf16.msra.mxu0 %v2566
        %2988 = vmatprep.subr.bf16.mxu0 %v2583
        %2989 = vmatpush1.bf16.msra.mxu0 %v2582
        %2990 = vmatprep.subr.bf16.mxu0 %v2599
        %2991 = vmatpush1.bf16.msra.mxu0 %v2598
        %2992 = vmatprep.subr.bf16.mxu0 0
        %2993 = vmatpush1.bf16.msra.mxu0 0
        %2994 = vmatprep.subr.bf16.mxu0 0
        %2995 = vmatpush1.bf16.msra.mxu0 0
        %2996 = vmatprep.subr.bf16.mxu0 0
        %2997 = vmatpush1.bf16.msra.mxu0 0
        %2998 = vmatprep.subr.bf16.mxu0 0
        %2999 = vmatpush1.bf16.msra.mxu0 0
        %3000 = vmatprep.subr.bf16.mxu0 0
        %3001 = vmatpush1.bf16.msra.mxu0 0
        %3002 = vmatprep.subr.bf16.mxu0 0
        %3003 = vmatpush1.bf16.msra.mxu0 0
        %3004 = vmatprep.subr.bf16.mxu0 0
        %3005 = vmatpush1.bf16.msra.mxu0 0
        %3006 = vmatprep.subr.bf16.mxu0 0
        %3007 = vmatpush1.bf16.msra.mxu0 0
        %3008 = vmatprep.mubr.bf16.mxu0 0
        %3009 = vmatmul.mubr.bf16.gmra.mrb[0].mxu0 %v2005
        %v3010 = vpop.f32.mrb[0].mxu0
        %v3011 = vadd.f32 %v2061, %v3010
        %v3012 = vpop.f32.mrb[0].mxu0
        %v3013 = vadd.f32 %v2065, %v3012
        %v3014 = vpop.f32.mrb[0].mxu0
        %v3015 = vpop.f32.mrb[0].mxu0
        %3016 = vdwg.mxu0
        %3017 = vmatprep.subr.bf16.mxu0 %v2489
        %3018 = vmatpush1.bf16.msra.mxu0 %v2488
        %3019 = vmatprep.subr.bf16.mxu0 %v2505
        %3020 = vmatpush1.bf16.msra.mxu0 %v2504
        %3021 = vmatprep.subr.bf16.mxu0 %v2521
        %3022 = vmatpush1.bf16.msra.mxu0 %v2520
        %3023 = vmatprep.subr.bf16.mxu0 %v2537
        %3024 = vmatpush1.bf16.msra.mxu0 %v2536
        %3025 = vmatprep.subr.bf16.mxu0 %v2553
        %3026 = vmatpush1.bf16.msra.mxu0 %v2552
        %3027 = vmatprep.subr.bf16.mxu0 %v2569
        %3028 = vmatpush1.bf16.msra.mxu0 %v2568
        %3029 = vmatprep.subr.bf16.mxu0 %v2585
        %3030 = vmatpush1.bf16.msra.mxu0 %v2584
        %3031 = vmatprep.subr.bf16.mxu0 %v2601
        %3032 = vmatpush1.bf16.msra.mxu0 %v2600
        %3033 = vmatprep.subr.bf16.mxu0 0
        %3034 = vmatpush1.bf16.msra.mxu0 0
        %3035 = vmatprep.subr.bf16.mxu0 0
        %3036 = vmatpush1.bf16.msra.mxu0 0
        %3037 = vmatprep.subr.bf16.mxu0 0
        %3038 = vmatpush1.bf16.msra.mxu0 0
        %3039 = vmatprep.subr.bf16.mxu0 0
        %3040 = vmatpush1.bf16.msra.mxu0 0
        %3041 = vmatprep.subr.bf16.mxu0 0
        %3042 = vmatpush1.bf16.msra.mxu0 0
        %3043 = vmatprep.subr.bf16.mxu0 0
        %3044 = vmatpush1.bf16.msra.mxu0 0
        %3045 = vmatprep.subr.bf16.mxu0 0
        %3046 = vmatpush1.bf16.msra.mxu0 0
        %3047 = vmatprep.subr.bf16.mxu0 0
        %3048 = vmatpush1.bf16.msra.mxu0 0
        %3049 = vmatprep.mubr.bf16.mxu0 0
        %3050 = vmatmul.mubr.bf16.gmra.mrb[0].mxu0 %v2005
        %v3051 = vpop.f32.mrb[0].mxu0
        %v3052 = vadd.f32 %v2069, %v3051
        %v3053 = vpop.f32.mrb[0].mxu0
        %v3054 = vadd.f32 %v2073, %v3053
        %v3055 = vpop.f32.mrb[0].mxu0
        %v3056 = vpop.f32.mrb[0].mxu0
        %3057 = vdwg.mxu0
        %v3058 = vmax.f32 %v2765, 0.0
        %v3059 = vmax.f32 %v2767, 0.0
        %v3060 = vmax.f32 %v2806, 0.0
        %v3061 = vmax.f32 %v2808, 0.0
        %v3062 = vmax.f32 %v2847, 0.0
        %v3063 = vmax.f32 %v2849, 0.0
        %v3064 = vmax.f32 %v2888, 0.0
        %v3065 = vmax.f32 %v2890, 0.0
        %v3066 = vmax.f32 %v2929, 0.0
        %v3067 = vmax.f32 %v2931, 0.0
        %v3068 = vmax.f32 %v2970, 0.0
        %v3069 = vmax.f32 %v2972, 0.0
        %v3070 = vmax.f32 %v3011, 0.0
        %v3071 = vmax.f32 %v3013, 0.0
        %v3072 = vmax.f32 %v3052, 0.0
        %v3073 = vmax.f32 %v3054, 0.0
        %v3074 = vld [vmem:[%s709] sm:$0xf]
        %v3075 = vld [vmem:[%s709 + $0x4] sm:$0xf]
        %v3076 = vld [vmem:[%s709 + $0x8] sm:$0xf]
        %v3077 = vld [vmem:[%s709 + $0xc] sm:$0xf]
        %v3078 = vld [vmem:[%s709 + $0x10] sm:$0xf]
        %v3079 = vld [vmem:[%s709 + $0x14] sm:$0xf]
        %v3080 = vld [vmem:[%s709 + $0x18] sm:$0xf]
        %v3081 = vld [vmem:[%s709 + $0x1c] sm:$0xf]
        %v3082 = vld [vmem:[%s709 + $0x20] sm:$0xf]
        %v3083 = vld [vmem:[%s709 + $0x24] sm:$0xf]
        %v3084 = vld [vmem:[%s709 + $0x28] sm:$0xf]
        %v3085 = vld [vmem:[%s709 + $0x2c] sm:$0xf]
        %v3086 = vld [vmem:[%s709 + $0x30] sm:$0xf]
        %v3087 = vld [vmem:[%s709 + $0x34] sm:$0xf]
        %v3088 = vld [vmem:[%s709 + $0x38] sm:$0xf]
        %v3089 = vld [vmem:[%s709 + $0x3c] sm:$0xf]
        %v3090 = vld [vmem:[%s709 + $0x40] sm:$0xf]
        %v3091 = vld [vmem:[%s709 + $0x44] sm:$0xf]
        %v3092 = vld [vmem:[%s709 + $0x48] sm:$0xf]
        %v3093 = vld [vmem:[%s709 + $0x4c] sm:$0xf]
        %v3094 = vld [vmem:[%s709 + $0x50] sm:$0xf]
        %v3095 = vld [vmem:[%s709 + $0x54] sm:$0xf]
        %v3096 = vld [vmem:[%s709 + $0x58] sm:$0xf]
        %v3097 = vld [vmem:[%s709 + $0x5c] sm:$0xf]
        %v3098 = vld [vmem:[%s709 + $0x60] sm:$0xf]
        %v3099 = vld [vmem:[%s709 + $0x64] sm:$0xf]
        %v3100 = vld [vmem:[%s709 + $0x68] sm:$0xf]
        %v3101 = vld [vmem:[%s709 + $0x6c] sm:$0xf]
        %v3102 = vld [vmem:[%s709 + $0x70] sm:$0xf]
        %v3103 = vld [vmem:[%s709 + $0x74] sm:$0xf]
        %v3104 = vld [vmem:[%s709 + $0x78] sm:$0xf]
        %v3105 = vld [vmem:[%s709 + $0x7c] sm:$0xf]
        %v3106 = vld [vmem:[%s709 + $0x80] sm:$0xf]
        %v3107 = vld [vmem:[%s709 + $0x84] sm:$0xf]
        %v3108 = vld [vmem:[%s709 + $0x88] sm:$0xf]
        %v3109 = vld [vmem:[%s709 + $0x8c] sm:$0xf]
        %v3110 = vld [vmem:[%s709 + $0x90] sm:$0xf]
        %v3111 = vld [vmem:[%s709 + $0x94] sm:$0xf]
        %v3112 = vld [vmem:[%s709 + $0x98] sm:$0xf]
        %v3113 = vld [vmem:[%s709 + $0x9c] sm:$0xf]
        %v3114 = vld [vmem:[%s709 + $0xa0] sm:$0xf]
        %v3115 = vld [vmem:[%s709 + $0xa4] sm:$0xf]
        %v3116 = vld [vmem:[%s709 + $0xa8] sm:$0xf]
        %v3117 = vld [vmem:[%s709 + $0xac] sm:$0xf]
        %v3118 = vld [vmem:[%s709 + $0xb0] sm:$0xf]
        %v3119 = vld [vmem:[%s709 + $0xb4] sm:$0xf]
        %v3120 = vld [vmem:[%s709 + $0xb8] sm:$0xf]
        %v3121 = vld [vmem:[%s709 + $0xbc] sm:$0xf]
        %v3122 = vld [vmem:[%s709 + $0xc0] sm:$0xf]
        %v3123 = vld [vmem:[%s709 + $0xc4] sm:$0xf]
        %v3124 = vld [vmem:[%s709 + $0xc8] sm:$0xf]
        %v3125 = vld [vmem:[%s709 + $0xcc] sm:$0xf]
        %v3126 = vld [vmem:[%s709 + $0xd0] sm:$0xf]
        %v3127 = vld [vmem:[%s709 + $0xd4] sm:$0xf]
        %v3128 = vld [vmem:[%s709 + $0xd8] sm:$0xf]
        %v3129 = vld [vmem:[%s709 + $0xdc] sm:$0xf]
        %v3130 = vld [vmem:[%s709 + $0xe0] sm:$0xf]
        %v3131 = vld [vmem:[%s709 + $0xe4] sm:$0xf]
        %v3132 = vld [vmem:[%s709 + $0xe8] sm:$0xf]
        %v3133 = vld [vmem:[%s709 + $0xec] sm:$0xf]
        %v3134 = vld [vmem:[%s709 + $0xf0] sm:$0xf]
        %v3135 = vld [vmem:[%s709 + $0xf4] sm:$0xf]
        %v3136 = vld [vmem:[%s709 + $0xf8] sm:$0xf]
        %v3137 = vld [vmem:[%s709 + $0xfc] sm:$0xf]
        %v3138 = vld [vmem:[%s709 + $0x100] sm:$0xf]
        %v3139 = vld [vmem:[%s709 + $0x104] sm:$0xf]
        %v3140 = vld [vmem:[%s709 + $0x108] sm:$0xf]
        %v3141 = vld [vmem:[%s709 + $0x10c] sm:$0xf]
        %v3142 = vld [vmem:[%s709 + $0x110] sm:$0xf]
        %v3143 = vld [vmem:[%s709 + $0x114] sm:$0xf]
        %v3144 = vld [vmem:[%s709 + $0x118] sm:$0xf]
        %v3145 = vld [vmem:[%s709 + $0x11c] sm:$0xf]
        %v3146 = vld [vmem:[%s709 + $0x120] sm:$0xf]
        %v3147 = vld [vmem:[%s709 + $0x124] sm:$0xf]
        %v3148 = vld [vmem:[%s709 + $0x128] sm:$0xf]
        %v3149 = vld [vmem:[%s709 + $0x12c] sm:$0xf]
        %v3150 = vld [vmem:[%s709 + $0x130] sm:$0xf]
        %v3151 = vld [vmem:[%s709 + $0x134] sm:$0xf]
        %v3152 = vld [vmem:[%s709 + $0x138] sm:$0xf]
        %v3153 = vld [vmem:[%s709 + $0x13c] sm:$0xf]
        %v3154 = vld [vmem:[%s709 + $0x140] sm:$0xf]
        %v3155 = vld [vmem:[%s709 + $0x144] sm:$0xf]
        %v3156 = vld [vmem:[%s709 + $0x148] sm:$0xf]
        %v3157 = vld [vmem:[%s709 + $0x14c] sm:$0xf]
        %v3158 = vld [vmem:[%s709 + $0x150] sm:$0xf]
        %v3159 = vld [vmem:[%s709 + $0x154] sm:$0xf]
        %v3160 = vld [vmem:[%s709 + $0x158] sm:$0xf]
        %v3161 = vld [vmem:[%s709 + $0x15c] sm:$0xf]
        %v3162 = vld [vmem:[%s709 + $0x160] sm:$0xf]
        %v3163 = vld [vmem:[%s709 + $0x164] sm:$0xf]
        %v3164 = vld [vmem:[%s709 + $0x168] sm:$0xf]
        %v3165 = vld [vmem:[%s709 + $0x16c] sm:$0xf]
        %v3166 = vld [vmem:[%s709 + $0x170] sm:$0xf]
        %v3167 = vld [vmem:[%s709 + $0x174] sm:$0xf]
        %v3168 = vld [vmem:[%s709 + $0x178] sm:$0xf]
        %v3169 = vld [vmem:[%s709 + $0x17c] sm:$0xf]
        %v3170 = vld [vmem:[%s709 + $0x180] sm:$0xf]
        %v3171 = vld [vmem:[%s709 + $0x184] sm:$0xf]
        %v3172 = vld [vmem:[%s709 + $0x188] sm:$0xf]
        %v3173 = vld [vmem:[%s709 + $0x18c] sm:$0xf]
        %v3174 = vld [vmem:[%s709 + $0x190] sm:$0xf]
        %v3175 = vld [vmem:[%s709 + $0x194] sm:$0xf]
        %v3176 = vld [vmem:[%s709 + $0x198] sm:$0xf]
        %v3177 = vld [vmem:[%s709 + $0x19c] sm:$0xf]
        %v3178 = vld [vmem:[%s709 + $0x1a0] sm:$0xf]
        %v3179 = vld [vmem:[%s709 + $0x1a4] sm:$0xf]
        %v3180 = vld [vmem:[%s709 + $0x1a8] sm:$0xf]
        %v3181 = vld [vmem:[%s709 + $0x1ac] sm:$0xf]
        %v3182 = vld [vmem:[%s709 + $0x1b0] sm:$0xf]
        %v3183 = vld [vmem:[%s709 + $0x1b4] sm:$0xf]
        %v3184 = vld [vmem:[%s709 + $0x1b8] sm:$0xf]
        %v3185 = vld [vmem:[%s709 + $0x1bc] sm:$0xf]
        %v3186 = vld [vmem:[%s709 + $0x1c0] sm:$0xf]
        %v3187 = vld [vmem:[%s709 + $0x1c4] sm:$0xf]
        %v3188 = vld [vmem:[%s709 + $0x1c8] sm:$0xf]
        %v3189 = vld [vmem:[%s709 + $0x1cc] sm:$0xf]
        %v3190 = vld [vmem:[%s709 + $0x1d0] sm:$0xf]
        %v3191 = vld [vmem:[%s709 + $0x1d4] sm:$0xf]
        %v3192 = vld [vmem:[%s709 + $0x1d8] sm:$0xf]
        %v3193 = vld [vmem:[%s709 + $0x1dc] sm:$0xf]
        %v3194 = vld [vmem:[%s709 + $0x1e0] sm:$0xf]
        %v3195 = vld [vmem:[%s709 + $0x1e4] sm:$0xf]
        %v3196 = vld [vmem:[%s709 + $0x1e8] sm:$0xf]
        %v3197 = vld [vmem:[%s709 + $0x1ec] sm:$0xf]
        %v3198 = vld [vmem:[%s709 + $0x1f0] sm:$0xf]
        %v3199 = vld [vmem:[%s709 + $0x1f4] sm:$0xf]
        %v3200 = vld [vmem:[%s709 + $0x1f8] sm:$0xf]
        %v3201 = vld [vmem:[%s709 + $0x1fc] sm:$0xf]
        %v3202 = vld [vmem:[%s709 + $0x200] sm:$0xf]
        %v3203 = vld [vmem:[%s709 + $0x204] sm:$0xf]
        %v3204 = vld [vmem:[%s709 + $0x208] sm:$0xf]
        %v3205 = vld [vmem:[%s709 + $0x20c] sm:$0xf]
        %v3206 = vld [vmem:[%s709 + $0x210] sm:$0xf]
        %v3207 = vld [vmem:[%s709 + $0x214] sm:$0xf]
        %v3208 = vld [vmem:[%s709 + $0x218] sm:$0xf]
        %v3209 = vld [vmem:[%s709 + $0x21c] sm:$0xf]
        %v3210 = vld [vmem:[%s709 + $0x220] sm:$0xf]
        %v3211 = vld [vmem:[%s709 + $0x224] sm:$0xf]
        %v3212 = vld [vmem:[%s709 + $0x228] sm:$0xf]
        %v3213 = vld [vmem:[%s709 + $0x22c] sm:$0xf]
        %v3214 = vld [vmem:[%s709 + $0x230] sm:$0xf]
        %v3215 = vld [vmem:[%s709 + $0x234] sm:$0xf]
        %v3216 = vld [vmem:[%s709 + $0x238] sm:$0xf]
        %v3217 = vld [vmem:[%s709 + $0x23c] sm:$0xf]
        %v3218 = vld [vmem:[%s709 + $0x240] sm:$0xf]
        %v3219 = vld [vmem:[%s709 + $0x244] sm:$0xf]
        %v3220 = vld [vmem:[%s709 + $0x248] sm:$0xf]
        %v3221 = vld [vmem:[%s709 + $0x24c] sm:$0xf]
        %v3222 = vld [vmem:[%s709 + $0x250] sm:$0xf]
        %v3223 = vld [vmem:[%s709 + $0x254] sm:$0xf]
        %v3224 = vld [vmem:[%s709 + $0x258] sm:$0xf]
        %v3225 = vld [vmem:[%s709 + $0x25c] sm:$0xf]
        %v3226 = vld [vmem:[%s709 + $0x260] sm:$0xf]
        %v3227 = vld [vmem:[%s709 + $0x264] sm:$0xf]
        %v3228 = vld [vmem:[%s709 + $0x268] sm:$0xf]
        %v3229 = vld [vmem:[%s709 + $0x26c] sm:$0xf]
        %v3230 = vld [vmem:[%s709 + $0x270] sm:$0xf]
        %v3231 = vld [vmem:[%s709 + $0x274] sm:$0xf]
        %v3232 = vld [vmem:[%s709 + $0x278] sm:$0xf]
        %v3233 = vld [vmem:[%s709 + $0x27c] sm:$0xf]
        %v3234 = vld [vmem:[%s709 + $0x280] sm:$0xf]
        %v3235 = vld [vmem:[%s709 + $0x284] sm:$0xf]
        %v3236 = vld [vmem:[%s709 + $0x288] sm:$0xf]
        %v3237 = vld [vmem:[%s709 + $0x28c] sm:$0xf]
        %v3238 = vld [vmem:[%s709 + $0x290] sm:$0xf]
        %v3239 = vld [vmem:[%s709 + $0x294] sm:$0xf]
        %v3240 = vld [vmem:[%s709 + $0x298] sm:$0xf]
        %v3241 = vld [vmem:[%s709 + $0x29c] sm:$0xf]
        %v3242 = vld [vmem:[%s709 + $0x2a0] sm:$0xf]
        %v3243 = vld [vmem:[%s709 + $0x2a4] sm:$0xf]
        %v3244 = vld [vmem:[%s709 + $0x2a8] sm:$0xf]
        %v3245 = vld [vmem:[%s709 + $0x2ac] sm:$0xf]
        %v3246 = vld [vmem:[%s709 + $0x2b0] sm:$0xf]
        %v3247 = vld [vmem:[%s709 + $0x2b4] sm:$0xf]
        %v3248 = vld [vmem:[%s709 + $0x2b8] sm:$0xf]
        %v3249 = vld [vmem:[%s709 + $0x2bc] sm:$0xf]
        %v3250 = vld [vmem:[%s709 + $0x2c0] sm:$0xf]
        %v3251 = vld [vmem:[%s709 + $0x2c4] sm:$0xf]
        %v3252 = vld [vmem:[%s709 + $0x2c8] sm:$0xf]
        %v3253 = vld [vmem:[%s709 + $0x2cc] sm:$0xf]
        %v3254 = vld [vmem:[%s709 + $0x2d0] sm:$0xf]
        %v3255 = vld [vmem:[%s709 + $0x2d4] sm:$0xf]
        %v3256 = vld [vmem:[%s709 + $0x2d8] sm:$0xf]
        %v3257 = vld [vmem:[%s709 + $0x2dc] sm:$0xf]
        %v3258 = vld [vmem:[%s709 + $0x2e0] sm:$0xf]
        %v3259 = vld [vmem:[%s709 + $0x2e4] sm:$0xf]
        %v3260 = vld [vmem:[%s709 + $0x2e8] sm:$0xf]
        %v3261 = vld [vmem:[%s709 + $0x2ec] sm:$0xf]
        %v3262 = vld [vmem:[%s709 + $0x2f0] sm:$0xf]
        %v3263 = vld [vmem:[%s709 + $0x2f4] sm:$0xf]
        %v3264 = vld [vmem:[%s709 + $0x2f8] sm:$0xf]
        %v3265 = vld [vmem:[%s709 + $0x2fc] sm:$0xf]
        %v3266 = vld [vmem:[%s709 + $0x300] sm:$0xf]
        %v3267 = vld [vmem:[%s709 + $0x304] sm:$0xf]
        %v3268 = vld [vmem:[%s709 + $0x308] sm:$0xf]
        %v3269 = vld [vmem:[%s709 + $0x30c] sm:$0xf]
        %v3270 = vld [vmem:[%s709 + $0x310] sm:$0xf]
        %v3271 = vld [vmem:[%s709 + $0x314] sm:$0xf]
        %v3272 = vld [vmem:[%s709 + $0x318] sm:$0xf]
        %v3273 = vld [vmem:[%s709 + $0x31c] sm:$0xf]
        %v3274 = vld [vmem:[%s709 + $0x320] sm:$0xf]
        %v3275 = vld [vmem:[%s709 + $0x324] sm:$0xf]
        %v3276 = vld [vmem:[%s709 + $0x328] sm:$0xf]
        %v3277 = vld [vmem:[%s709 + $0x32c] sm:$0xf]
        %v3278 = vld [vmem:[%s709 + $0x330] sm:$0xf]
        %v3279 = vld [vmem:[%s709 + $0x334] sm:$0xf]
        %v3280 = vld [vmem:[%s709 + $0x338] sm:$0xf]
        %v3281 = vld [vmem:[%s709 + $0x33c] sm:$0xf]
        %v3282 = vld [vmem:[%s709 + $0x340] sm:$0xf]
        %v3283 = vld [vmem:[%s709 + $0x344] sm:$0xf]
        %v3284 = vld [vmem:[%s709 + $0x348] sm:$0xf]
        %v3285 = vld [vmem:[%s709 + $0x34c] sm:$0xf]
        %v3286 = vld [vmem:[%s709 + $0x350] sm:$0xf]
        %v3287 = vld [vmem:[%s709 + $0x354] sm:$0xf]
        %v3288 = vld [vmem:[%s709 + $0x358] sm:$0xf]
        %v3289 = vld [vmem:[%s709 + $0x35c] sm:$0xf]
        %v3290 = vld [vmem:[%s709 + $0x360] sm:$0xf]
        %v3291 = vld [vmem:[%s709 + $0x364] sm:$0xf]
        %v3292 = vld [vmem:[%s709 + $0x368] sm:$0xf]
        %v3293 = vld [vmem:[%s709 + $0x36c] sm:$0xf]
        %v3294 = vld [vmem:[%s709 + $0x370] sm:$0xf]
        %v3295 = vld [vmem:[%s709 + $0x374] sm:$0xf]
        %v3296 = vld [vmem:[%s709 + $0x378] sm:$0xf]
        %v3297 = vld [vmem:[%s709 + $0x37c] sm:$0xf]
        %v3298 = vld [vmem:[%s709 + $0x380] sm:$0xf]
        %v3299 = vld [vmem:[%s709 + $0x384] sm:$0xf]
        %v3300 = vld [vmem:[%s709 + $0x388] sm:$0xf]
        %v3301 = vld [vmem:[%s709 + $0x38c] sm:$0xf]
        %v3302 = vld [vmem:[%s709 + $0x390] sm:$0xf]
        %v3303 = vld [vmem:[%s709 + $0x394] sm:$0xf]
        %v3304 = vld [vmem:[%s709 + $0x398] sm:$0xf]
        %v3305 = vld [vmem:[%s709 + $0x39c] sm:$0xf]
        %v3306 = vld [vmem:[%s709 + $0x3a0] sm:$0xf]
        %v3307 = vld [vmem:[%s709 + $0x3a4] sm:$0xf]
        %v3308 = vld [vmem:[%s709 + $0x3a8] sm:$0xf]
        %v3309 = vld [vmem:[%s709 + $0x3ac] sm:$0xf]
        %v3310 = vld [vmem:[%s709 + $0x3b0] sm:$0xf]
        %v3311 = vld [vmem:[%s709 + $0x3b4] sm:$0xf]
        %v3312 = vld [vmem:[%s709 + $0x3b8] sm:$0xf]
        %v3313 = vld [vmem:[%s709 + $0x3bc] sm:$0xf]
        %v3314 = vld [vmem:[%s709 + $0x3c0] sm:$0xf]
        %v3315 = vld [vmem:[%s709 + $0x3c4] sm:$0xf]
        %v3316 = vld [vmem:[%s709 + $0x3c8] sm:$0xf]
        %v3317 = vld [vmem:[%s709 + $0x3cc] sm:$0xf]
        %v3318 = vld [vmem:[%s709 + $0x3d0] sm:$0xf]
        %v3319 = vld [vmem:[%s709 + $0x3d4] sm:$0xf]
        %v3320 = vld [vmem:[%s709 + $0x3d8] sm:$0xf]
        %v3321 = vld [vmem:[%s709 + $0x3dc] sm:$0xf]
        %v3322 = vld [vmem:[%s709 + $0x3e0] sm:$0xf]
        %v3323 = vld [vmem:[%s709 + $0x3e4] sm:$0xf]
        %v3324 = vld [vmem:[%s709 + $0x3e8] sm:$0xf]
        %v3325 = vld [vmem:[%s709 + $0x3ec] sm:$0xf]
        %v3326 = vld [vmem:[%s709 + $0x3f0] sm:$0xf]
        %v3327 = vld [vmem:[%s709 + $0x3f4] sm:$0xf]
        %v3328 = vld [vmem:[%s709 + $0x3f8] sm:$0xf]
        %v3329 = vld [vmem:[%s709 + $0x3fc] sm:$0xf]
        %v3330 = vpack.c.bf16 %v3058, %v3058
        %v3331 = vpack.c.bf16 %v3059, %v3059
        %v3332 = vpack.c.bf16 %v3060, %v3060
        %v3333 = vpack.c.bf16 %v3061, %v3061
        %v3334 = vpack.c.bf16 %v3062, %v3062
        %v3335 = vpack.c.bf16 %v3063, %v3063
        %v3336 = vpack.c.bf16 %v3064, %v3064
        %v3337 = vpack.c.bf16 %v3065, %v3065
        %v3338 = vpack.c.bf16 %v3066, %v3066
        %v3339 = vpack.c.bf16 %v3067, %v3067
        %v3340 = vpack.c.bf16 %v3068, %v3068
        %v3341 = vpack.c.bf16 %v3069, %v3069
        %v3342 = vpack.c.bf16 %v3070, %v3070
        %v3343 = vpack.c.bf16 %v3071, %v3071
        %v3344 = vpack.c.bf16 %v3072, %v3072
        %v3345 = vpack.c.bf16 %v3073, %v3073
        %v3346 = vld [vmem:[%s811] sm:$0x1]
        %v3348 = vlaneseq
        %v3349 = vshrl.u32 %v3348, 7
        %v3350 = vsub.s32 0, %v3349
        %v3351 = vrot.slane %v3346, %v3350
        %v3609 = vunpack.c.l.b16 %v3074
        %v3610 = vunpack.c.l.b16 %v3075
        %v3611 = vunpack.c.l.b16 %v3076
        %v3612 = vunpack.c.l.b16 %v3077
        %v3613 = vunpack.c.l.b16 %v3078
        %v3614 = vunpack.c.l.b16 %v3079
        %v3615 = vunpack.c.l.b16 %v3080
        %v3616 = vunpack.c.l.b16 %v3081
        %v3617 = vunpack.c.l.b16 %v3082
        %v3618 = vunpack.c.l.b16 %v3083
        %v3619 = vunpack.c.l.b16 %v3084
        %v3620 = vunpack.c.l.b16 %v3085
        %v3621 = vunpack.c.l.b16 %v3086
        %v3622 = vunpack.c.l.b16 %v3087
        %v3623 = vunpack.c.l.b16 %v3088
        %v3624 = vunpack.c.l.b16 %v3089
        %v3625 = vunpack.c.l.b16 %v3090
        %v3626 = vunpack.c.l.b16 %v3091
        %v3627 = vunpack.c.l.b16 %v3092
        %v3628 = vunpack.c.l.b16 %v3093
        %v3629 = vunpack.c.l.b16 %v3094
        %v3630 = vunpack.c.l.b16 %v3095
        %v3631 = vunpack.c.l.b16 %v3096
        %v3632 = vunpack.c.l.b16 %v3097
        %v3633 = vunpack.c.l.b16 %v3098
        %v3634 = vunpack.c.l.b16 %v3099
        %v3635 = vunpack.c.l.b16 %v3100
        %v3636 = vunpack.c.l.b16 %v3101
        %v3637 = vunpack.c.l.b16 %v3102
        %v3638 = vunpack.c.l.b16 %v3103
        %v3639 = vunpack.c.l.b16 %v3104
        %v3640 = vunpack.c.l.b16 %v3105
        %v3641 = vunpack.c.l.b16 %v3106
        %v3642 = vunpack.c.l.b16 %v3107
        %v3643 = vunpack.c.l.b16 %v3108
        %v3644 = vunpack.c.l.b16 %v3109
        %v3645 = vunpack.c.l.b16 %v3110
        %v3646 = vunpack.c.l.b16 %v3111
        %v3647 = vunpack.c.l.b16 %v3112
        %v3648 = vunpack.c.l.b16 %v3113
        %v3649 = vunpack.c.l.b16 %v3114
        %v3650 = vunpack.c.l.b16 %v3115
        %v3651 = vunpack.c.l.b16 %v3116
        %v3652 = vunpack.c.l.b16 %v3117
        %v3653 = vunpack.c.l.b16 %v3118
        %v3654 = vunpack.c.l.b16 %v3119
        %v3655 = vunpack.c.l.b16 %v3120
        %v3656 = vunpack.c.l.b16 %v3121
        %v3657 = vunpack.c.l.b16 %v3122
        %v3658 = vunpack.c.l.b16 %v3123
        %v3659 = vunpack.c.l.b16 %v3124
        %v3660 = vunpack.c.l.b16 %v3125
        %v3661 = vunpack.c.l.b16 %v3126
        %v3662 = vunpack.c.l.b16 %v3127
        %v3663 = vunpack.c.l.b16 %v3128
        %v3664 = vunpack.c.l.b16 %v3129
        %v3665 = vunpack.c.l.b16 %v3130
        %v3666 = vunpack.c.l.b16 %v3131
        %v3667 = vunpack.c.l.b16 %v3132
        %v3668 = vunpack.c.l.b16 %v3133
        %v3669 = vunpack.c.l.b16 %v3134
        %v3670 = vunpack.c.l.b16 %v3135
        %v3671 = vunpack.c.l.b16 %v3136
        %v3672 = vunpack.c.l.b16 %v3137
        %v3673 = vunpack.c.l.b16 %v3138
        %v3674 = vunpack.c.l.b16 %v3139
        %v3675 = vunpack.c.l.b16 %v3140
        %v3676 = vunpack.c.l.b16 %v3141
        %v3677 = vunpack.c.l.b16 %v3142
        %v3678 = vunpack.c.l.b16 %v3143
        %v3679 = vunpack.c.l.b16 %v3144
        %v3680 = vunpack.c.l.b16 %v3145
        %v3681 = vunpack.c.l.b16 %v3146
        %v3682 = vunpack.c.l.b16 %v3147
        %v3683 = vunpack.c.l.b16 %v3148
        %v3684 = vunpack.c.l.b16 %v3149
        %v3685 = vunpack.c.l.b16 %v3150
        %v3686 = vunpack.c.l.b16 %v3151
        %v3687 = vunpack.c.l.b16 %v3152
        %v3688 = vunpack.c.l.b16 %v3153
        %v3689 = vunpack.c.l.b16 %v3154
        %v3690 = vunpack.c.l.b16 %v3155
        %v3691 = vunpack.c.l.b16 %v3156
        %v3692 = vunpack.c.l.b16 %v3157
        %v3693 = vunpack.c.l.b16 %v3158
        %v3694 = vunpack.c.l.b16 %v3159
        %v3695 = vunpack.c.l.b16 %v3160
        %v3696 = vunpack.c.l.b16 %v3161
        %v3697 = vunpack.c.l.b16 %v3162
        %v3698 = vunpack.c.l.b16 %v3163
        %v3699 = vunpack.c.l.b16 %v3164
        %v3700 = vunpack.c.l.b16 %v3165
        %v3701 = vunpack.c.l.b16 %v3166
        %v3702 = vunpack.c.l.b16 %v3167
        %v3703 = vunpack.c.l.b16 %v3168
        %v3704 = vunpack.c.l.b16 %v3169
        %v3705 = vunpack.c.l.b16 %v3170
        %v3706 = vunpack.c.l.b16 %v3171
        %v3707 = vunpack.c.l.b16 %v3172
        %v3708 = vunpack.c.l.b16 %v3173
        %v3709 = vunpack.c.l.b16 %v3174
        %v3710 = vunpack.c.l.b16 %v3175
        %v3711 = vunpack.c.l.b16 %v3176
        %v3712 = vunpack.c.l.b16 %v3177
        %v3713 = vunpack.c.l.b16 %v3178
        %v3714 = vunpack.c.l.b16 %v3179
        %v3715 = vunpack.c.l.b16 %v3180
        %v3716 = vunpack.c.l.b16 %v3181
        %v3717 = vunpack.c.l.b16 %v3182
        %v3718 = vunpack.c.l.b16 %v3183
        %v3719 = vunpack.c.l.b16 %v3184
        %v3720 = vunpack.c.l.b16 %v3185
        %v3721 = vunpack.c.l.b16 %v3186
        %v3722 = vunpack.c.l.b16 %v3187
        %v3723 = vunpack.c.l.b16 %v3188
        %v3724 = vunpack.c.l.b16 %v3189
        %v3725 = vunpack.c.l.b16 %v3190
        %v3726 = vunpack.c.l.b16 %v3191
        %v3727 = vunpack.c.l.b16 %v3192
        %v3728 = vunpack.c.l.b16 %v3193
        %v3729 = vunpack.c.l.b16 %v3194
        %v3730 = vunpack.c.l.b16 %v3195
        %v3731 = vunpack.c.l.b16 %v3196
        %v3732 = vunpack.c.l.b16 %v3197
        %v3733 = vunpack.c.l.b16 %v3198
        %v3734 = vunpack.c.l.b16 %v3199
        %v3735 = vunpack.c.l.b16 %v3200
        %v3736 = vunpack.c.l.b16 %v3201
        %v3737 = vunpack.c.l.b16 %v3202
        %v3738 = vunpack.c.l.b16 %v3203
        %v3739 = vunpack.c.l.b16 %v3204
        %v3740 = vunpack.c.l.b16 %v3205
        %v3741 = vunpack.c.l.b16 %v3206
        %v3742 = vunpack.c.l.b16 %v3207
        %v3743 = vunpack.c.l.b16 %v3208
        %v3744 = vunpack.c.l.b16 %v3209
        %v3745 = vunpack.c.l.b16 %v3210
        %v3746 = vunpack.c.l.b16 %v3211
        %v3747 = vunpack.c.l.b16 %v3212
        %v3748 = vunpack.c.l.b16 %v3213
        %v3749 = vunpack.c.l.b16 %v3214
        %v3750 = vunpack.c.l.b16 %v3215
        %v3751 = vunpack.c.l.b16 %v3216
        %v3752 = vunpack.c.l.b16 %v3217
        %v3753 = vunpack.c.l.b16 %v3218
        %v3754 = vunpack.c.l.b16 %v3219
        %v3755 = vunpack.c.l.b16 %v3220
        %v3756 = vunpack.c.l.b16 %v3221
        %v3757 = vunpack.c.l.b16 %v3222
        %v3758 = vunpack.c.l.b16 %v3223
        %v3759 = vunpack.c.l.b16 %v3224
        %v3760 = vunpack.c.l.b16 %v3225
        %v3761 = vunpack.c.l.b16 %v3226
        %v3762 = vunpack.c.l.b16 %v3227
        %v3763 = vunpack.c.l.b16 %v3228
        %v3764 = vunpack.c.l.b16 %v3229
        %v3765 = vunpack.c.l.b16 %v3230
        %v3766 = vunpack.c.l.b16 %v3231
        %v3767 = vunpack.c.l.b16 %v3232
        %v3768 = vunpack.c.l.b16 %v3233
        %v3769 = vunpack.c.l.b16 %v3234
        %v3770 = vunpack.c.l.b16 %v3235
        %v3771 = vunpack.c.l.b16 %v3236
        %v3772 = vunpack.c.l.b16 %v3237
        %v3773 = vunpack.c.l.b16 %v3238
        %v3774 = vunpack.c.l.b16 %v3239
        %v3775 = vunpack.c.l.b16 %v3240
        %v3776 = vunpack.c.l.b16 %v3241
        %v3777 = vunpack.c.l.b16 %v3242
        %v3778 = vunpack.c.l.b16 %v3243
        %v3779 = vunpack.c.l.b16 %v3244
        %v3780 = vunpack.c.l.b16 %v3245
        %v3781 = vunpack.c.l.b16 %v3246
        %v3782 = vunpack.c.l.b16 %v3247
        %v3783 = vunpack.c.l.b16 %v3248
        %v3784 = vunpack.c.l.b16 %v3249
        %v3785 = vunpack.c.l.b16 %v3250
        %v3786 = vunpack.c.l.b16 %v3251
        %v3787 = vunpack.c.l.b16 %v3252
        %v3788 = vunpack.c.l.b16 %v3253
        %v3789 = vunpack.c.l.b16 %v3254
        %v3790 = vunpack.c.l.b16 %v3255
        %v3791 = vunpack.c.l.b16 %v3256
        %v3792 = vunpack.c.l.b16 %v3257
        %v3793 = vunpack.c.l.b16 %v3258
        %v3794 = vunpack.c.l.b16 %v3259
        %v3795 = vunpack.c.l.b16 %v3260
        %v3796 = vunpack.c.l.b16 %v3261
        %v3797 = vunpack.c.l.b16 %v3262
        %v3798 = vunpack.c.l.b16 %v3263
        %v3799 = vunpack.c.l.b16 %v3264
        %v3800 = vunpack.c.l.b16 %v3265
        %v3801 = vunpack.c.l.b16 %v3266
        %v3802 = vunpack.c.l.b16 %v3267
        %v3803 = vunpack.c.l.b16 %v3268
        %v3804 = vunpack.c.l.b16 %v3269
        %v3805 = vunpack.c.l.b16 %v3270
        %v3806 = vunpack.c.l.b16 %v3271
        %v3807 = vunpack.c.l.b16 %v3272
        %v3808 = vunpack.c.l.b16 %v3273
        %v3809 = vunpack.c.l.b16 %v3274
        %v3810 = vunpack.c.l.b16 %v3275
        %v3811 = vunpack.c.l.b16 %v3276
        %v3812 = vunpack.c.l.b16 %v3277
        %v3813 = vunpack.c.l.b16 %v3278
        %v3814 = vunpack.c.l.b16 %v3279
        %v3815 = vunpack.c.l.b16 %v3280
        %v3816 = vunpack.c.l.b16 %v3281
        %v3817 = vunpack.c.l.b16 %v3282
        %v3818 = vunpack.c.l.b16 %v3283
        %v3819 = vunpack.c.l.b16 %v3284
        %v3820 = vunpack.c.l.b16 %v3285
        %v3821 = vunpack.c.l.b16 %v3286
        %v3822 = vunpack.c.l.b16 %v3287
        %v3823 = vunpack.c.l.b16 %v3288
        %v3824 = vunpack.c.l.b16 %v3289
        %v3825 = vunpack.c.l.b16 %v3290
        %v3826 = vunpack.c.l.b16 %v3291
        %v3827 = vunpack.c.l.b16 %v3292
        %v3828 = vunpack.c.l.b16 %v3293
        %v3829 = vunpack.c.l.b16 %v3294
        %v3830 = vunpack.c.l.b16 %v3295
        %v3831 = vunpack.c.l.b16 %v3296
        %v3832 = vunpack.c.l.b16 %v3297
        %v3833 = vunpack.c.l.b16 %v3298
        %v3834 = vunpack.c.l.b16 %v3299
        %v3835 = vunpack.c.l.b16 %v3300
        %v3836 = vunpack.c.l.b16 %v3301
        %v3837 = vunpack.c.l.b16 %v3302
        %v3838 = vunpack.c.l.b16 %v3303
        %v3839 = vunpack.c.l.b16 %v3304
        %v3840 = vunpack.c.l.b16 %v3305
        %v3841 = vunpack.c.l.b16 %v3306
        %v3842 = vunpack.c.l.b16 %v3307
        %v3843 = vunpack.c.l.b16 %v3308
        %v3844 = vunpack.c.l.b16 %v3309
        %v3845 = vunpack.c.l.b16 %v3310
        %v3846 = vunpack.c.l.b16 %v3311
        %v3847 = vunpack.c.l.b16 %v3312
        %v3848 = vunpack.c.l.b16 %v3313
        %v3849 = vunpack.c.l.b16 %v3314
        %v3850 = vunpack.c.l.b16 %v3315
        %v3851 = vunpack.c.l.b16 %v3316
        %v3852 = vunpack.c.l.b16 %v3317
        %v3853 = vunpack.c.l.b16 %v3318
        %v3854 = vunpack.c.l.b16 %v3319
        %v3855 = vunpack.c.l.b16 %v3320
        %v3856 = vunpack.c.l.b16 %v3321
        %v3857 = vunpack.c.l.b16 %v3322
        %v3858 = vunpack.c.l.b16 %v3323
        %v3859 = vunpack.c.l.b16 %v3324
        %v3860 = vunpack.c.l.b16 %v3325
        %v3861 = vunpack.c.l.b16 %v3326
        %v3862 = vunpack.c.l.b16 %v3327
        %v3863 = vunpack.c.l.b16 %v3328
        %v3864 = vunpack.c.l.b16 %v3329
        %v3865 = vpack.c.b16 %v3610, %v3609
        %v3866 = vpack.c.b16 %v3612, %v3611
        %v3867 = vpack.c.b16 %v3614, %v3613
        %v3868 = vpack.c.b16 %v3616, %v3615
        %v3869 = vpack.c.b16 %v3618, %v3617
        %v3870 = vpack.c.b16 %v3620, %v3619
        %v3871 = vpack.c.b16 %v3622, %v3621
        %v3872 = vpack.c.b16 %v3624, %v3623
        %v3873 = vpack.c.b16 %v3626, %v3625
        %v3874 = vpack.c.b16 %v3628, %v3627
        %v3875 = vpack.c.b16 %v3630, %v3629
        %v3876 = vpack.c.b16 %v3632, %v3631
        %v3877 = vpack.c.b16 %v3634, %v3633
        %v3878 = vpack.c.b16 %v3636, %v3635
        %v3879 = vpack.c.b16 %v3638, %v3637
        %v3880 = vpack.c.b16 %v3640, %v3639
        %v3881 = vpack.c.b16 %v3642, %v3641
        %v3882 = vpack.c.b16 %v3644, %v3643
        %v3883 = vpack.c.b16 %v3646, %v3645
        %v3884 = vpack.c.b16 %v3648, %v3647
        %v3885 = vpack.c.b16 %v3650, %v3649
        %v3886 = vpack.c.b16 %v3652, %v3651
        %v3887 = vpack.c.b16 %v3654, %v3653
        %v3888 = vpack.c.b16 %v3656, %v3655
        %v3889 = vpack.c.b16 %v3658, %v3657
        %v3890 = vpack.c.b16 %v3660, %v3659
        %v3891 = vpack.c.b16 %v3662, %v3661
        %v3892 = vpack.c.b16 %v3664, %v3663
        %v3893 = vpack.c.b16 %v3666, %v3665
        %v3894 = vpack.c.b16 %v3668, %v3667
        %v3895 = vpack.c.b16 %v3670, %v3669
        %v3896 = vpack.c.b16 %v3672, %v3671
        %v3897 = vpack.c.b16 %v3674, %v3673
        %v3898 = vpack.c.b16 %v3676, %v3675
        %v3899 = vpack.c.b16 %v3678, %v3677
        %v3900 = vpack.c.b16 %v3680, %v3679
        %v3901 = vpack.c.b16 %v3682, %v3681
        %v3902 = vpack.c.b16 %v3684, %v3683
        %v3903 = vpack.c.b16 %v3686, %v3685
        %v3904 = vpack.c.b16 %v3688, %v3687
        %v3905 = vpack.c.b16 %v3690, %v3689
        %v3906 = vpack.c.b16 %v3692, %v3691
        %v3907 = vpack.c.b16 %v3694, %v3693
        %v3908 = vpack.c.b16 %v3696, %v3695
        %v3909 = vpack.c.b16 %v3698, %v3697
        %v3910 = vpack.c.b16 %v3700, %v3699
        %v3911 = vpack.c.b16 %v3702, %v3701
        %v3912 = vpack.c.b16 %v3704, %v3703
        %v3913 = vpack.c.b16 %v3706, %v3705
        %v3914 = vpack.c.b16 %v3708, %v3707
        %v3915 = vpack.c.b16 %v3710, %v3709
        %v3916 = vpack.c.b16 %v3712, %v3711
        %v3917 = vpack.c.b16 %v3714, %v3713
        %v3918 = vpack.c.b16 %v3716, %v3715
        %v3919 = vpack.c.b16 %v3718, %v3717
        %v3920 = vpack.c.b16 %v3720, %v3719
        %v3921 = vpack.c.b16 %v3722, %v3721
        %v3922 = vpack.c.b16 %v3724, %v3723
        %v3923 = vpack.c.b16 %v3726, %v3725
        %v3924 = vpack.c.b16 %v3728, %v3727
        %v3925 = vpack.c.b16 %v3730, %v3729
        %v3926 = vpack.c.b16 %v3732, %v3731
        %v3927 = vpack.c.b16 %v3734, %v3733
        %v3928 = vpack.c.b16 %v3736, %v3735
        %v3929 = vpack.c.b16 %v3738, %v3737
        %v3930 = vpack.c.b16 %v3740, %v3739
        %v3931 = vpack.c.b16 %v3742, %v3741
        %v3932 = vpack.c.b16 %v3744, %v3743
        %v3933 = vpack.c.b16 %v3746, %v3745
        %v3934 = vpack.c.b16 %v3748, %v3747
        %v3935 = vpack.c.b16 %v3750, %v3749
        %v3936 = vpack.c.b16 %v3752, %v3751
        %v3937 = vpack.c.b16 %v3754, %v3753
        %v3938 = vpack.c.b16 %v3756, %v3755
        %v3939 = vpack.c.b16 %v3758, %v3757
        %v3940 = vpack.c.b16 %v3760, %v3759
        %v3941 = vpack.c.b16 %v3762, %v3761
        %v3942 = vpack.c.b16 %v3764, %v3763
        %v3943 = vpack.c.b16 %v3766, %v3765
        %v3944 = vpack.c.b16 %v3768, %v3767
        %v3945 = vpack.c.b16 %v3770, %v3769
        %v3946 = vpack.c.b16 %v3772, %v3771
        %v3947 = vpack.c.b16 %v3774, %v3773
        %v3948 = vpack.c.b16 %v3776, %v3775
        %v3949 = vpack.c.b16 %v3778, %v3777
        %v3950 = vpack.c.b16 %v3780, %v3779
        %v3951 = vpack.c.b16 %v3782, %v3781
        %v3952 = vpack.c.b16 %v3784, %v3783
        %v3953 = vpack.c.b16 %v3786, %v3785
        %v3954 = vpack.c.b16 %v3788, %v3787
        %v3955 = vpack.c.b16 %v3790, %v3789
        %v3956 = vpack.c.b16 %v3792, %v3791
        %v3957 = vpack.c.b16 %v3794, %v3793
        %v3958 = vpack.c.b16 %v3796, %v3795
        %v3959 = vpack.c.b16 %v3798, %v3797
        %v3960 = vpack.c.b16 %v3800, %v3799
        %v3961 = vpack.c.b16 %v3802, %v3801
        %v3962 = vpack.c.b16 %v3804, %v3803
        %v3963 = vpack.c.b16 %v3806, %v3805
        %v3964 = vpack.c.b16 %v3808, %v3807
        %v3965 = vpack.c.b16 %v3810, %v3809
        %v3966 = vpack.c.b16 %v3812, %v3811
        %v3967 = vpack.c.b16 %v3814, %v3813
        %v3968 = vpack.c.b16 %v3816, %v3815
        %v3969 = vpack.c.b16 %v3818, %v3817
        %v3970 = vpack.c.b16 %v3820, %v3819
        %v3971 = vpack.c.b16 %v3822, %v3821
        %v3972 = vpack.c.b16 %v3824, %v3823
        %v3973 = vpack.c.b16 %v3826, %v3825
        %v3974 = vpack.c.b16 %v3828, %v3827
        %v3975 = vpack.c.b16 %v3830, %v3829
        %v3976 = vpack.c.b16 %v3832, %v3831
        %v3977 = vpack.c.b16 %v3834, %v3833
        %v3978 = vpack.c.b16 %v3836, %v3835
        %v3979 = vpack.c.b16 %v3838, %v3837
        %v3980 = vpack.c.b16 %v3840, %v3839
        %v3981 = vpack.c.b16 %v3842, %v3841
        %v3982 = vpack.c.b16 %v3844, %v3843
        %v3983 = vpack.c.b16 %v3846, %v3845
        %v3984 = vpack.c.b16 %v3848, %v3847
        %v3985 = vpack.c.b16 %v3850, %v3849
        %v3986 = vpack.c.b16 %v3852, %v3851
        %v3987 = vpack.c.b16 %v3854, %v3853
        %v3988 = vpack.c.b16 %v3856, %v3855
        %v3989 = vpack.c.b16 %v3858, %v3857
        %v3990 = vpack.c.b16 %v3860, %v3859
        %v3991 = vpack.c.b16 %v3862, %v3861
        %v3992 = vpack.c.b16 %v3864, %v3863
        %4121 = vmatprep.subr.bf16.mxu0 0
        %4122 = vmatpush1.bf16.msra.mxu0 %v3865
        %4123 = vmatprep.subr.bf16.mxu0 0
        %4124 = vmatpush1.bf16.msra.mxu0 %v3866
        %4125 = vmatprep.subr.bf16.mxu0 0
        %4126 = vmatpush1.bf16.msra.mxu0 %v3867
        %4127 = vmatprep.subr.bf16.mxu0 0
        %4128 = vmatpush1.bf16.msra.mxu0 %v3868
        %4129 = vmatprep.subr.bf16.mxu0 0
        %4130 = vmatpush1.bf16.msra.mxu0 %v3869
        %4131 = vmatprep.subr.bf16.mxu0 0
        %4132 = vmatpush1.bf16.msra.mxu0 %v3870
        %4133 = vmatprep.subr.bf16.mxu0 0
        %4134 = vmatpush1.bf16.msra.mxu0 %v3871
        %4135 = vmatprep.subr.bf16.mxu0 0
        %4136 = vmatpush1.bf16.msra.mxu0 %v3872
        %4137 = vmatprep.subr.bf16.mxu0 0
        %4138 = vmatpush1.bf16.msra.mxu0 %v3873
        %4139 = vmatprep.subr.bf16.mxu0 0
        %4140 = vmatpush1.bf16.msra.mxu0 %v3874
        %4141 = vmatprep.subr.bf16.mxu0 0
        %4142 = vmatpush1.bf16.msra.mxu0 %v3875
        %4143 = vmatprep.subr.bf16.mxu0 0
        %4144 = vmatpush1.bf16.msra.mxu0 %v3876
        %4145 = vmatprep.subr.bf16.mxu0 0
        %4146 = vmatpush1.bf16.msra.mxu0 %v3877
        %4147 = vmatprep.subr.bf16.mxu0 0
        %4148 = vmatpush1.bf16.msra.mxu0 %v3878
        %4149 = vmatprep.subr.bf16.mxu0 0
        %4150 = vmatpush1.bf16.msra.mxu0 %v3879
        %4151 = vmatprep.subr.bf16.mxu0 0
        %4152 = vmatpush1.bf16.msra.mxu0 %v3880
        %4153 = vmatprep.mubr.bf16.mxu0 %v3331
        %4154 = vmatmul.mubr.bf16.gmra.mrb[0].mxu0 %v3330
        %v4155 = vpop.f32.mrb[0].mxu0
        %v4156 = vadd.f32 %v3351, %v4155
        %v4157 = vpop.f32.mrb[0].mxu0
        %v4158 = vpop.f32.mrb[0].mxu0
        %v4159 = vpop.f32.mrb[0].mxu0
        %4160 = vdwg.mxu0
        %4161 = vmatprep.subr.bf16.mxu0 0
        %4162 = vmatpush1.bf16.msra.mxu0 %v3881
        %4163 = vmatprep.subr.bf16.mxu0 0
        %4164 = vmatpush1.bf16.msra.mxu0 %v3882
        %4165 = vmatprep.subr.bf16.mxu0 0
        %4166 = vmatpush1.bf16.msra.mxu0 %v3883
        %4167 = vmatprep.subr.bf16.mxu0 0
        %4168 = vmatpush1.bf16.msra.mxu0 %v3884
        %4169 = vmatprep.subr.bf16.mxu0 0
        %4170 = vmatpush1.bf16.msra.mxu0 %v3885
        %4171 = vmatprep.subr.bf16.mxu0 0
        %4172 = vmatpush1.bf16.msra.mxu0 %v3886
        %4173 = vmatprep.subr.bf16.mxu0 0
        %4174 = vmatpush1.bf16.msra.mxu0 %v3887
        %4175 = vmatprep.subr.bf16.mxu0 0
        %4176 = vmatpush1.bf16.msra.mxu0 %v3888
        %4177 = vmatprep.subr.bf16.mxu0 0
        %4178 = vmatpush1.bf16.msra.mxu0 %v3889
        %4179 = vmatprep.subr.bf16.mxu0 0
        %4180 = vmatpush1.bf16.msra.mxu0 %v3890
        %4181 = vmatprep.subr.bf16.mxu0 0
        %4182 = vmatpush1.bf16.msra.mxu0 %v3891
        %4183 = vmatprep.subr.bf16.mxu0 0
        %4184 = vmatpush1.bf16.msra.mxu0 %v3892
        %4185 = vmatprep.subr.bf16.mxu0 0
        %4186 = vmatpush1.bf16.msra.mxu0 %v3893
        %4187 = vmatprep.subr.bf16.mxu0 0
        %4188 = vmatpush1.bf16.msra.mxu0 %v3894
        %4189 = vmatprep.subr.bf16.mxu0 0
        %4190 = vmatpush1.bf16.msra.mxu0 %v3895
        %4191 = vmatprep.subr.bf16.mxu0 0
        %4192 = vmatpush1.bf16.msra.mxu0 %v3896
        %4193 = vmatprep.mubr.bf16.mxu0 %v3333
        %4194 = vmatmul.mubr.bf16.gmra.mrb[0].mxu0 %v3332
        %v4195 = vpop.f32.mrb[0].mxu0
        %v4196 = vadd.f32 %v4156, %v4195
        %v4197 = vpop.f32.mrb[0].mxu0
        %v4198 = vpop.f32.mrb[0].mxu0
        %v4199 = vpop.f32.mrb[0].mxu0
        %4200 = vdwg.mxu0
        %4201 = vmatprep.subr.bf16.mxu0 0
        %4202 = vmatpush1.bf16.msra.mxu0 %v3897
        %4203 = vmatprep.subr.bf16.mxu0 0
        %4204 = vmatpush1.bf16.msra.mxu0 %v3898
        %4205 = vmatprep.subr.bf16.mxu0 0
        %4206 = vmatpush1.bf16.msra.mxu0 %v3899
        %4207 = vmatprep.subr.bf16.mxu0 0
        %4208 = vmatpush1.bf16.msra.mxu0 %v3900
        %4209 = vmatprep.subr.bf16.mxu0 0
        %4210 = vmatpush1.bf16.msra.mxu0 %v3901
        %4211 = vmatprep.subr.bf16.mxu0 0
        %4212 = vmatpush1.bf16.msra.mxu0 %v3902
        %4213 = vmatprep.subr.bf16.mxu0 0
        %4214 = vmatpush1.bf16.msra.mxu0 %v3903
        %4215 = vmatprep.subr.bf16.mxu0 0
        %4216 = vmatpush1.bf16.msra.mxu0 %v3904
        %4217 = vmatprep.subr.bf16.mxu0 0
        %4218 = vmatpush1.bf16.msra.mxu0 %v3905
        %4219 = vmatprep.subr.bf16.mxu0 0
        %4220 = vmatpush1.bf16.msra.mxu0 %v3906
        %4221 = vmatprep.subr.bf16.mxu0 0
        %4222 = vmatpush1.bf16.msra.mxu0 %v3907
        %4223 = vmatprep.subr.bf16.mxu0 0
        %4224 = vmatpush1.bf16.msra.mxu0 %v3908
        %4225 = vmatprep.subr.bf16.mxu0 0
        %4226 = vmatpush1.bf16.msra.mxu0 %v3909
        %4227 = vmatprep.subr.bf16.mxu0 0
        %4228 = vmatpush1.bf16.msra.mxu0 %v3910
        %4229 = vmatprep.subr.bf16.mxu0 0
        %4230 = vmatpush1.bf16.msra.mxu0 %v3911
        %4231 = vmatprep.subr.bf16.mxu0 0
        %4232 = vmatpush1.bf16.msra.mxu0 %v3912
        %4233 = vmatprep.mubr.bf16.mxu0 %v3335
        %4234 = vmatmul.mubr.bf16.gmra.mrb[0].mxu0 %v3334
        %v4235 = vpop.f32.mrb[0].mxu0
        %v4236 = vadd.f32 %v4196, %v4235
        %v4237 = vpop.f32.mrb[0].mxu0
        %v4238 = vpop.f32.mrb[0].mxu0
        %v4239 = vpop.f32.mrb[0].mxu0
        %4240 = vdwg.mxu0
        %4241 = vmatprep.subr.bf16.mxu0 0
        %4242 = vmatpush1.bf16.msra.mxu0 %v3913
        %4243 = vmatprep.subr.bf16.mxu0 0
        %4244 = vmatpush1.bf16.msra.mxu0 %v3914
        %4245 = vmatprep.subr.bf16.mxu0 0
        %4246 = vmatpush1.bf16.msra.mxu0 %v3915
        %4247 = vmatprep.subr.bf16.mxu0 0
        %4248 = vmatpush1.bf16.msra.mxu0 %v3916
        %4249 = vmatprep.subr.bf16.mxu0 0
        %4250 = vmatpush1.bf16.msra.mxu0 %v3917
        %4251 = vmatprep.subr.bf16.mxu0 0
        %4252 = vmatpush1.bf16.msra.mxu0 %v3918
        %4253 = vmatprep.subr.bf16.mxu0 0
        %4254 = vmatpush1.bf16.msra.mxu0 %v3919
        %4255 = vmatprep.subr.bf16.mxu0 0
        %4256 = vmatpush1.bf16.msra.mxu0 %v3920
        %4257 = vmatprep.subr.bf16.mxu0 0
        %4258 = vmatpush1.bf16.msra.mxu0 %v3921
        %4259 = vmatprep.subr.bf16.mxu0 0
        %4260 = vmatpush1.bf16.msra.mxu0 %v3922
        %4261 = vmatprep.subr.bf16.mxu0 0
        %4262 = vmatpush1.bf16.msra.mxu0 %v3923
        %4263 = vmatprep.subr.bf16.mxu0 0
        %4264 = vmatpush1.bf16.msra.mxu0 %v3924
        %4265 = vmatprep.subr.bf16.mxu0 0
        %4266 = vmatpush1.bf16.msra.mxu0 %v3925
        %4267 = vmatprep.subr.bf16.mxu0 0
        %4268 = vmatpush1.bf16.msra.mxu0 %v3926
        %4269 = vmatprep.subr.bf16.mxu0 0
        %4270 = vmatpush1.bf16.msra.mxu0 %v3927
        %4271 = vmatprep.subr.bf16.mxu0 0
        %4272 = vmatpush1.bf16.msra.mxu0 %v3928
        %4273 = vmatprep.mubr.bf16.mxu0 %v3337
        %4274 = vmatmul.mubr.bf16.gmra.mrb[0].mxu0 %v3336
        %v4275 = vpop.f32.mrb[0].mxu0
        %v4276 = vadd.f32 %v4236, %v4275
        %v4277 = vpop.f32.mrb[0].mxu0
        %v4278 = vpop.f32.mrb[0].mxu0
        %v4279 = vpop.f32.mrb[0].mxu0
        %4280 = vdwg.mxu0
        %4281 = vmatprep.subr.bf16.mxu0 0
        %4282 = vmatpush1.bf16.msra.mxu0 %v3929
        %4283 = vmatprep.subr.bf16.mxu0 0
        %4284 = vmatpush1.bf16.msra.mxu0 %v3930
        %4285 = vmatprep.subr.bf16.mxu0 0
        %4286 = vmatpush1.bf16.msra.mxu0 %v3931
        %4287 = vmatprep.subr.bf16.mxu0 0
        %4288 = vmatpush1.bf16.msra.mxu0 %v3932
        %4289 = vmatprep.subr.bf16.mxu0 0
        %4290 = vmatpush1.bf16.msra.mxu0 %v3933
        %4291 = vmatprep.subr.bf16.mxu0 0
        %4292 = vmatpush1.bf16.msra.mxu0 %v3934
        %4293 = vmatprep.subr.bf16.mxu0 0
        %4294 = vmatpush1.bf16.msra.mxu0 %v3935
        %4295 = vmatprep.subr.bf16.mxu0 0
        %4296 = vmatpush1.bf16.msra.mxu0 %v3936
        %4297 = vmatprep.subr.bf16.mxu0 0
        %4298 = vmatpush1.bf16.msra.mxu0 %v3937
        %4299 = vmatprep.subr.bf16.mxu0 0
        %4300 = vmatpush1.bf16.msra.mxu0 %v3938
        %4301 = vmatprep.subr.bf16.mxu0 0
        %4302 = vmatpush1.bf16.msra.mxu0 %v3939
        %4303 = vmatprep.subr.bf16.mxu0 0
        %4304 = vmatpush1.bf16.msra.mxu0 %v3940
        %4305 = vmatprep.subr.bf16.mxu0 0
        %4306 = vmatpush1.bf16.msra.mxu0 %v3941
        %4307 = vmatprep.subr.bf16.mxu0 0
        %4308 = vmatpush1.bf16.msra.mxu0 %v3942
        %4309 = vmatprep.subr.bf16.mxu0 0
        %4310 = vmatpush1.bf16.msra.mxu0 %v3943
        %4311 = vmatprep.subr.bf16.mxu0 0
        %4312 = vmatpush1.bf16.msra.mxu0 %v3944
        %4313 = vmatprep.mubr.bf16.mxu0 %v3339
        %4314 = vmatmul.mubr.bf16.gmra.mrb[0].mxu0 %v3338
        %v4315 = vpop.f32.mrb[0].mxu0
        %v4316 = vadd.f32 %v4276, %v4315
        %v4317 = vpop.f32.mrb[0].mxu0
        %v4318 = vpop.f32.mrb[0].mxu0
        %v4319 = vpop.f32.mrb[0].mxu0
        %4320 = vdwg.mxu0
        %4321 = vmatprep.subr.bf16.mxu0 0
        %4322 = vmatpush1.bf16.msra.mxu0 %v3945
        %4323 = vmatprep.subr.bf16.mxu0 0
        %4324 = vmatpush1.bf16.msra.mxu0 %v3946
        %4325 = vmatprep.subr.bf16.mxu0 0
        %4326 = vmatpush1.bf16.msra.mxu0 %v3947
        %4327 = vmatprep.subr.bf16.mxu0 0
        %4328 = vmatpush1.bf16.msra.mxu0 %v3948
        %4329 = vmatprep.subr.bf16.mxu0 0
        %4330 = vmatpush1.bf16.msra.mxu0 %v3949
        %4331 = vmatprep.subr.bf16.mxu0 0
        %4332 = vmatpush1.bf16.msra.mxu0 %v3950
        %4333 = vmatprep.subr.bf16.mxu0 0
        %4334 = vmatpush1.bf16.msra.mxu0 %v3951
        %4335 = vmatprep.subr.bf16.mxu0 0
        %4336 = vmatpush1.bf16.msra.mxu0 %v3952
        %4337 = vmatprep.subr.bf16.mxu0 0
        %4338 = vmatpush1.bf16.msra.mxu0 %v3953
        %4339 = vmatprep.subr.bf16.mxu0 0
        %4340 = vmatpush1.bf16.msra.mxu0 %v3954
        %4341 = vmatprep.subr.bf16.mxu0 0
        %4342 = vmatpush1.bf16.msra.mxu0 %v3955
        %4343 = vmatprep.subr.bf16.mxu0 0
        %4344 = vmatpush1.bf16.msra.mxu0 %v3956
        %4345 = vmatprep.subr.bf16.mxu0 0
        %4346 = vmatpush1.bf16.msra.mxu0 %v3957
        %4347 = vmatprep.subr.bf16.mxu0 0
        %4348 = vmatpush1.bf16.msra.mxu0 %v3958
        %4349 = vmatprep.subr.bf16.mxu0 0
        %4350 = vmatpush1.bf16.msra.mxu0 %v3959
        %4351 = vmatprep.subr.bf16.mxu0 0
        %4352 = vmatpush1.bf16.msra.mxu0 %v3960
        %4353 = vmatprep.mubr.bf16.mxu0 %v3341
        %4354 = vmatmul.mubr.bf16.gmra.mrb[0].mxu0 %v3340
        %v4355 = vpop.f32.mrb[0].mxu0
        %v4356 = vadd.f32 %v4316, %v4355
        %v4357 = vpop.f32.mrb[0].mxu0
        %v4358 = vpop.f32.mrb[0].mxu0
        %v4359 = vpop.f32.mrb[0].mxu0
        %4360 = vdwg.mxu0
        %4361 = vmatprep.subr.bf16.mxu0 0
        %4362 = vmatpush1.bf16.msra.mxu0 %v3961
        %4363 = vmatprep.subr.bf16.mxu0 0
        %4364 = vmatpush1.bf16.msra.mxu0 %v3962
        %4365 = vmatprep.subr.bf16.mxu0 0
        %4366 = vmatpush1.bf16.msra.mxu0 %v3963
        %4367 = vmatprep.subr.bf16.mxu0 0
        %4368 = vmatpush1.bf16.msra.mxu0 %v3964
        %4369 = vmatprep.subr.bf16.mxu0 0
        %4370 = vmatpush1.bf16.msra.mxu0 %v3965
        %4371 = vmatprep.subr.bf16.mxu0 0
        %4372 = vmatpush1.bf16.msra.mxu0 %v3966
        %4373 = vmatprep.subr.bf16.mxu0 0
        %4374 = vmatpush1.bf16.msra.mxu0 %v3967
        %4375 = vmatprep.subr.bf16.mxu0 0
        %4376 = vmatpush1.bf16.msra.mxu0 %v3968
        %4377 = vmatprep.subr.bf16.mxu0 0
        %4378 = vmatpush1.bf16.msra.mxu0 %v3969
        %4379 = vmatprep.subr.bf16.mxu0 0
        %4380 = vmatpush1.bf16.msra.mxu0 %v3970
        %4381 = vmatprep.subr.bf16.mxu0 0
        %4382 = vmatpush1.bf16.msra.mxu0 %v3971
        %4383 = vmatprep.subr.bf16.mxu0 0
        %4384 = vmatpush1.bf16.msra.mxu0 %v3972
        %4385 = vmatprep.subr.bf16.mxu0 0
        %4386 = vmatpush1.bf16.msra.mxu0 %v3973
        %4387 = vmatprep.subr.bf16.mxu0 0
        %4388 = vmatpush1.bf16.msra.mxu0 %v3974
        %4389 = vmatprep.subr.bf16.mxu0 0
        %4390 = vmatpush1.bf16.msra.mxu0 %v3975
        %4391 = vmatprep.subr.bf16.mxu0 0
        %4392 = vmatpush1.bf16.msra.mxu0 %v3976
        %4393 = vmatprep.mubr.bf16.mxu0 %v3343
        %4394 = vmatmul.mubr.bf16.gmra.mrb[0].mxu0 %v3342
        %v4395 = vpop.f32.mrb[0].mxu0
        %v4396 = vadd.f32 %v4356, %v4395
        %v4397 = vpop.f32.mrb[0].mxu0
        %v4398 = vpop.f32.mrb[0].mxu0
        %v4399 = vpop.f32.mrb[0].mxu0
        %4400 = vdwg.mxu0
        %4401 = vmatprep.subr.bf16.mxu0 0
        %4402 = vmatpush1.bf16.msra.mxu0 %v3977
        %4403 = vmatprep.subr.bf16.mxu0 0
        %4404 = vmatpush1.bf16.msra.mxu0 %v3978
        %4405 = vmatprep.subr.bf16.mxu0 0
        %4406 = vmatpush1.bf16.msra.mxu0 %v3979
        %4407 = vmatprep.subr.bf16.mxu0 0
        %4408 = vmatpush1.bf16.msra.mxu0 %v3980
        %4409 = vmatprep.subr.bf16.mxu0 0
        %4410 = vmatpush1.bf16.msra.mxu0 %v3981
        %4411 = vmatprep.subr.bf16.mxu0 0
        %4412 = vmatpush1.bf16.msra.mxu0 %v3982
        %4413 = vmatprep.subr.bf16.mxu0 0
        %4414 = vmatpush1.bf16.msra.mxu0 %v3983
        %4415 = vmatprep.subr.bf16.mxu0 0
        %4416 = vmatpush1.bf16.msra.mxu0 %v3984
        %4417 = vmatprep.subr.bf16.mxu0 0
        %4418 = vmatpush1.bf16.msra.mxu0 %v3985
        %4419 = vmatprep.subr.bf16.mxu0 0
        %4420 = vmatpush1.bf16.msra.mxu0 %v3986
        %4421 = vmatprep.subr.bf16.mxu0 0
        %4422 = vmatpush1.bf16.msra.mxu0 %v3987
        %4423 = vmatprep.subr.bf16.mxu0 0
        %4424 = vmatpush1.bf16.msra.mxu0 %v3988
        %4425 = vmatprep.subr.bf16.mxu0 0
        %4426 = vmatpush1.bf16.msra.mxu0 %v3989
        %4427 = vmatprep.subr.bf16.mxu0 0
        %4428 = vmatpush1.bf16.msra.mxu0 %v3990
        %4429 = vmatprep.subr.bf16.mxu0 0
        %4430 = vmatpush1.bf16.msra.mxu0 %v3991
        %4431 = vmatprep.subr.bf16.mxu0 0
        %4432 = vmatpush1.bf16.msra.mxu0 %v3992
        %4433 = vmatprep.mubr.bf16.mxu0 %v3345
        %4434 = vmatmul.mubr.bf16.gmra.mrb[0].mxu0 %v3344
        %v4435 = vpop.f32.mrb[0].mxu0
        %v4436 = vadd.f32 %v4396, %v4435
        %v4437 = vpop.f32.mrb[0].mxu0
        %v4438 = vpop.f32.mrb[0].mxu0
        %v4439 = vpop.f32.mrb[0].mxu0
        %4440 = vdwg.mxu0
        %v4441 = vadd.f32 %v1876, %v4436
        %v4442 = vld [vmem:[%s820] sm:$0x1]
        %v4443 = vld [vmem:[%s823] sm:$0x1]
        %4444 = vadd.xlane.f32.xlu0 %v4441
        %v4445 = vpop.xlane.xlu0 %4444
        %v4446 = vmul.f32 %v4445, %v1853
        %v4447 = vsub.f32 %v4441, %v4446
        %v4448 = vmul.f32 %v4447, %v4447
        %4449 = vadd.xlane.f32.xlu0 %v4448
        %v4450 = vpop.xlane.xlu0 %4449
        %v4451 = vmul.f32 %v4450, %v1853
        %v4452 = vadd.f32 %v4451, 1e-05
        %v4453 = vrsqrt.pop %v4452
        %v4454 = vmul.f32 %v4447, %v4453
        %v4456 = vlaneseq
        %v4457 = vshrl.u32 %v4456, 7
        %v4458 = vsub.s32 0, %v4457
        %v4459 = vrot.slane %v4442, %v4458
        %v4461 = vmul.f32 %v4454, %v4459
        %v4463 = vlaneseq
        %v4464 = vshrl.u32 %v4463, 7
        %v4465 = vsub.s32 0, %v4464
        %v4466 = vrot.slane %v4443, %v4465
        %v4468 = vadd.f32 %v4461, %v4466
        %4469 = vst [vmem:[#allocation2] sm:$0xff] %v4468
        %p4470 = scmp.eq.s32.totalorder %s33, 1
        // Predicated region
        $region117: #{_vae_forward.4} parent=79 // pred_check
          %p4471 = pneg %p4470
        $region118: #{_vae_forward.4} parent=79 // pred_check_branch
          %4473 = sbr.rel (%p4471) target = $region120
        $region119: #{_vae_forward.4} parent=79 // pred_region
          %4474 = vst [vmem:[%s826 - $0x7] sm:$0x80] %v4468
        $region120: #{_vae_forward.4} parent=79 // pred_fallthru
          _
        %p4475 = scmp.lt.s32.totalorder %s32, 1
        %s4476 = scalar_select %p4475, %s32, 1
        %s4477 = scalar_lea.vmem %s15, %s4476
        // Predicated region
        $region121: #{_vae_forward.4} parent=79 // pred_check
          %p4478 = pneg %p438
        $region122: #{_vae_forward.4} parent=79 // pred_check_branch
          %4480 = sbr.rel (%p4478) target = $region124
        $region123: #{_vae_forward.4} parent=79 // pred_region
          _
        $region124: #{_vae_forward.4} parent=79 // pred_fallthru
          _
      $region80: #{_vae_forward.4} parent=5 // pred_fallthru
        _
      %p4481 = scmp.le.s32.totalorder 2, %s23
      // Predicated region
      $region125: #{_vae_forward.4} parent=5 // pred_check
        %p4482 = pneg %p4481
      $region126: #{_vae_forward.4} parent=5 // pred_check_branch
        %4484 = sbr.rel (%p4482) target = $region128
      $region127: #{_vae_forward.4} parent=5 // pred_region
        %s4485 = ssub.s32 %s23, 2
        // Predicated region
        $region129: #{_vae_forward.4} parent=127 // pred_check
          %p4486 = pneg %p444
        $region130: #{_vae_forward.4} parent=127 // pred_check_branch
          %4488 = sbr.rel (%p4486) target = $region132
        $region131: #{_vae_forward.4} parent=127 // pred_region
          %p4489 = scmp.lt.s32.totalorder %s34, 1
          %s4490 = scalar_select %p4489, %s34, 1
          %s4491 = scalar_lea.vmem %s15, %s4490
        $region132: #{_vae_forward.4} parent=127 // pred_fallthru
          _
      $region128: #{_vae_forward.4} parent=5 // pred_fallthru
        _
    $region6: #{_vae_forward.4} parent=1 // loop_footer
      %s27 = sadd.s32 1, %s23
    $region7: #{_vae_forward.4} parent=1 // loop_footer_branch
      %22 = sbr.rel target = $region3
    $region8: #{_vae_forward.4} parent=1 // loop_exit
      _
    %4492 = vsyncpa [#allocation4], 1
    %s4493 = scalar_lea.sflag [#allocation4], 1
    %4494 = vsyncpa %s4493, 1
    %4495 = vsyncpa [#allocation6], 1

</llo_original>
